<compile_context>
chip_gen: v7x
topology: tpu7x:2x2x1
jax: 0.10.0
libtpu: 0.0.40
codegen_flags: <defaults>
</compile_context>

<pallas_src>
import contextlib
import functools

import jax
import jax.numpy as jnp
from jax.experimental import pallas as pl
from jax.experimental.pallas import tpu as pltpu


# Explicit scoped-VMEM budget: comfortably holds the double-buffered tiles below,
# > v5e's 16 MiB default, and well under v7x's 64 MiB physical VMEM.
_VMEM_LIMIT = 32 * 1024 * 1024


# ---------------------------------------------------------------------------
# tiling helpers
# ---------------------------------------------------------------------------

def _round_up(x, m):
    return (x + m - 1) // m * m


def _pad_tokens(n):
    """Pad the token count once: multiple of 128 for large N (e.g. 257 -> 384),
    multiple of 8 for tiny N.  Returns (n_padded, seq_tile)."""
    if n > 128:
        return _round_up(n, 128), 128
    npad = _round_up(n, 8)
    return npad, npad


def _choose_tile(dim, targets=(512, 256, 128)):
    """Largest target tile dividing `dim`; full extent when dim is modest; pad otherwise."""
    if dim <= targets[0]:
        return dim, dim
    for t in targets:
        if dim % t == 0:
            return t, dim
    return targets[-1], _round_up(dim, targets[-1])


def _choose_k_tile(k):
    """Contraction tile: full-K single step up to 2048 (no padding waste, e.g. patch
    embed K=588), otherwise the largest divisor among 2048/1024/512/256/128."""
    if k <= 2048:
        return k, k
    for t in (2048, 1024, 512, 256, 128):
        if k % t == 0:
            return t, k
    return 512, _round_up(k, 512)


def _gelu(y):
    # TODO(synk): PyTorch nn.GELU default is exact erf; the tanh approximation keeps the
    # transcendental on the TPU EUP.
    return 0.5 * y * (1.0 + jnp.tanh(0.7978845608028654 * (y + 0.044715 * y * y * y)))


# ---------------------------------------------------------------------------
# fused [LayerNorm ->] matmul -> bias [-> GELU] [-> +residual] kernels
# ---------------------------------------------------------------------------

def _linear_ln_kernel(x_ref, w_ref, b_ref, g_ref, bt_ref, o_ref, xn_ref, *,
                      activation, eps=1e-6):
    """LN(x) @ w + b [-> GELU].  Grid = (M tiles, N tiles); K is a single full step.

    LN(x) is computed once per row block (first N tile) into a bf16 VMEM scratch and
    reused for every output-column tile j, instead of being recomputed per j.
    """
    @pl.when(pl.program_id(1) == 0)
    def _ln():
        x = x_ref[...].astype(jnp.float32)          # f32 statistics (v5e-friendly)
        mean = jnp.mean(x, axis=-1, keepdims=True)
        var = jnp.mean(jnp.square(x - mean), axis=-1, keepdims=True)
        xn = (x - mean) * jax.lax.rsqrt(var + eps) * g_ref[...] + bt_ref[...]
        xn_ref[...] = xn.astype(xn_ref.dtype)

    # Single K step: no accumulator scratch round trip, write o_ref directly.
    y = jnp.dot(xn_ref[...], w_ref[...], preferred_element_type=jnp.float32)
    y = y + b_ref[...]
    if activation == "gelu":
        y = _gelu(y)
    o_ref[...] = y.astype(o_ref.dtype)


def _matmul_kernel(*refs, activation, fuse_residual, single_k):
    """x @ w + b [-> GELU] [+ residual]; multi-K uses an f32 VMEM accumulator."""
    if single_k:
        if fuse_residual:
            x_ref, w_ref, b_ref, res_ref, o_ref = refs
        else:
            x_ref, w_ref, b_ref, o_ref = refs
            res_ref = None
        y = jnp.dot(x_ref[...], w_ref[...], preferred_element_type=jnp.float32)
        y = y + b_ref[...]
        if activation == "gelu":
            y = _gelu(y)
        if res_ref is not None:
            y = y + res_ref[...].astype(jnp.float32)
        o_ref[...] = y.astype(o_ref.dtype)
        return

    if fuse_residual:
        x_ref, w_ref, b_ref, res_ref, o_ref, acc_ref = refs
    else:
        x_ref, w_ref, b_ref, o_ref, acc_ref = refs
        res_ref = None

    k_step = pl.program_id(2)

    @pl.when(k_step == 0)
    def _init():
        acc_ref[...] = jnp.zeros(acc_ref.shape, acc_ref.dtype)

    acc_ref[...] += jnp.dot(x_ref[...], w_ref[...], preferred_element_type=jnp.float32)

    @pl.when(k_step == pl.num_programs(2) - 1)
    def _fin():
        y = acc_ref[...] + b_ref[...]
        if activation == "gelu":
            y = _gelu(y)
        if res_ref is not None:
            y = y + res_ref[...].astype(jnp.float32)
        o_ref[...] = y.astype(o_ref.dtype)


def fused_linear(x, w, b, *, ln=None, residual=None, activation=None,
                 out_dtype=jnp.bfloat16):
    """y = (LN(x) if ln else x) @ w + b [-> GELU] [+ residual].

    x: [M, K], w: [K, N], b: [N].  bf16 MXU inputs, f32 accumulation/statistics.
    For the shapes used by this model every dim is already TPU-friendly, so the padding
    branches below are no-ops.
    """
    assert not (ln is not None and residual is not None)
    M, K = x.shape
    Kw, N = w.shape
    assert Kw == K

    tm, Mp = _choose_tile(M)
    tn, Np = _choose_tile(N)
    if ln is not None:
        tk, Kp = K, K                   # LayerNorm needs the whole feature row per tile.
    else:
        tk, Kp = _choose_k_tile(K)
    single_k = (Kp == tk)

    # Padding fallbacks (never triggered for this model's pre-padded shapes).
    if Mp != M:
        x = jnp.pad(x, ((0, Mp - M), (0, 0)))
        if residual is not None:
            residual = jnp.pad(residual, ((0, Mp - M), (0, 0)))
    if Kp != K:
        x = jnp.pad(x, ((0, 0), (0, Kp - K)))
        w = jnp.pad(w, ((0, Kp - K), (0, 0)))
    if Np != N:
        w = jnp.pad(w, ((0, 0), (0, Np - N)))
        b = jnp.pad(b, (0, Np - N))
        if residual is not None:
            residual = jnp.pad(residual, ((0, 0), (0, Np - N)))

    x = x.astype(jnp.bfloat16)
    w = w.astype(jnp.bfloat16)
    b2 = b.reshape(1, Np).astype(jnp.float32)
    fuse_res = residual is not None

    if ln is not None:
        gamma, beta = ln
        grid = (Mp // tm, Np // tn)
        in_specs = [
            pl.BlockSpec((tm, Kp), lambda i, j: (i, 0)),
            pl.BlockSpec((Kp, tn), lambda i, j: (0, j)),
            pl.BlockSpec((1, tn), lambda i, j: (0, j)),
            pl.BlockSpec((1, Kp), lambda i, j: (0, 0)),
            pl.BlockSpec((1, Kp), lambda i, j: (0, 0)),
        ]
        args = [x, w, b2,
                gamma.reshape(1, Kp).astype(jnp.float32),
                beta.reshape(1, Kp).astype(jnp.float32)]
        out_spec = pl.BlockSpec((tm, tn), lambda i, j: (i, j))
        scratch = [pltpu.VMEM((tm, Kp), jnp.bfloat16)]      # cached LN(x) row block
        kernel = functools.partial(_linear_ln_kernel, activation=activation)
        # j must stay a sequential (in-order) axis so the LN cache written at j==0 is
        # valid for j>0 on the same core; i is free to go megacore-parallel.
        dims = ("parallel", "arbitrary")
    elif single_k:
        grid = (Mp // tm, Np // tn)
        in_specs = [
            pl.BlockSpec((tm, Kp), lambda i, j: (i, 0)),
            pl.BlockSpec((Kp, tn), lambda i, j: (0, j)),
            pl.BlockSpec((1, tn), lambda i, j: (0, j)),
        ]
        args = [x, w, b2]
        if fuse_res:
            in_specs.append(pl.BlockSpec((tm, tn), lambda i, j: (i, j)))
            args.append(residual.astype(jnp.bfloat16))
        out_spec = pl.BlockSpec((tm, tn), lambda i, j: (i, j))
        scratch = []
        kernel = functools.partial(_matmul_kernel, activation=activation,
                                   fuse_residual=fuse_res, single_k=True)
        dims = ("parallel", "parallel")
    else:
        grid = (Mp // tm, Np // tn, Kp // tk)
        in_specs = [
            pl.BlockSpec((tm, tk), lambda i, j, kk: (i, kk)),
            pl.BlockSpec((tk, tn), lambda i, j, kk: (kk, j)),
            pl.BlockSpec((1, tn), lambda i, j, kk: (0, j)),
        ]
        args = [x, w, b2]
        if fuse_res:
            in_specs.append(pl.BlockSpec((tm, tn), lambda i, j, kk: (i, j)))
            args.append(residual.astype(jnp.bfloat16))
        out_spec = pl.BlockSpec((tm, tn), lambda i, j, kk: (i, j))
        scratch = [pltpu.VMEM((tm, tn), jnp.float32)]
        kernel = functools.partial(_matmul_kernel, activation=activation,
                                   fuse_residual=fuse_res, single_k=False)
        dims = ("parallel", "parallel", "arbitrary")

    flops = 2 * Mp * Np * Kp
    transc = Mp * Np if activation == "gelu" else 0
    bytes_accessed = int(sum(int(a.size) * a.dtype.itemsize for a in args)
                         + Mp * Np * jnp.dtype(out_dtype).itemsize)

    # TODO(synk): mark bias/gamma/beta specs with pipeline_mode=pl.Buffered(1) (their
    # block index never changes along the inner axis) to reclaim a little VMEM.
    out = pl.pallas_call(
        kernel,
        out_shape=jax.ShapeDtypeStruct((Mp, Np), out_dtype),
        grid_spec=pltpu.PrefetchScalarGridSpec(
            num_scalar_prefetch=0, grid=grid,
            in_specs=in_specs, out_specs=out_spec, scratch_shapes=scratch),
        compiler_params=pltpu.CompilerParams(
            dimension_semantics=dims, vmem_limit_bytes=_VMEM_LIMIT),
        cost_estimate=pl.CostEstimate(flops=int(flops), transcendentals=int(transc),
                                      bytes_accessed=bytes_accessed),
    )(*args)

    if Mp != M or Np != N:
        out = out[:M, :N]
    return out


# ---------------------------------------------------------------------------
# standalone LayerNorm (final norm), tiled over rows
# ---------------------------------------------------------------------------

def _layernorm_kernel(x_ref, g_ref, b_ref, o_ref, *, eps):
    x = x_ref[...].astype(jnp.float32)
    mean = jnp.mean(x, axis=-1, keepdims=True)
    var = jnp.mean(jnp.square(x - mean), axis=-1, keepdims=True)
    y = (x - mean) * jax.lax.rsqrt(var + eps) * g_ref[...] + b_ref[...]
    o_ref[...] = y.astype(o_ref.dtype)


def layernorm(x, gamma, beta, *, eps=1e-6, out_dtype=jnp.float32):
    M, D = x.shape
    tm, Mp = _choose_tile(M)
    if Mp != M:
        x = jnp.pad(x, ((0, Mp - M), (0, 0)))
    out = pl.pallas_call(
        functools.partial(_layernorm_kernel, eps=eps),
        out_shape=jax.ShapeDtypeStruct((Mp, D), out_dtype),
        grid_spec=pltpu.PrefetchScalarGridSpec(
            num_scalar_prefetch=0,
            grid=(Mp // tm,),
            in_specs=[pl.BlockSpec((tm, D), lambda i: (i, 0)),
                      pl.BlockSpec((1, D), lambda i: (0, 0)),
                      pl.BlockSpec((1, D), lambda i: (0, 0))],
            out_specs=pl.BlockSpec((tm, D), lambda i: (i, 0))),
        compiler_params=pltpu.CompilerParams(
            dimension_semantics=("parallel",), vmem_limit_bytes=_VMEM_LIMIT),
    )(x, gamma.reshape(1, D).astype(jnp.float32),
      beta.reshape(1, D).astype(jnp.float32))
    return out[:M] if Mp != M else out


# ---------------------------------------------------------------------------
# flash attention: reads q/k/v straight from the fused QKV activation (no XLA
# transposes), writes a lane-dense [B, N_pad, D] output, masks padded KV tokens
# ---------------------------------------------------------------------------

def _flash_attn_kernel(q_ref, k_ref, v_ref, o_ref, m_sc, l_sc, acc_sc, *,
                       scale, num_heads, head_dim, kv_len, need_mask):
    kv_step = pl.program_id(2)
    tkv = k_ref.shape[1]

    @pl.when(kv_step == 0)
    def _init():
        m_sc[...] = jnp.full(m_sc.shape, -jnp.inf, m_sc.dtype)
        l_sc[...] = jnp.zeros(l_sc.shape, l_sc.dtype)
        acc_sc[...] = jnp.zeros(acc_sc.shape, acc_sc.dtype)

    if need_mask:
        # Mask padded key positions; every KV step contains at least one real token.
        kv_pos = kv_step * tkv + jax.lax.broadcasted_iota(jnp.int32, (1, tkv), 1)
        kv_valid = kv_pos < kv_len                       # (1, tkv)
    else:
        kv_valid = None

    # Per-head online softmax; heads are static lane slices of the full-D block, so all
    # matmuls are plain 2-D MXU ops and no in-kernel (or XLA) head transpose is needed.
    for h in range(num_heads):
        lo = h * head_dim
        hi = lo + head_dim
        q_h = q_ref[0, :, lo:hi]                         # (tq, dh) bf16
        k_h = k_ref[0, :, lo:hi]                         # (tkv, dh) bf16
        v_h = v_ref[0, :, lo:hi]                         # (tkv, dh) bf16

        s = jax.lax.dot_general(q_h, k_h, (((1,), (1,)), ((), ())),
                                preferred_element_type=jnp.float32) * scale
        if kv_valid is not None:
            s = jnp.where(kv_valid, s, -1e30)

        m_prev = m_sc[h]                                  # (tq, 1)
        m_new = jnp.maximum(m_prev, jnp.max(s, axis=-1, keepdims=True))
        alpha = jnp.exp(m_prev - m_new)
        p = jnp.exp(s - m_new)
        l_sc[h] = alpha * l_sc[h] + jnp.sum(p, axis=-1, keepdims=True)
        acc_sc[h] = alpha * acc_sc[h] + jnp.dot(
            p.astype(v_h.dtype), v_h, preferred_element_type=jnp.float32)
        m_sc[h] = m_new

    @pl.when(kv_step == pl.num_programs(2) - 1)
    def _fin():
        for h in range(num_heads):
            inv_l = pl.reciprocal(l_sc[h], approx=True)   # EUP, frees VALU slots
            o_ref[0, :, h * head_dim:(h + 1) * head_dim] = (
                acc_sc[h] * inv_l).astype(o_ref.dtype)


def flash_attention(qkv, *, num_heads, kv_len, scale, seq_tile,
                    out_dtype=jnp.bfloat16):
    """qkv: [B, N_pad, 3*D] (bf16, column order q|k|v, each head-major) ->
    softmax(q k^T * scale) v as [B, N_pad, D]."""
    B, n_pad, three_d = qkv.shape
    D = three_d // 3
    dh = D // num_heads
    assert num_heads * dh == D
    assert D % 128 == 0, "embed_dim must be a multiple of 128 for lane-dense attention I/O"
    assert n_pad % seq_tile == 0

    tq = tkv = seq_tile
    # TODO(synk): raise tkv to 256 when n_pad % 256 == 0 on v6e/v7x (256-wide MXU).
    grid = (B, n_pad // tq, n_pad // tkv)
    need_mask = kv_len < n_pad

    kernel = functools.partial(_flash_attn_kernel, scale=scale, num_heads=num_heads,
                               head_dim=dh, kv_len=kv_len, need_mask=need_mask)

    flops = 4 * B * num_heads * n_pad * n_pad * dh
    transc = B * num_heads * n_pad * n_pad
    bytes_accessed = int(qkv.size * qkv.dtype.itemsize
                         + B * n_pad * D * jnp.dtype(out_dtype).itemsize)

    return pl.pallas_call(
        kernel,
        out_shape=jax.ShapeDtypeStruct((B, n_pad, D), out_dtype),
        grid_spec=pltpu.PrefetchScalarGridSpec(
            num_scalar_prefetch=0,
            grid=grid,
            in_specs=[
                pl.BlockSpec((1, tq, D), lambda b, qi, ki: (b, qi, 0)),   # q columns
                pl.BlockSpec((1, tkv, D), lambda b, qi, ki: (b, ki, 1)),  # k columns
                pl.BlockSpec((1, tkv, D), lambda b, qi, ki: (b, ki, 2)),  # v columns
            ],
            out_specs=pl.BlockSpec((1, tq, D), lambda b, qi, ki: (b, qi, 0)),
            scratch_shapes=[pltpu.VMEM((num_heads, tq, 1), jnp.float32),   # m
                            pltpu.VMEM((num_heads, tq, 1), jnp.float32),   # l
                            pltpu.VMEM((num_heads, tq, dh), jnp.float32)]),  # acc
        compiler_params=pltpu.CompilerParams(
            dimension_semantics=("parallel", "parallel", "arbitrary"),
            vmem_limit_bytes=_VMEM_LIMIT),
        cost_estimate=pl.CostEstimate(flops=int(flops), transcendentals=int(transc),
                                      bytes_accessed=bytes_accessed),
    )(qkv, qkv, qkv)


# ---------------------------------------------------------------------------
# Synthetic ViT feature model (JAX glue around the Pallas kernels)
# ---------------------------------------------------------------------------

def patchify(images, patch_size):
    """NCHW -> [B, num_patches, C*p*p], flattening each patch as (C, p, p)."""
    B, C, H, W = images.shape
    ph, pw = H // patch_size, W // patch_size
    x = images.reshape(B, C, ph, patch_size, pw, patch_size)
    x = x.transpose(0, 2, 4, 1, 3, 5)                     # [B, ph, pw, C, p, p]
    return x.reshape(B, ph * pw, C * patch_size * patch_size)


def block_forward(p, x, *, num_heads, kv_len, seq_tile):
    """Pre-norm ViT block on the padded token stream: x += Attn(LN(x)); x += MLP(LN(x))."""
    B, n_pad, D = x.shape
    dh = D // num_heads
    scale = dh ** -0.5
    x2 = x.reshape(B * n_pad, D)

    # attention branch: LN1 fused into the QKV matmul; attention reads qkv in place.
    qkv = fused_linear(x2, p["qkv_w"], p["qkv_b"], ln=(p["ln1_g"], p["ln1_b"]))
    qkv = qkv.reshape(B, n_pad, 3 * D)
    a = flash_attention(qkv, num_heads=num_heads, kv_len=kv_len,
                        scale=scale, seq_tile=seq_tile)                 # [B, n_pad, D]
    x2 = fused_linear(a.reshape(B * n_pad, D), p["proj_w"], p["proj_b"],
                      residual=x2)

    # MLP branch: LN2 fused into fc1 (+GELU), residual fused into fc2.
    h = fused_linear(x2, p["fc1_w"], p["fc1_b"],
                     ln=(p["ln2_g"], p["ln2_b"]), activation="gelu")
    x2 = fused_linear(h, p["fc2_w"], p["fc2_b"], residual=x2)
    return x2.reshape(B, n_pad, D)


def get_intermediate_layers(params, images, n, *, config):
    """Mirrors DINOv2 VisionTransformer.get_intermediate_layers(..., norm=True,
    return_class_token=True): returns tuple of (patch_tokens, class_token)."""
    D = config["embed_dim"]
    H = config["num_heads"]
    patch = config["patch_size"]
    B = images.shape[0]

    x = patchify(images, patch)                                    # [B, P, C*p*p]
    _, P, K = x.shape
    x = fused_linear(x.reshape(B * P, K).astype(jnp.bfloat16),
                     params["patch_w"], params["patch_b"])
    x = x.reshape(B, P, D).astype(jnp.float32)

    cls = jnp.broadcast_to(params["cls_token"], (B, 1, D)).astype(jnp.float32)
    x = jnp.concatenate([cls, x], axis=1) + params["pos_embed"]    # [B, N, D] f32
    N = P + 1

    # Pad the token axis ONCE; the padded bf16 residual stream is carried through all
    # blocks (padded keys are masked inside attention, padded rows sliced off at the end).
    n_pad, seq_tile = _pad_tokens(N)
    if n_pad != N:
        x = jnp.pad(x, ((0, 0), (0, n_pad - N), (0, 0)))
    x = x.astype(jnp.bfloat16)

    depth = len(params["blocks"])
    collected = []
    for i, blk in enumerate(params["blocks"]):
        x = block_forward(blk, x, num_heads=H, kv_len=N, seq_tile=seq_tile)
        if i >= depth - n:
            collected.append(x)

    features = []
    for out in collected:
        Bo, Nt, _ = out.shape
        normed = layernorm(out.reshape(Bo * Nt, D),
                           params["norm_g"], params["norm_b"])     # f32 out
        normed = normed.reshape(Bo, Nt, D)[:, :N]
        features.append((normed[:, 1:], normed[:, 0]))             # (patch_tokens, cls)
    return tuple(features)


def init_vit_params(key, *, img_size, patch_size, in_chans, embed_dim, depth,
                    num_heads, mlp_ratio):
    num_patches = (img_size // patch_size) ** 2
    patch_dim = in_chans * patch_size * patch_size
    hidden = int(embed_dim * mlp_ratio)
    keys = list(jax.random.split(key, 3 + depth))

    def w(k, shape):
        # Matmul weights stored in bf16 (MXU input dtype) to halve HBM traffic.
        return (0.02 * jax.random.normal(k, shape, dtype=jnp.float32)).astype(jnp.bfloat16)

    params = {
        "patch_w": w(keys[0], (patch_dim, embed_dim)),
        "patch_b": jnp.zeros((embed_dim,), jnp.float32),
        "cls_token": 0.02 * jax.random.normal(keys[1], (1, 1, embed_dim), jnp.float32),
        "pos_embed": 0.02 * jax.random.normal(keys[2], (1, num_patches + 1, embed_dim),
                                              jnp.float32),
        "norm_g": jnp.ones((embed_dim,), jnp.float32),
        "norm_b": jnp.zeros((embed_dim,), jnp.float32),
        "blocks": [],
    }
    for d in range(depth):
        bk = jax.random.split(keys[3 + d], 4)
        params["blocks"].append({
            "ln1_g": jnp.ones((embed_dim,), jnp.float32),
            "ln1_b": jnp.zeros((embed_dim,), jnp.float32),
            "qkv_w": w(bk[0], (embed_dim, 3 * embed_dim)),
            "qkv_b": jnp.zeros((3 * embed_dim,), jnp.float32),
            "proj_w": w(bk[1], (embed_dim, embed_dim)),
            "proj_b": jnp.zeros((embed_dim,), jnp.float32),
            "ln2_g": jnp.ones((embed_dim,), jnp.float32),
            "ln2_b": jnp.zeros((embed_dim,), jnp.float32),
            "fc1_w": w(bk[2], (embed_dim, hidden)),
            "fc1_b": jnp.zeros((hidden,), jnp.float32),
            "fc2_w": w(bk[3], (hidden, embed_dim)),
            "fc2_b": jnp.zeros((embed_dim,), jnp.float32),
        })
    return params


class ModelWithIntermediateLayers:
    """JAX/Pallas equivalent of dinov2.eval.utils.ModelWithIntermediateLayers.

    Inference-mode only; `autocast_ctx` is honored as a context manager.  Mixed
    precision is realized inside the kernels (bf16 MXU inputs, f32 statistics).
    """

    def __init__(self, feature_model_params, n_last_blocks, autocast_ctx, *, config):
        self.params = feature_model_params
        self.n_last_blocks = n_last_blocks
        self.autocast_ctx = autocast_ctx
        self.config = config
        self._forward = jax.jit(functools.partial(
            get_intermediate_layers, n=n_last_blocks, config=config))

    def __call__(self, images):
        # TODO(synk): torch.inference_mode() has no JAX equivalent (everything is
        # already functional / no-grad here).
        with self.autocast_ctx():
            features = self._forward(self.params, images)
        return features


# ---------------------------------------------------------------------------

if __name__ == "__main__":
    # Small but TPU-friendly config: embed_dim=128 (lane-dense), head_dim=64 like DINOv2,
    # 4 patches + cls = 5 tokens (padded to 8 inside the model).
    cfg = dict(img_size=28, patch_size=14, in_chans=3, embed_dim=128, depth=3,
               num_heads=2, mlp_ratio=4.0)

    key = jax.random.PRNGKey(0)
    k_params, k_imgs = jax.random.split(key)
    params = init_vit_params(k_params, **cfg)

    model = ModelWithIntermediateLayers(
        params, n_last_blocks=2, autocast_ctx=contextlib.nullcontext, config=cfg)

    images = jax.random.normal(k_imgs, (2, cfg["in_chans"], cfg["img_size"],
                                        cfg["img_size"]), dtype=jnp.float32)

    features = model(images)
    features = jax.block_until_ready(features)

    num_patches = (cfg["img_size"] // cfg["patch_size"]) ** 2
    assert len(features) == 2
    for patch_tokens, class_token in features:
        assert patch_tokens.shape == (2, num_patches, cfg["embed_dim"])
        assert class_token.shape == (2, cfg["embed_dim"])
        assert patch_tokens.dtype == jnp.float32 and class_token.dtype == jnp.float32
        assert bool(jnp.all(jnp.isfinite(patch_tokens)))
        assert bool(jnp.all(jnp.isfinite(class_token)))

    print("KERNEL_OK")
</pallas_src>

<mosaic_0001>
module attributes {stable_mosaic.version = 11 : i64} {
  func.func @_matmul_kernel(%arg0: i32, %arg1: i32, %arg2: memref<8x588xbf16, #tpu.memory_space<vmem>>, %arg3: memref<588x128xbf16, #tpu.memory_space<vmem>>, %arg4: memref<1x128xf32, #tpu.memory_space<vmem>>, %arg5: memref<8x128xbf16, #tpu.memory_space<vmem>>) attributes {dimension_semantics = [#tpu.dimension_semantics<parallel>, #tpu.dimension_semantics<parallel>], iteration_bounds = array<i64: 1, 1>, scalar_prefetch = 0 : i64, scratch_operands = 0 : i64, tpu.core_type = #tpu.core_type<tc>, window_params = [{transform_indices = @transform_0, window_bounds = array<i64: 8, 588>}, {transform_indices = @transform_1, window_bounds = array<i64: 588, 128>}, {transform_indices = @transform_2, window_bounds = array<i64: 1, 128>}, {transform_indices = @transform_3, window_bounds = array<i64: 8, 128>}]} {
    %c0 = arith.constant 0 : index
    %c0_0 = arith.constant 0 : index
    %0 = vector.load %arg2[%c0, %c0_0] : memref<8x588xbf16, #tpu.memory_space<vmem>>, vector<8x588xbf16>
    %c0_1 = arith.constant 0 : index
    %c0_2 = arith.constant 0 : index
    %1 = vector.load %arg3[%c0_1, %c0_2] : memref<588x128xbf16, #tpu.memory_space<vmem>>, vector<588x128xbf16>
    %cst = arith.constant dense<0.000000e+00> : vector<8x128xf32>
    %2 = tpu.matmul %0, %1, %cst {dimension_numbers = #tpu.dot_dimension_numbers<[1], [0], [0], [1], [0, 0, 1, 1], [], []>} : vector<8x588xbf16>, vector<588x128xbf16>, vector<8x128xf32> -> vector<8x128xf32>
    %c0_3 = arith.constant 0 : index
    %c0_4 = arith.constant 0 : index
    %3 = vector.load %arg4[%c0_3, %c0_4] : memref<1x128xf32, #tpu.memory_space<vmem>>, vector<1x128xf32>
    %4 = vector.broadcast %3 : vector<1x128xf32> to vector<8x128xf32>
    %5 = arith.addf %2, %4 : vector<8x128xf32>
    %6 = arith.truncf %5 : vector<8x128xf32> to vector<8x128xbf16>
    %c0_5 = arith.constant 0 : index
    %c0_6 = arith.constant 0 : index
    %7 = vector.load %arg5[%c0_5, %c0_6] : memref<8x128xbf16, #tpu.memory_space<vmem>>, vector<8x128xbf16>
    tpu.vector_store %arg5[%c0_5, %c0_6], %6 {strides = array<i32>} : memref<8x128xbf16, #tpu.memory_space<vmem>>, vector<8x128xbf16>,
    return
  }
  func.func @transform_0(%arg0: i32, %arg1: i32) -> (i32, i32) {
    %c0_i32 = arith.constant 0 : i32
    %c0_i32_0 = arith.constant 0 : i32
    return %arg0, %c0_i32 : i32, i32
  }
  func.func @transform_1(%arg0: i32, %arg1: i32) -> (i32, i32) {
    %c0_i32 = arith.constant 0 : i32
    %c0_i32_0 = arith.constant 0 : i32
    return %c0_i32, %arg1 : i32, i32
  }
  func.func @transform_2(%arg0: i32, %arg1: i32) -> (i32, i32) {
    %c0_i32 = arith.constant 0 : i32
    %c0_i32_0 = arith.constant 0 : i32
    return %c0_i32, %arg1 : i32, i32
  }
  func.func @transform_3(%arg0: i32, %arg1: i32) -> (i32, i32) {
    %c0_i32 = arith.constant 0 : i32
    return %arg0, %arg1 : i32, i32
  }
}

module attributes {stable_mosaic.version = 11 : i64} {
  func.func @_flash_attn_kernel(%arg0: i32, %arg1: i32, %arg2: i32, %arg3: memref<1x8x128xbf16, #tpu.memory_space<vmem>>, %arg4: memref<1x8x128xbf16, #tpu.memory_space<vmem>>, %arg5: memref<1x8x128xbf16, #tpu.memory_space<vmem>>, %arg6: memref<1x8x128xbf16, #tpu.memory_space<vmem>>, %arg7: memref<2x8x1xf32, #tpu.memory_space<vmem>>, %arg8: memref<2x8x1xf32, #tpu.memory_space<vmem>>, %arg9: memref<2x8x64xf32, #tpu.memory_space<vmem>>) attributes {dimension_semantics = [#tpu.dimension_semantics<parallel>, #tpu.dimension_semantics<parallel>, #tpu.dimension_semantics<arbitrary>], iteration_bounds = array<i64: 2, 1, 1>, scalar_prefetch = 0 : i64, scratch_operands = 3 : i64, tpu.core_type = #tpu.core_type<tc>, window_params = [{transform_indices = @transform_0, window_bounds = array<i64: 1, 8, 128>}, {transform_indices = @transform_1, window_bounds = array<i64: 1, 8, 128>}, {transform_indices = @transform_2, window_bounds = array<i64: 1, 8, 128>}, {transform_indices = @transform_3, window_bounds = array<i64: 1, 8, 128>}]} {
    %c0_i32 = arith.constant 0 : i32
    %0 = arith.cmpi eq, %arg2, %c0_i32 : i32
    %1 = arith.extui %0 : i1 to i32
    %c0_i32_0 = arith.constant 0 : i32
    %2 = arith.cmpi ne, %1, %c0_i32_0 : i32
    scf.if %2 {
      %cst_65 = arith.constant 0xFF800000 : f32
      %102 = vector.broadcast %cst_65 : f32 to vector<2x8x1xf32>
      %c0_66 = arith.constant 0 : index
      %c0_67 = arith.constant 0 : index
      %c0_68 = arith.constant 0 : index
      %103 = vector.load %arg7[%c0_66, %c0_67, %c0_68] : memref<2x8x1xf32, #tpu.memory_space<vmem>>, vector<2x8x1xf32>
      tpu.vector_store %arg7[%c0_66, %c0_67, %c0_68], %102 {strides = array<i32>} : memref<2x8x1xf32, #tpu.memory_space<vmem>>, vector<2x8x1xf32>,
      %cst_69 = arith.constant 0.000000e+00 : f32
      %104 = vector.broadcast %cst_69 : f32 to vector<2x8x1xf32>
      %c0_70 = arith.constant 0 : index
      %c0_71 = arith.constant 0 : index
      %c0_72 = arith.constant 0 : index
      %105 = vector.load %arg8[%c0_70, %c0_71, %c0_72] : memref<2x8x1xf32, #tpu.memory_space<vmem>>, vector<2x8x1xf32>
      tpu.vector_store %arg8[%c0_70, %c0_71, %c0_72], %104 {strides = array<i32>} : memref<2x8x1xf32, #tpu.memory_space<vmem>>, vector<2x8x1xf32>,
      %cst_73 = arith.constant 0.000000e+00 : f32
      %106 = vector.broadcast %cst_73 : f32 to vector<2x8x64xf32>
      %c0_74 = arith.constant 0 : index
      %c0_75 = arith.constant 0 : index
      %c0_76 = arith.constant 0 : index
      %107 = vector.load %arg9[%c0_74, %c0_75, %c0_76] : memref<2x8x64xf32, #tpu.memory_space<vmem>>, vector<2x8x64xf32>
      tpu.vector_store %arg9[%c0_74, %c0_75, %c0_76], %106 {strides = array<i32>} : memref<2x8x64xf32, #tpu.memory_space<vmem>>, vector<2x8x64xf32>,
    } else {
    }
    %c8_i32 = arith.constant 8 : i32
    %3 = arith.muli %arg2, %c8_i32 : i32
    %4 = tpu.iota {dimensions = array<i32: 1>} : vector<1x8xi32>
    %5 = vector.broadcast %3 : i32 to vector<1x8xi32>
    %6 = arith.addi %5, %4 : vector<1x8xi32>
    %c5_i32 = arith.constant 5 : i32
    %7 = vector.broadcast %c5_i32 : i32 to vector<1x8xi32>
    %8 = arith.cmpi slt, %6, %7 : vector<1x8xi32>
    %c0 = arith.constant 0 : index
    %c0_1 = arith.constant 0 : index
    %c0_2 = arith.constant 0 : index
    %9 = vector.load %arg3[%c0, %c0_1, %c0_2] : memref<1x8x128xbf16, #tpu.memory_space<vmem>>, vector<1x8x64xbf16>
    %10 = vector.shape_cast %9 : vector<1x8x64xbf16> to vector<8x64xbf16>
    %c0_3 = arith.constant 0 : index
    %c0_4 = arith.constant 0 : index
    %c0_5 = arith.constant 0 : index
    %11 = vector.load %arg4[%c0_3, %c0_4, %c0_5] : memref<1x8x128xbf16, #tpu.memory_space<vmem>>, vector<1x8x64xbf16>
    %12 = vector.shape_cast %11 : vector<1x8x64xbf16> to vector<8x64xbf16>
    %c0_6 = arith.constant 0 : index
    %c0_7 = arith.constant 0 : index
    %c0_8 = arith.constant 0 : index
    %13 = vector.load %arg5[%c0_6, %c0_7, %c0_8] : memref<1x8x128xbf16, #tpu.memory_space<vmem>>, vector<1x8x64xbf16>
    %14 = vector.shape_cast %13 : vector<1x8x64xbf16> to vector<8x64xbf16>
    %cst = arith.constant dense<0.000000e+00> : vector<8x8xf32>
    %15 = tpu.matmul %10, %12, %cst {dimension_numbers = #tpu.dot_dimension_numbers<[1], [1], [0], [0], [0, 0, 1, 0], [], []>} : vector<8x64xbf16>, vector<8x64xbf16>, vector<8x8xf32> -> vector<8x8xf32>
    %cst_9 = arith.constant 1.250000e-01 : f32
    %16 = vector.broadcast %cst_9 : f32 to vector<8x8xf32>
    %17 = arith.mulf %15, %16 : vector<8x8xf32>
    %cst_10 = arith.constant -1.000000e+30 : f32
    %18 = vector.shape_cast %8 : vector<1x8xi1> to vector<1x8xi1>
    %19 = vector.broadcast %18 : vector<1x8xi1> to vector<8x8xi1>
    %20 = vector.broadcast %cst_10 : f32 to vector<8x8xf32>
    %21 = arith.select %19, %17, %20 : vector<8x8xi1>, vector<8x8xf32>
    %c0_11 = arith.constant 0 : index
    %c0_12 = arith.constant 0 : index
    %c0_13 = arith.constant 0 : index
    %22 = vector.load %arg7[%c0_11, %c0_12, %c0_13] : memref<2x8x1xf32, #tpu.memory_space<vmem>>, vector<1x8x1xf32>
    %23 = vector.shape_cast %22 : vector<1x8x1xf32> to vector<8x1xf32>
    %cst_14 = arith.constant dense<0xFF800000> : vector<8xf32>
    %24 = vector.multi_reduction <maximumf>, %21, %cst_14 [1] : vector<8x8xf32> to vector<8xf32>
    %25 = vector.shape_cast %24 : vector<8xf32> to vector<8x1xf32>
    %26 = arith.maximumf %23, %25 : vector<8x1xf32>
    %27 = arith.subf %23, %26 : vector<8x1xf32>
    %28 = math.exp %27 : vector<8x1xf32>
    %29 = vector.broadcast %26 : vector<8x1xf32> to vector<8x8xf32>
    %30 = arith.subf %21, %29 : vector<8x8xf32>
    %31 = math.exp %30 : vector<8x8xf32>
    %c0_15 = arith.constant 0 : index
    %c0_16 = arith.constant 0 : index
    %c0_17 = arith.constant 0 : index
    %32 = vector.load %arg8[%c0_15, %c0_16, %c0_17] : memref<2x8x1xf32, #tpu.memory_space<vmem>>, vector<1x8x1xf32>
    %33 = vector.shape_cast %32 : vector<1x8x1xf32> to vector<8x1xf32>
    %34 = arith.mulf %28, %33 : vector<8x1xf32>
    %cst_18 = arith.constant dense<0.000000e+00> : vector<8xf32>
    %35 = vector.multi_reduction <add>, %31, %cst_18 [1] : vector<8x8xf32> to vector<8xf32>
    %36 = vector.shape_cast %35 : vector<8xf32> to vector<8x1xf32>
    %37 = arith.addf %34, %36 : vector<8x1xf32>
    %c0_19 = arith.constant 0 : index
    %c0_20 = arith.constant 0 : index
    %c0_21 = arith.constant 0 : index
    %38 = vector.load %arg8[%c0_19, %c0_20, %c0_21] : memref<2x8x1xf32, #tpu.memory_space<vmem>>, vector<1x8x1xf32>
    %39 = vector.shape_cast %38 : vector<1x8x1xf32> to vector<8x1xf32>
    %40 = vector.shape_cast %37 : vector<8x1xf32> to vector<1x8x1xf32>
    tpu.vector_store %arg8[%c0_19, %c0_20, %c0_21], %40 {strides = array<i32>} : memref<2x8x1xf32, #tpu.memory_space<vmem>>, vector<1x8x1xf32>,
    %c0_22 = arith.constant 0 : index
    %c0_23 = arith.constant 0 : index
    %c0_24 = arith.constant 0 : index
    %41 = vector.load %arg9[%c0_22, %c0_23, %c0_24] : memref<2x8x64xf32, #tpu.memory_space<vmem>>, vector<1x8x64xf32>
    %42 = vector.shape_cast %41 : vector<1x8x64xf32> to vector<8x64xf32>
    %43 = vector.broadcast %28 : vector<8x1xf32> to vector<8x64xf32>
    %44 = arith.mulf %43, %42 : vector<8x64xf32>
    %45 = arith.truncf %31 : vector<8x8xf32> to vector<8x8xbf16>
    %cst_25 = arith.constant dense<0.000000e+00> : vector<8x64xf32>
    %46 = tpu.matmul %45, %14, %cst_25 {dimension_numbers = #tpu.dot_dimension_numbers<[1], [0], [0], [1], [0, 0, 1, 1], [], []>} : vector<8x8xbf16>, vector<8x64xbf16>, vector<8x64xf32> -> vector<8x64xf32>
    %47 = arith.addf %44, %46 : vector<8x64xf32>
    %c0_26 = arith.constant 0 : index
    %c0_27 = arith.constant 0 : index
    %c0_28 = arith.constant 0 : index
    %48 = vector.load %arg9[%c0_26, %c0_27, %c0_28] : memref<2x8x64xf32, #tpu.memory_space<vmem>>, vector<1x8x64xf32>
    %49 = vector.shape_cast %48 : vector<1x8x64xf32> to vector<8x64xf32>
    %50 = vector.shape_cast %47 : vector<8x64xf32> to vector<1x8x64xf32>
    tpu.vector_store %arg9[%c0_26, %c0_27, %c0_28], %50 {strides = array<i32>} : memref<2x8x64xf32, #tpu.memory_space<vmem>>, vector<1x8x64xf32>,
    %c0_29 = arith.constant 0 : index
    %c0_30 = arith.constant 0 : index
    %c0_31 = arith.constant 0 : index
    %51 = vector.load %arg7[%c0_29, %c0_30, %c0_31] : memref<2x8x1xf32, #tpu.memory_space<vmem>>, vector<1x8x1xf32>
    %52 = vector.shape_cast %51 : vector<1x8x1xf32> to vector<8x1xf32>
    %53 = vector.shape_cast %26 : vector<8x1xf32> to vector<1x8x1xf32>
    tpu.vector_store %arg7[%c0_29, %c0_30, %c0_31], %53 {strides = array<i32>} : memref<2x8x1xf32, #tpu.memory_space<vmem>>, vector<1x8x1xf32>,
    %c0_32 = arith.constant 0 : index
    %c0_33 = arith.constant 0 : index
    %c64 = arith.constant 64 : index
    %54 = vector.load %arg3[%c0_32, %c0_33, %c64] : memref<1x8x128xbf16, #tpu.memory_space<vmem>>, vector<1x8x64xbf16>
    %55 = vector.shape_cast %54 : vector<1x8x64xbf16> to vector<8x64xbf16>
    %c0_34 = arith.constant 0 : index
    %c0_35 = arith.constant 0 : index
    %c64_36 = arith.constant 64 : index
    %56 = vector.load %arg4[%c0_34, %c0_35, %c64_36] : memref<1x8x128xbf16, #tpu.memory_space<vmem>>, vector<1x8x64xbf16>
    %57 = vector.shape_cast %56 : vector<1x8x64xbf16> to vector<8x64xbf16>
    %c0_37 = arith.constant 0 : index
    %c0_38 = arith.constant 0 : index
    %c64_39 = arith.constant 64 : index
    %58 = vector.load %arg5[%c0_37, %c0_38, %c64_39] : memref<1x8x128xbf16, #tpu.memory_space<vmem>>, vector<1x8x64xbf16>
    %59 = vector.shape_cast %58 : vector<1x8x64xbf16> to vector<8x64xbf16>
    %cst_40 = arith.constant dense<0.000000e+00> : vector<8x8xf32>
    %60 = tpu.matmul %55, %57, %cst_40 {dimension_numbers = #tpu.dot_dimension_numbers<[1], [1], [0], [0], [0, 0, 1, 0], [], []>} : vector<8x64xbf16>, vector<8x64xbf16>, vector<8x8xf32> -> vector<8x8xf32>
    %cst_41 = arith.constant 1.250000e-01 : f32
    %61 = vector.broadcast %cst_41 : f32 to vector<8x8xf32>
    %62 = arith.mulf %60, %61 : vector<8x8xf32>
    %cst_42 = arith.constant -1.000000e+30 : f32
    %63 = vector.shape_cast %8 : vector<1x8xi1> to vector<1x8xi1>
    %64 = vector.broadcast %63 : vector<1x8xi1> to vector<8x8xi1>
    %65 = vector.broadcast %cst_42 : f32 to vector<8x8xf32>
    %66 = arith.select %64, %62, %65 : vector<8x8xi1>, vector<8x8xf32>
    %c1 = arith.constant 1 : index
    %c0_43 = arith.constant 0 : index
    %c0_44 = arith.constant 0 : index
    %67 = vector.load %arg7[%c1, %c0_43, %c0_44] : memref<2x8x1xf32, #tpu.memory_space<vmem>>, vector<1x8x1xf32>
    %68 = vector.shape_cast %67 : vector<1x8x1xf32> to vector<8x1xf32>
    %cst_45 = arith.constant dense<0xFF800000> : vector<8xf32>
    %69 = vector.multi_reduction <maximumf>, %66, %cst_45 [1] : vector<8x8xf32> to vector<8xf32>
    %70 = vector.shape_cast %69 : vector<8xf32> to vector<8x1xf32>
    %71 = arith.maximumf %68, %70 : vector<8x1xf32>
    %72 = arith.subf %68, %71 : vector<8x1xf32>
    %73 = math.exp %72 : vector<8x1xf32>
    %74 = vector.broadcast %71 : vector<8x1xf32> to vector<8x8xf32>
    %75 = arith.subf %66, %74 : vector<8x8xf32>
    %76 = math.exp %75 : vector<8x8xf32>
    %c1_46 = arith.constant 1 : index
    %c0_47 = arith.constant 0 : index
    %c0_48 = arith.constant 0 : index
    %77 = vector.load %arg8[%c1_46, %c0_47, %c0_48] : memref<2x8x1xf32, #tpu.memory_space<vmem>>, vector<1x8x1xf32>
    %78 = vector.shape_cast %77 : vector<1x8x1xf32> to vector<8x1xf32>
    %79 = arith.mulf %73, %78 : vector<8x1xf32>
    %cst_49 = arith.constant dense<0.000000e+00> : vector<8xf32>
    %80 = vector.multi_reduction <add>, %76, %cst_49 [1] : vector<8x8xf32> to vector<8xf32>
    %81 = vector.shape_cast %80 : vector<8xf32> to vector<8x1xf32>
    %82 = arith.addf %79, %81 : vector<8x1xf32>
    %c1_50 = arith.constant 1 : index
    %c0_51 = arith.constant 0 : index
    %c0_52 = arith.constant 0 : index
    %83 = vector.load %arg8[%c1_50, %c0_51, %c0_52] : memref<2x8x1xf32, #tpu.memory_space<vmem>>, vector<1x8x1xf32>
    %84 = vector.shape_cast %83 : vector<1x8x1xf32> to vector<8x1xf32>
    %85 = vector.shape_cast %82 : vector<8x1xf32> to vector<1x8x1xf32>
    tpu.vector_store %arg8[%c1_50, %c0_51, %c0_52], %85 {strides = array<i32>} : memref<2x8x1xf32, #tpu.memory_space<vmem>>, vector<1x8x1xf32>,
    %c1_53 = arith.constant 1 : index
    %c0_54 = arith.constant 0 : index
    %c0_55 = arith.constant 0 : index
    %86 = vector.load %arg9[%c1_53, %c0_54, %c0_55] : memref<2x8x64xf32, #tpu.memory_space<vmem>>, vector<1x8x64xf32>
    %87 = vector.shape_cast %86 : vector<1x8x64xf32> to vector<8x64xf32>
    %88 = vector.broadcast %73 : vector<8x1xf32> to vector<8x64xf32>
    %89 = arith.mulf %88, %87 : vector<8x64xf32>
    %90 = arith.truncf %76 : vector<8x8xf32> to vector<8x8xbf16>
    %cst_56 = arith.constant dense<0.000000e+00> : vector<8x64xf32>
    %91 = tpu.matmul %90, %59, %cst_56 {dimension_numbers = #tpu.dot_dimension_numbers<[1], [0], [0], [1], [0, 0, 1, 1], [], []>} : vector<8x8xbf16>, vector<8x64xbf16>, vector<8x64xf32> -> vector<8x64xf32>
    %92 = arith.addf %89, %91 : vector<8x64xf32>
    %c1_57 = arith.constant 1 : index
    %c0_58 = arith.constant 0 : index
    %c0_59 = arith.constant 0 : index
    %93 = vector.load %arg9[%c1_57, %c0_58, %c0_59] : memref<2x8x64xf32, #tpu.memory_space<vmem>>, vector<1x8x64xf32>
    %94 = vector.shape_cast %93 : vector<1x8x64xf32> to vector<8x64xf32>
    %95 = vector.shape_cast %92 : vector<8x64xf32> to vector<1x8x64xf32>
    tpu.vector_store %arg9[%c1_57, %c0_58, %c0_59], %95 {strides = array<i32>} : memref<2x8x64xf32, #tpu.memory_space<vmem>>, vector<1x8x64xf32>,
    %c1_60 = arith.constant 1 : index
    %c0_61 = arith.constant 0 : index
    %c0_62 = arith.constant 0 : index
    %96 = vector.load %arg7[%c1_60, %c0_61, %c0_62] : memref<2x8x1xf32, #tpu.memory_space<vmem>>, vector<1x8x1xf32>
    %97 = vector.shape_cast %96 : vector<1x8x1xf32> to vector<8x1xf32>
    %98 = vector.shape_cast %71 : vector<8x1xf32> to vector<1x8x1xf32>
    tpu.vector_store %arg7[%c1_60, %c0_61, %c0_62], %98 {strides = array<i32>} : memref<2x8x1xf32, #tpu.memory_space<vmem>>, vector<1x8x1xf32>,
    %c0_i32_63 = arith.constant 0 : i32
    %99 = arith.cmpi eq, %arg2, %c0_i32_63 : i32
    %100 = arith.extui %99 : i1 to i32
    %c0_i32_64 = arith.constant 0 : i32
    %101 = arith.cmpi ne, %100, %c0_i32_64 : i32
    scf.if %101 {
      %c0_65 = arith.constant 0 : index
      %c0_66 = arith.constant 0 : index
      %c0_67 = arith.constant 0 : index
      %102 = vector.load %arg8[%c0_65, %c0_66, %c0_67] : memref<2x8x1xf32, #tpu.memory_space<vmem>>, vector<1x8x1xf32>
      %103 = vector.shape_cast %102 : vector<1x8x1xf32> to vector<8x1xf32>
      %104 = tpu.reciprocal %103 {approx = true} : vector<8x1xf32> -> vector<8x1xf32>
      %c0_68 = arith.constant 0 : index
      %c0_69 = arith.constant 0 : index
      %c0_70 = arith.constant 0 : index
      %105 = vector.load %arg9[%c0_68, %c0_69, %c0_70] : memref<2x8x64xf32, #tpu.memory_space<vmem>>, vector<1x8x64xf32>
      %106 = vector.shape_cast %105 : vector<1x8x64xf32> to vector<8x64xf32>
      %107 = vector.broadcast %104 : vector<8x1xf32> to vector<8x64xf32>
      %108 = arith.mulf %106, %107 : vector<8x64xf32>
      %109 = arith.truncf %108 : vector<8x64xf32> to vector<8x64xbf16>
      %c0_71 = arith.constant 0 : index
      %c0_72 = arith.constant 0 : index
      %c0_73 = arith.constant 0 : index
      %110 = vector.load %arg6[%c0_71, %c0_72, %c0_73] : memref<1x8x128xbf16, #tpu.memory_space<vmem>>, vector<1x8x64xbf16>
      %111 = vector.shape_cast %110 : vector<1x8x64xbf16> to vector<8x64xbf16>
      %112 = vector.shape_cast %109 : vector<8x64xbf16> to vector<1x8x64xbf16>
      tpu.vector_store %arg6[%c0_71, %c0_72, %c0_73], %112 {strides = array<i32>} : memref<1x8x128xbf16, #tpu.memory_space<vmem>>, vector<1x8x64xbf16>,
      %c1_74 = arith.constant 1 : index
      %c0_75 = arith.constant 0 : index
      %c0_76 = arith.constant 0 : index
      %113 = vector.load %arg8[%c1_74, %c0_75, %c0_76] : memref<2x8x1xf32, #tpu.memory_space<vmem>>, vector<1x8x1xf32>
      %114 = vector.shape_cast %113 : vector<1x8x1xf32> to vector<8x1xf32>
      %115 = tpu.reciprocal %114 {approx = true} : vector<8x1xf32> -> vector<8x1xf32>
      %c1_77 = arith.constant 1 : index
      %c0_78 = arith.constant 0 : index
      %c0_79 = arith.constant 0 : index
      %116 = vector.load %arg9[%c1_77, %c0_78, %c0_79] : memref<2x8x64xf32, #tpu.memory_space<vmem>>, vector<1x8x64xf32>
      %117 = vector.shape_cast %116 : vector<1x8x64xf32> to vector<8x64xf32>
      %118 = vector.broadcast %115 : vector<8x1xf32> to vector<8x64xf32>
      %119 = arith.mulf %117, %118 : vector<8x64xf32>
      %120 = arith.truncf %119 : vector<8x64xf32> to vector<8x64xbf16>
      %c0_80 = arith.constant 0 : index
      %c0_81 = arith.constant 0 : index
      %c64_82 = arith.constant 64 : index
      %121 = vector.load %arg6[%c0_80, %c0_81, %c64_82] : memref<1x8x128xbf16, #tpu.memory_space<vmem>>, vector<1x8x64xbf16>
      %122 = vector.shape_cast %121 : vector<1x8x64xbf16> to vector<8x64xbf16>
      %123 = vector.shape_cast %120 : vector<8x64xbf16> to vector<1x8x64xbf16>
      tpu.vector_store %arg6[%c0_80, %c0_81, %c64_82], %123 {strides = array<i32>} : memref<1x8x128xbf16, #tpu.memory_space<vmem>>, vector<1x8x64xbf16>,
    } else {
    }
    return
  }
  func.func @transform_0(%arg0: i32, %arg1: i32, %arg2: i32) -> (i32, i32, i32) {
    %c0_i32 = arith.constant 0 : i32
    %c0_i32_0 = arith.constant 0 : i32
    return %arg0, %arg1, %c0_i32 : i32, i32, i32
  }
  func.func @transform_1(%arg0: i32, %arg1: i32, %arg2: i32) -> (i32, i32, i32) {
    %c1_i32 = arith.constant 1 : i32
    %c0_i32 = arith.constant 0 : i32
    return %arg0, %arg2, %c1_i32 : i32, i32, i32
  }
  func.func @transform_2(%arg0: i32, %arg1: i32, %arg2: i32) -> (i32, i32, i32) {
    %c2_i32 = arith.constant 2 : i32
    %c0_i32 = arith.constant 0 : i32
    return %arg0, %arg2, %c2_i32 : i32, i32, i32
  }
  func.func @transform_3(%arg0: i32, %arg1: i32, %arg2: i32) -> (i32, i32, i32) {
    %c0_i32 = arith.constant 0 : i32
    %c0_i32_0 = arith.constant 0 : i32
    return %arg0, %arg1, %c0_i32 : i32, i32, i32
  }
}

module attributes {stable_mosaic.version = 11 : i64} {
  func.func @_linear_ln_kernel(%arg0: i32, %arg1: i32, %arg2: memref<16x128xbf16, #tpu.memory_space<vmem>>, %arg3: memref<128x384xbf16, #tpu.memory_space<vmem>>, %arg4: memref<1x384xf32, #tpu.memory_space<vmem>>, %arg5: memref<1x128xf32, #tpu.memory_space<vmem>>, %arg6: memref<1x128xf32, #tpu.memory_space<vmem>>, %arg7: memref<16x384xbf16, #tpu.memory_space<vmem>>, %arg8: memref<16x128xbf16, #tpu.memory_space<vmem>>) attributes {dimension_semantics = [#tpu.dimension_semantics<parallel>, #tpu.dimension_semantics<arbitrary>], iteration_bounds = array<i64: 1, 1>, scalar_prefetch = 0 : i64, scratch_operands = 1 : i64, tpu.core_type = #tpu.core_type<tc>, window_params = [{transform_indices = @transform_0, window_bounds = array<i64: 16, 128>}, {transform_indices = @transform_1, window_bounds = array<i64: 128, 384>}, {transform_indices = @transform_2, window_bounds = array<i64: 1, 384>}, {pipeline_mode = #tpu.pipeline_mode<synchronous>, transform_indices = @transform_3, window_bounds = array<i64: 1, 128>}, {pipeline_mode = #tpu.pipeline_mode<synchronous>, transform_indices = @transform_4, window_bounds = array<i64: 1, 128>}, {transform_indices = @transform_5, window_bounds = array<i64: 16, 384>}]} {
    %c0_i32 = arith.constant 0 : i32
    %0 = arith.cmpi eq, %arg1, %c0_i32 : i32
    %1 = arith.extui %0 : i1 to i32
    %c0_i32_0 = arith.constant 0 : i32
    %2 = arith.cmpi ne, %1, %c0_i32_0 : i32
    scf.if %2 {
      %c0_8 = arith.constant 0 : index
      %c0_9 = arith.constant 0 : index
      %11 = vector.load %arg2[%c0_8, %c0_9] : memref<16x128xbf16, #tpu.memory_space<vmem>>, vector<16x128xbf16>
      %12 = arith.extf %11 : vector<16x128xbf16> to vector<16x128xf32>
      %cst_10 = arith.constant dense<0.000000e+00> : vector<16xf32>
      %13 = vector.multi_reduction <add>, %12, %cst_10 [1] : vector<16x128xf32> to vector<16xf32>
      %14 = vector.shape_cast %13 : vector<16xf32> to vector<16x1xf32>
      %cst_11 = arith.constant 1.280000e+02 : f32
      %15 = vector.broadcast %cst_11 : f32 to vector<16x1xf32>
      %16 = arith.divf %14, %15 : vector<16x1xf32>
      %17 = vector.broadcast %16 : vector<16x1xf32> to vector<16x128xf32>
      %18 = arith.subf %12, %17 : vector<16x128xf32>
      %19 = arith.mulf %18, %18 : vector<16x128xf32>
      %cst_12 = arith.constant dense<0.000000e+00> : vector<16xf32>
      %20 = vector.multi_reduction <add>, %19, %cst_12 [1] : vector<16x128xf32> to vector<16xf32>
      %21 = vector.shape_cast %20 : vector<16xf32> to vector<16x1xf32>
      %cst_13 = arith.constant 1.280000e+02 : f32
      %22 = vector.broadcast %cst_13 : f32 to vector<16x1xf32>
      %23 = arith.divf %21, %22 : vector<16x1xf32>
      %24 = vector.broadcast %16 : vector<16x1xf32> to vector<16x128xf32>
      %25 = arith.subf %12, %24 : vector<16x128xf32>
      %cst_14 = arith.constant 9.99999997E-7 : f32
      %26 = vector.broadcast %cst_14 : f32 to vector<16x1xf32>
      %27 = arith.addf %23, %26 : vector<16x1xf32>
      %28 = math.rsqrt %27 : vector<16x1xf32>
      %29 = vector.broadcast %28 : vector<16x1xf32> to vector<16x128xf32>
      %30 = arith.mulf %25, %29 : vector<16x128xf32>
      %c0_15 = arith.constant 0 : index
      %c0_16 = arith.constant 0 : index
      %31 = vector.load %arg5[%c0_15, %c0_16] : memref<1x128xf32, #tpu.memory_space<vmem>>, vector<1x128xf32>
      %32 = vector.broadcast %31 : vector<1x128xf32> to vector<16x128xf32>
      %33 = arith.mulf %30, %32 : vector<16x128xf32>
      %c0_17 = arith.constant 0 : index
      %c0_18 = arith.constant 0 : index
      %34 = vector.load %arg6[%c0_17, %c0_18] : memref<1x128xf32, #tpu.memory_space<vmem>>, vector<1x128xf32>
      %35 = vector.broadcast %34 : vector<1x128xf32> to vector<16x128xf32>
      %36 = arith.addf %33, %35 : vector<16x128xf32>
      %37 = arith.truncf %36 : vector<16x128xf32> to vector<16x128xbf16>
      %c0_19 = arith.constant 0 : index
      %c0_20 = arith.constant 0 : index
      %38 = vector.load %arg8[%c0_19, %c0_20] : memref<16x128xbf16, #tpu.memory_space<vmem>>, vector<16x128xbf16>
      tpu.vector_store %arg8[%c0_19, %c0_20], %37 {strides = array<i32>} : memref<16x128xbf16, #tpu.memory_space<vmem>>, vector<16x128xbf16>,
    } else {
    }
    %c0 = arith.constant 0 : index
    %c0_1 = arith.constant 0 : index
    %3 = vector.load %arg8[%c0, %c0_1] : memref<16x128xbf16, #tpu.memory_space<vmem>>, vector<16x128xbf16>
    %c0_2 = arith.constant 0 : index
    %c0_3 = arith.constant 0 : index
    %4 = vector.load %arg3[%c0_2, %c0_3] : memref<128x384xbf16, #tpu.memory_space<vmem>>, vector<128x384xbf16>
    %cst = arith.constant dense<0.000000e+00> : vector<16x384xf32>
    %5 = tpu.matmul %3, %4, %cst {dimension_numbers = #tpu.dot_dimension_numbers<[1], [0], [0], [1], [0, 0, 1, 1], [], []>} : vector<16x128xbf16>, vector<128x384xbf16>, vector<16x384xf32> -> vector<16x384xf32>
    %c0_4 = arith.constant 0 : index
    %c0_5 = arith.constant 0 : index
    %6 = vector.load %arg4[%c0_4, %c0_5] : memref<1x384xf32, #tpu.memory_space<vmem>>, vector<1x384xf32>
    %7 = vector.broadcast %6 : vector<1x384xf32> to vector<16x384xf32>
    %8 = arith.addf %5, %7 : vector<16x384xf32>
    %9 = arith.truncf %8 : vector<16x384xf32> to vector<16x384xbf16>
    %c0_6 = arith.constant 0 : index
    %c0_7 = arith.constant 0 : index
    %10 = vector.load %arg7[%c0_6, %c0_7] : memref<16x384xbf16, #tpu.memory_space<vmem>>, vector<16x384xbf16>
    tpu.vector_store %arg7[%c0_6, %c0_7], %9 {strides = array<i32>} : memref<16x384xbf16, #tpu.memory_space<vmem>>, vector<16x384xbf16>,
    return
  }
  func.func @transform_0(%arg0: i32, %arg1: i32) -> (i32, i32) {
    %c0_i32 = arith.constant 0 : i32
    %c0_i32_0 = arith.constant 0 : i32
    return %arg0, %c0_i32 : i32, i32
  }
  func.func @transform_1(%arg0: i32, %arg1: i32) -> (i32, i32) {
    %c0_i32 = arith.constant 0 : i32
    %c0_i32_0 = arith.constant 0 : i32
    return %c0_i32, %arg1 : i32, i32
  }
  func.func @transform_2(%arg0: i32, %arg1: i32) -> (i32, i32) {
    %c0_i32 = arith.constant 0 : i32
    %c0_i32_0 = arith.constant 0 : i32
    return %c0_i32, %arg1 : i32, i32
  }
  func.func @transform_3(%arg0: i32, %arg1: i32) -> (i32, i32) {
    %c0_i32 = arith.constant 0 : i32
    %c0_i32_0 = arith.constant 0 : i32
    %c0_i32_1 = arith.constant 0 : i32
    return %c0_i32, %c0_i32_0 : i32, i32
  }
  func.func @transform_4(%arg0: i32, %arg1: i32) -> (i32, i32) {
    %c0_i32 = arith.constant 0 : i32
    %c0_i32_0 = arith.constant 0 : i32
    %c0_i32_1 = arith.constant 0 : i32
    return %c0_i32, %c0_i32_0 : i32, i32
  }
  func.func @transform_5(%arg0: i32, %arg1: i32) -> (i32, i32) {
    %c0_i32 = arith.constant 0 : i32
    return %arg0, %arg1 : i32, i32
  }
}

module attributes {stable_mosaic.version = 11 : i64} {
  func.func @_matmul_kernel(%arg0: i32, %arg1: i32, %arg2: memref<16x128xbf16, #tpu.memory_space<vmem>>, %arg3: memref<128x128xbf16, #tpu.memory_space<vmem>>, %arg4: memref<1x128xf32, #tpu.memory_space<vmem>>, %arg5: memref<16x128xbf16, #tpu.memory_space<vmem>>, %arg6: memref<16x128xbf16, #tpu.memory_space<vmem>>) attributes {dimension_semantics = [#tpu.dimension_semantics<parallel>, #tpu.dimension_semantics<parallel>], iteration_bounds = array<i64: 1, 1>, scalar_prefetch = 0 : i64, scratch_operands = 0 : i64, tpu.core_type = #tpu.core_type<tc>, window_params = [{transform_indices = @transform_0, window_bounds = array<i64: 16, 128>}, {transform_indices = @transform_1, window_bounds = array<i64: 128, 128>}, {transform_indices = @transform_2, window_bounds = array<i64: 1, 128>}, {transform_indices = @transform_3, window_bounds = array<i64: 16, 128>}, {transform_indices = @transform_4, window_bounds = array<i64: 16, 128>}]} {
    %c0 = arith.constant 0 : index
    %c0_0 = arith.constant 0 : index
    %0 = vector.load %arg2[%c0, %c0_0] : memref<16x128xbf16, #tpu.memory_space<vmem>>, vector<16x128xbf16>
    %c0_1 = arith.constant 0 : index
    %c0_2 = arith.constant 0 : index
    %1 = vector.load %arg3[%c0_1, %c0_2] : memref<128x128xbf16, #tpu.memory_space<vmem>>, vector<128x128xbf16>
    %cst = arith.constant dense<0.000000e+00> : vector<16x128xf32>
    %2 = tpu.matmul %0, %1, %cst {dimension_numbers = #tpu.dot_dimension_numbers<[1], [0], [0], [1], [0, 0, 1, 1], [], []>} : vector<16x128xbf16>, vector<128x128xbf16>, vector<16x128xf32> -> vector<16x128xf32>
    %c0_3 = arith.constant 0 : index
    %c0_4 = arith.constant 0 : index
    %3 = vector.load %arg4[%c0_3, %c0_4] : memref<1x128xf32, #tpu.memory_space<vmem>>, vector<1x128xf32>
    %4 = vector.broadcast %3 : vector<1x128xf32> to vector<16x128xf32>
    %5 = arith.addf %2, %4 : vector<16x128xf32>
    %c0_5 = arith.constant 0 : index
    %c0_6 = arith.constant 0 : index
    %6 = vector.load %arg5[%c0_5, %c0_6] : memref<16x128xbf16, #tpu.memory_space<vmem>>, vector<16x128xbf16>
    %7 = arith.extf %6 : vector<16x128xbf16> to vector<16x128xf32>
    %8 = arith.addf %5, %7 : vector<16x128xf32>
    %9 = arith.truncf %8 : vector<16x128xf32> to vector<16x128xbf16>
    %c0_7 = arith.constant 0 : index
    %c0_8 = arith.constant 0 : index
    %10 = vector.load %arg6[%c0_7, %c0_8] : memref<16x128xbf16, #tpu.memory_space<vmem>>, vector<16x128xbf16>
    tpu.vector_store %arg6[%c0_7, %c0_8], %9 {strides = array<i32>} : memref<16x128xbf16, #tpu.memory_space<vmem>>, vector<16x128xbf16>,
    return
  }
  func.func @transform_0(%arg0: i32, %arg1: i32) -> (i32, i32) {
    %c0_i32 = arith.constant 0 : i32
    %c0_i32_0 = arith.constant 0 : i32
    return %arg0, %c0_i32 : i32, i32
  }
  func.func @transform_1(%arg0: i32, %arg1: i32) -> (i32, i32) {
    %c0_i32 = arith.constant 0 : i32
    %c0_i32_0 = arith.constant 0 : i32
    return %c0_i32, %arg1 : i32, i32
  }
  func.func @transform_2(%arg0: i32, %arg1: i32) -> (i32, i32) {
    %c0_i32 = arith.constant 0 : i32
    %c0_i32_0 = arith.constant 0 : i32
    return %c0_i32, %arg1 : i32, i32
  }
  func.func @transform_3(%arg0: i32, %arg1: i32) -> (i32, i32) {
    %c0_i32 = arith.constant 0 : i32
    return %arg0, %arg1 : i32, i32
  }
  func.func @transform_4(%arg0: i32, %arg1: i32) -> (i32, i32) {
    %c0_i32 = arith.constant 0 : i32
    return %arg0, %arg1 : i32, i32
  }
}

module attributes {stable_mosaic.version = 11 : i64} {
  func.func @_matmul_kernel(%arg0: i32, %arg1: i32, %arg2: memref<16x512xbf16, #tpu.memory_space<vmem>>, %arg3: memref<512x128xbf16, #tpu.memory_space<vmem>>, %arg4: memref<1x128xf32, #tpu.memory_space<vmem>>, %arg5: memref<16x128xbf16, #tpu.memory_space<vmem>>, %arg6: memref<16x128xbf16, #tpu.memory_space<vmem>>) attributes {dimension_semantics = [#tpu.dimension_semantics<parallel>, #tpu.dimension_semantics<parallel>], iteration_bounds = array<i64: 1, 1>, scalar_prefetch = 0 : i64, scratch_operands = 0 : i64, tpu.core_type = #tpu.core_type<tc>, window_params = [{transform_indices = @transform_0, window_bounds = array<i64: 16, 512>}, {transform_indices = @transform_1, window_bounds = array<i64: 512, 128>}, {transform_indices = @transform_2, window_bounds = array<i64: 1, 128>}, {transform_indices = @transform_3, window_bounds = array<i64: 16, 128>}, {transform_indices = @transform_4, window_bounds = array<i64: 16, 128>}]} {
    %c0 = arith.constant 0 : index
    %c0_0 = arith.constant 0 : index
    %0 = vector.load %arg2[%c0, %c0_0] : memref<16x512xbf16, #tpu.memory_space<vmem>>, vector<16x512xbf16>
    %c0_1 = arith.constant 0 : index
    %c0_2 = arith.constant 0 : index
    %1 = vector.load %arg3[%c0_1, %c0_2] : memref<512x128xbf16, #tpu.memory_space<vmem>>, vector<512x128xbf16>
    %cst = arith.constant dense<0.000000e+00> : vector<16x128xf32>
    %2 = tpu.matmul %0, %1, %cst {dimension_numbers = #tpu.dot_dimension_numbers<[1], [0], [0], [1], [0, 0, 1, 1], [], []>} : vector<16x512xbf16>, vector<512x128xbf16>, vector<16x128xf32> -> vector<16x128xf32>
    %c0_3 = arith.constant 0 : index
    %c0_4 = arith.constant 0 : index
    %3 = vector.load %arg4[%c0_3, %c0_4] : memref<1x128xf32, #tpu.memory_space<vmem>>, vector<1x128xf32>
    %4 = vector.broadcast %3 : vector<1x128xf32> to vector<16x128xf32>
    %5 = arith.addf %2, %4 : vector<16x128xf32>
    %c0_5 = arith.constant 0 : index
    %c0_6 = arith.constant 0 : index
    %6 = vector.load %arg5[%c0_5, %c0_6] : memref<16x128xbf16, #tpu.memory_space<vmem>>, vector<16x128xbf16>
    %7 = arith.extf %6 : vector<16x128xbf16> to vector<16x128xf32>
    %8 = arith.addf %5, %7 : vector<16x128xf32>
    %9 = arith.truncf %8 : vector<16x128xf32> to vector<16x128xbf16>
    %c0_7 = arith.constant 0 : index
    %c0_8 = arith.constant 0 : index
    %10 = vector.load %arg6[%c0_7, %c0_8] : memref<16x128xbf16, #tpu.memory_space<vmem>>, vector<16x128xbf16>
    tpu.vector_store %arg6[%c0_7, %c0_8], %9 {strides = array<i32>} : memref<16x128xbf16, #tpu.memory_space<vmem>>, vector<16x128xbf16>,
    return
  }
  func.func @transform_0(%arg0: i32, %arg1: i32) -> (i32, i32) {
    %c0_i32 = arith.constant 0 : i32
    %c0_i32_0 = arith.constant 0 : i32
    return %arg0, %c0_i32 : i32, i32
  }
  func.func @transform_1(%arg0: i32, %arg1: i32) -> (i32, i32) {
    %c0_i32 = arith.constant 0 : i32
    %c0_i32_0 = arith.constant 0 : i32
    return %c0_i32, %arg1 : i32, i32
  }
  func.func @transform_2(%arg0: i32, %arg1: i32) -> (i32, i32) {
    %c0_i32 = arith.constant 0 : i32
    %c0_i32_0 = arith.constant 0 : i32
    return %c0_i32, %arg1 : i32, i32
  }
  func.func @transform_3(%arg0: i32, %arg1: i32) -> (i32, i32) {
    %c0_i32 = arith.constant 0 : i32
    return %arg0, %arg1 : i32, i32
  }
  func.func @transform_4(%arg0: i32, %arg1: i32) -> (i32, i32) {
    %c0_i32 = arith.constant 0 : i32
    return %arg0, %arg1 : i32, i32
  }
}

module attributes {stable_mosaic.version = 11 : i64} {
  func.func @_layernorm_kernel(%arg0: i32, %arg1: memref<16x128xbf16, #tpu.memory_space<vmem>>, %arg2: memref<1x128xf32, #tpu.memory_space<vmem>>, %arg3: memref<1x128xf32, #tpu.memory_space<vmem>>, %arg4: memref<16x128xf32, #tpu.memory_space<vmem>>) attributes {dimension_semantics = [#tpu.dimension_semantics<parallel>], iteration_bounds = array<i64: 1>, scalar_prefetch = 0 : i64, scratch_operands = 0 : i64, tpu.core_type = #tpu.core_type<tc>, window_params = [{transform_indices = @transform_0, window_bounds = array<i64: 16, 128>}, {pipeline_mode = #tpu.pipeline_mode<synchronous>, transform_indices = @transform_1, window_bounds = array<i64: 1, 128>}, {pipeline_mode = #tpu.pipeline_mode<synchronous>, transform_indices = @transform_2, window_bounds = array<i64: 1, 128>}, {transform_indices = @transform_3, window_bounds = array<i64: 16, 128>}]} {
    %c0 = arith.constant 0 : index
    %c0_0 = arith.constant 0 : index
    %0 = vector.load %arg1[%c0, %c0_0] : memref<16x128xbf16, #tpu.memory_space<vmem>>, vector<16x128xbf16>
    %1 = arith.extf %0 : vector<16x128xbf16> to vector<16x128xf32>
    %cst = arith.constant dense<0.000000e+00> : vector<16xf32>
    %2 = vector.multi_reduction <add>, %1, %cst [1] : vector<16x128xf32> to vector<16xf32>
    %3 = vector.shape_cast %2 : vector<16xf32> to vector<16x1xf32>
    %cst_1 = arith.constant 1.280000e+02 : f32
    %4 = vector.broadcast %cst_1 : f32 to vector<16x1xf32>
    %5 = arith.divf %3, %4 : vector<16x1xf32>
    %6 = vector.broadcast %5 : vector<16x1xf32> to vector<16x128xf32>
    %7 = arith.subf %1, %6 : vector<16x128xf32>
    %8 = arith.mulf %7, %7 : vector<16x128xf32>
    %cst_2 = arith.constant dense<0.000000e+00> : vector<16xf32>
    %9 = vector.multi_reduction <add>, %8, %cst_2 [1] : vector<16x128xf32> to vector<16xf32>
    %10 = vector.shape_cast %9 : vector<16xf32> to vector<16x1xf32>
    %cst_3 = arith.constant 1.280000e+02 : f32
    %11 = vector.broadcast %cst_3 : f32 to vector<16x1xf32>
    %12 = arith.divf %10, %11 : vector<16x1xf32>
    %13 = vector.broadcast %5 : vector<16x1xf32> to vector<16x128xf32>
    %14 = arith.subf %1, %13 : vector<16x128xf32>
    %cst_4 = arith.constant 9.99999997E-7 : f32
    %15 = vector.broadcast %cst_4 : f32 to vector<16x1xf32>
    %16 = arith.addf %12, %15 : vector<16x1xf32>
    %17 = math.rsqrt %16 : vector<16x1xf32>
    %18 = vector.broadcast %17 : vector<16x1xf32> to vector<16x128xf32>
    %19 = arith.mulf %14, %18 : vector<16x128xf32>
    %c0_5 = arith.constant 0 : index
    %c0_6 = arith.constant 0 : index
    %20 = vector.load %arg2[%c0_5, %c0_6] : memref<1x128xf32, #tpu.memory_space<vmem>>, vector<1x128xf32>
    %21 = vector.broadcast %20 : vector<1x128xf32> to vector<16x128xf32>
    %22 = arith.mulf %19, %21 : vector<16x128xf32>
    %c0_7 = arith.constant 0 : index
    %c0_8 = arith.constant 0 : index
    %23 = vector.load %arg3[%c0_7, %c0_8] : memref<1x128xf32, #tpu.memory_space<vmem>>, vector<1x128xf32>
    %24 = vector.broadcast %23 : vector<1x128xf32> to vector<16x128xf32>
    %25 = arith.addf %22, %24 : vector<16x128xf32>
    %c0_9 = arith.constant 0 : index
    %c0_10 = arith.constant 0 : index
    %26 = vector.load %arg4[%c0_9, %c0_10] : memref<16x128xf32, #tpu.memory_space<vmem>>, vector<16x128xf32>
    tpu.vector_store %arg4[%c0_9, %c0_10], %25 {strides = array<i32>} : memref<16x128xf32, #tpu.memory_space<vmem>>, vector<16x128xf32>,
    return
  }
  func.func @transform_0(%arg0: i32) -> (i32, i32) {
    %c0_i32 = arith.constant 0 : i32
    %c0_i32_0 = arith.constant 0 : i32
    return %arg0, %c0_i32 : i32, i32
  }
  func.func @transform_1(%arg0: i32) -> (i32, i32) {
    %c0_i32 = arith.constant 0 : i32
    %c0_i32_0 = arith.constant 0 : i32
    %c0_i32_1 = arith.constant 0 : i32
    return %c0_i32, %c0_i32_0 : i32, i32
  }
  func.func @transform_2(%arg0: i32) -> (i32, i32) {
    %c0_i32 = arith.constant 0 : i32
    %c0_i32_0 = arith.constant 0 : i32
    %c0_i32_1 = arith.constant 0 : i32
    return %c0_i32, %c0_i32_0 : i32, i32
  }
  func.func @transform_3(%arg0: i32) -> (i32, i32) {
    %c0_i32 = arith.constant 0 : i32
    %c0_i32_0 = arith.constant 0 : i32
    return %arg0, %c0_i32 : i32, i32
  }
}

module attributes {stable_mosaic.version = 11 : i64} {
  func.func @_linear_ln_kernel(%arg0: i32, %arg1: i32, %arg2: memref<16x128xbf16, #tpu.memory_space<vmem>>, %arg3: memref<128x512xbf16, #tpu.memory_space<vmem>>, %arg4: memref<1x512xf32, #tpu.memory_space<vmem>>, %arg5: memref<1x128xf32, #tpu.memory_space<vmem>>, %arg6: memref<1x128xf32, #tpu.memory_space<vmem>>, %arg7: memref<16x512xbf16, #tpu.memory_space<vmem>>, %arg8: memref<16x128xbf16, #tpu.memory_space<vmem>>) attributes {dimension_semantics = [#tpu.dimension_semantics<parallel>, #tpu.dimension_semantics<arbitrary>], iteration_bounds = array<i64: 1, 1>, scalar_prefetch = 0 : i64, scratch_operands = 1 : i64, tpu.core_type = #tpu.core_type<tc>, window_params = [{transform_indices = @transform_0, window_bounds = array<i64: 16, 128>}, {transform_indices = @transform_1, window_bounds = array<i64: 128, 512>}, {transform_indices = @transform_2, window_bounds = array<i64: 1, 512>}, {pipeline_mode = #tpu.pipeline_mode<synchronous>, transform_indices = @transform_3, window_bounds = array<i64: 1, 128>}, {pipeline_mode = #tpu.pipeline_mode<synchronous>, transform_indices = @transform_4, window_bounds = array<i64: 1, 128>}, {transform_indices = @transform_5, window_bounds = array<i64: 16, 512>}]} {
    %c0_i32 = arith.constant 0 : i32
    %0 = arith.cmpi eq, %arg1, %c0_i32 : i32
    %1 = arith.extui %0 : i1 to i32
    %c0_i32_0 = arith.constant 0 : i32
    %2 = arith.cmpi ne, %1, %c0_i32_0 : i32
    scf.if %2 {
      %c0_12 = arith.constant 0 : index
      %c0_13 = arith.constant 0 : index
      %24 = vector.load %arg2[%c0_12, %c0_13] : memref<16x128xbf16, #tpu.memory_space<vmem>>, vector<16x128xbf16>
      %25 = arith.extf %24 : vector<16x128xbf16> to vector<16x128xf32>
      %cst_14 = arith.constant dense<0.000000e+00> : vector<16xf32>
      %26 = vector.multi_reduction <add>, %25, %cst_14 [1] : vector<16x128xf32> to vector<16xf32>
      %27 = vector.shape_cast %26 : vector<16xf32> to vector<16x1xf32>
      %cst_15 = arith.constant 1.280000e+02 : f32
      %28 = vector.broadcast %cst_15 : f32 to vector<16x1xf32>
      %29 = arith.divf %27, %28 : vector<16x1xf32>
      %30 = vector.broadcast %29 : vector<16x1xf32> to vector<16x128xf32>
      %31 = arith.subf %25, %30 : vector<16x128xf32>
      %32 = arith.mulf %31, %31 : vector<16x128xf32>
      %cst_16 = arith.constant dense<0.000000e+00> : vector<16xf32>
      %33 = vector.multi_reduction <add>, %32, %cst_16 [1] : vector<16x128xf32> to vector<16xf32>
      %34 = vector.shape_cast %33 : vector<16xf32> to vector<16x1xf32>
      %cst_17 = arith.constant 1.280000e+02 : f32
      %35 = vector.broadcast %cst_17 : f32 to vector<16x1xf32>
      %36 = arith.divf %34, %35 : vector<16x1xf32>
      %37 = vector.broadcast %29 : vector<16x1xf32> to vector<16x128xf32>
      %38 = arith.subf %25, %37 : vector<16x128xf32>
      %cst_18 = arith.constant 9.99999997E-7 : f32
      %39 = vector.broadcast %cst_18 : f32 to vector<16x1xf32>
      %40 = arith.addf %36, %39 : vector<16x1xf32>
      %41 = math.rsqrt %40 : vector<16x1xf32>
      %42 = vector.broadcast %41 : vector<16x1xf32> to vector<16x128xf32>
      %43 = arith.mulf %38, %42 : vector<16x128xf32>
      %c0_19 = arith.constant 0 : index
      %c0_20 = arith.constant 0 : index
      %44 = vector.load %arg5[%c0_19, %c0_20] : memref<1x128xf32, #tpu.memory_space<vmem>>, vector<1x128xf32>
      %45 = vector.broadcast %44 : vector<1x128xf32> to vector<16x128xf32>
      %46 = arith.mulf %43, %45 : vector<16x128xf32>
      %c0_21 = arith.constant 0 : index
      %c0_22 = arith.constant 0 : index
      %47 = vector.load %arg6[%c0_21, %c0_22] : memref<1x128xf32, #tpu.memory_space<vmem>>, vector<1x128xf32>
      %48 = vector.broadcast %47 : vector<1x128xf32> to vector<16x128xf32>
      %49 = arith.addf %46, %48 : vector<16x128xf32>
      %50 = arith.truncf %49 : vector<16x128xf32> to vector<16x128xbf16>
      %c0_23 = arith.constant 0 : index
      %c0_24 = arith.constant 0 : index
      %51 = vector.load %arg8[%c0_23, %c0_24] : memref<16x128xbf16, #tpu.memory_space<vmem>>, vector<16x128xbf16>
      tpu.vector_store %arg8[%c0_23, %c0_24], %50 {strides = array<i32>} : memref<16x128xbf16, #tpu.memory_space<vmem>>, vector<16x128xbf16>,
    } else {
    }
    %c0 = arith.constant 0 : index
    %c0_1 = arith.constant 0 : index
    %3 = vector.load %arg8[%c0, %c0_1] : memref<16x128xbf16, #tpu.memory_space<vmem>>, vector<16x128xbf16>
    %c0_2 = arith.constant 0 : index
    %c0_3 = arith.constant 0 : index
    %4 = vector.load %arg3[%c0_2, %c0_3] : memref<128x512xbf16, #tpu.memory_space<vmem>>, vector<128x512xbf16>
    %cst = arith.constant dense<0.000000e+00> : vector<16x512xf32>
    %5 = tpu.matmul %3, %4, %cst {dimension_numbers = #tpu.dot_dimension_numbers<[1], [0], [0], [1], [0, 0, 1, 1], [], []>} : vector<16x128xbf16>, vector<128x512xbf16>, vector<16x512xf32> -> vector<16x512xf32>
    %c0_4 = arith.constant 0 : index
    %c0_5 = arith.constant 0 : index
    %6 = vector.load %arg4[%c0_4, %c0_5] : memref<1x512xf32, #tpu.memory_space<vmem>>, vector<1x512xf32>
    %7 = vector.broadcast %6 : vector<1x512xf32> to vector<16x512xf32>
    %8 = arith.addf %5, %7 : vector<16x512xf32>
    %cst_6 = arith.constant 5.000000e-01 : f32
    %9 = vector.broadcast %cst_6 : f32 to vector<16x512xf32>
    %10 = arith.mulf %9, %8 : vector<16x512xf32>
    %cst_7 = arith.constant 4.471500e-02 : f32
    %11 = vector.broadcast %cst_7 : f32 to vector<16x512xf32>
    %12 = arith.mulf %11, %8 : vector<16x512xf32>
    %13 = arith.mulf %12, %8 : vector<16x512xf32>
    %14 = arith.mulf %13, %8 : vector<16x512xf32>
    %15 = arith.addf %8, %14 : vector<16x512xf32>
    %cst_8 = arith.constant 0.797884583 : f32
    %16 = vector.broadcast %cst_8 : f32 to vector<16x512xf32>
    %17 = arith.mulf %16, %15 : vector<16x512xf32>
    %18 = math.tanh %17 : vector<16x512xf32>
    %cst_9 = arith.constant 1.000000e+00 : f32
    %19 = vector.broadcast %cst_9 : f32 to vector<16x512xf32>
    %20 = arith.addf %19, %18 : vector<16x512xf32>
    %21 = arith.mulf %10, %20 : vector<16x512xf32>
    %22 = arith.truncf %21 : vector<16x512xf32> to vector<16x512xbf16>
    %c0_10 = arith.constant 0 : index
    %c0_11 = arith.constant 0 : index
    %23 = vector.load %arg7[%c0_10, %c0_11] : memref<16x512xbf16, #tpu.memory_space<vmem>>, vector<16x512xbf16>
    tpu.vector_store %arg7[%c0_10, %c0_11], %22 {strides = array<i32>} : memref<16x512xbf16, #tpu.memory_space<vmem>>, vector<16x512xbf16>,
    return
  }
  func.func @transform_0(%arg0: i32, %arg1: i32) -> (i32, i32) {
    %c0_i32 = arith.constant 0 : i32
    %c0_i32_0 = arith.constant 0 : i32
    return %arg0, %c0_i32 : i32, i32
  }
  func.func @transform_1(%arg0: i32, %arg1: i32) -> (i32, i32) {
    %c0_i32 = arith.constant 0 : i32
    %c0_i32_0 = arith.constant 0 : i32
    return %c0_i32, %arg1 : i32, i32
  }
  func.func @transform_2(%arg0: i32, %arg1: i32) -> (i32, i32) {
    %c0_i32 = arith.constant 0 : i32
    %c0_i32_0 = arith.constant 0 : i32
    return %c0_i32, %arg1 : i32, i32
  }
  func.func @transform_3(%arg0: i32, %arg1: i32) -> (i32, i32) {
    %c0_i32 = arith.constant 0 : i32
    %c0_i32_0 = arith.constant 0 : i32
    %c0_i32_1 = arith.constant 0 : i32
    return %c0_i32, %c0_i32_0 : i32, i32
  }
  func.func @transform_4(%arg0: i32, %arg1: i32) -> (i32, i32) {
    %c0_i32 = arith.constant 0 : i32
    %c0_i32_0 = arith.constant 0 : i32
    %c0_i32_1 = arith.constant 0 : i32
    return %c0_i32, %c0_i32_0 : i32, i32
  }
  func.func @transform_5(%arg0: i32, %arg1: i32) -> (i32, i32) {
    %c0_i32 = arith.constant 0 : i32
    return %arg0, %arg1 : i32, i32
  }
}

</mosaic_0001>

<llo_original>
// kernel: get_intermediate_layers.21
$region0: #{get_intermediate_layers.21}
  #allocation0 [shape = 'u32[]', space=smem, size = 0x4, offset = 0x4, fixed_abs, tag = 'smem constant byte address 0x4 - core index']
  #allocation1 [shape = 'u32[144,128]{1,0:T(1,128)}', space=vmem, size = 0x12000, scoped, tag = 'internal scratch']
  %s0 = inlined_call_operand.vmem [shape: bf16[16,128], index: 0, kind: input, shape index: {}]
  %s1 = inlined_call_operand.vmem [shape: bf16[128,128], index: 1, kind: input, shape index: {}]
  %s2 = inlined_call_operand.vmem [shape: f32[1,128], index: 2, kind: input, shape index: {}]
  %s3 = inlined_call_operand.vmem [shape: bf16[16,128], index: 3, kind: input, shape index: {}]
  %s4 = inlined_call_operand.vmem [shape: bf16[16,128], index: 4, kind: output, shape index: {}]
  %s5 = sld [smem:[#allocation0]]
  $region26: #{get_intermediate_layers.21} parent=0
    _
  %s7 = ssub.s32 1, %s5
  %s8 = scalar_select 0, %s7, %s5
  // Predicated region
  $region2: #{get_intermediate_layers.21} parent=0 // pred_check
    _
  $region3: #{get_intermediate_layers.21} parent=0 // pred_check_branch
    %10 = sbr.rel (0) target = $region5
  $region4: #{get_intermediate_layers.21} parent=0 // pred_region
    _
  $region5: #{get_intermediate_layers.21} parent=0 // pred_fallthru
    _
  // Predicated region
  $region6: #{get_intermediate_layers.21} parent=0 // pred_check
    _
  $region7: #{get_intermediate_layers.21} parent=0 // pred_check_branch
    %12 = sbr.rel (0) target = $region9
  $region8: #{get_intermediate_layers.21} parent=0 // pred_region
    _
  $region9: #{get_intermediate_layers.21} parent=0 // pred_fallthru
    _
  // Predicated region
  $region10: #{get_intermediate_layers.21} parent=0 // pred_check
    _
  $region11: #{get_intermediate_layers.21} parent=0 // pred_check_branch
    %14 = sbr.rel (0) target = $region13
  $region12: #{get_intermediate_layers.21} parent=0 // pred_region
    _
  $region13: #{get_intermediate_layers.21} parent=0 // pred_fallthru
    _
  // Predicated region
  $region14: #{get_intermediate_layers.21} parent=0 // pred_check
    _
  $region15: #{get_intermediate_layers.21} parent=0 // pred_check_branch
    %16 = sbr.rel (0) target = $region17
  $region16: #{get_intermediate_layers.21} parent=0 // pred_region
    _
  $region17: #{get_intermediate_layers.21} parent=0 // pred_fallthru
    _
  %v18 = vld [vmem:[%s0] sm:$0xf]
  %v19 = vld [vmem:[%s0 + $0x4] sm:$0xf]
  %v20 = vld [vmem:[%s1] sm:$0xf]
  %v21 = vld [vmem:[%s1 + $0x4] sm:$0xf]
  %v22 = vld [vmem:[%s1 + $0x8] sm:$0xf]
  %v23 = vld [vmem:[%s1 + $0xc] sm:$0xf]
  %v24 = vld [vmem:[%s1 + $0x10] sm:$0xf]
  %v25 = vld [vmem:[%s1 + $0x14] sm:$0xf]
  %v26 = vld [vmem:[%s1 + $0x18] sm:$0xf]
  %v27 = vld [vmem:[%s1 + $0x1c] sm:$0xf]
  %v28 = vld [vmem:[%s1 + $0x20] sm:$0xf]
  %v29 = vld [vmem:[%s1 + $0x24] sm:$0xf]
  %v30 = vld [vmem:[%s1 + $0x28] sm:$0xf]
  %v31 = vld [vmem:[%s1 + $0x2c] sm:$0xf]
  %v32 = vld [vmem:[%s1 + $0x30] sm:$0xf]
  %v33 = vld [vmem:[%s1 + $0x34] sm:$0xf]
  %v34 = vld [vmem:[%s1 + $0x38] sm:$0xf]
  %v35 = vld [vmem:[%s1 + $0x3c] sm:$0xf]
  %v36 = vld [vmem:[%s2] sm:$0x1]
  %v38 = vlaneseq
  %v39 = vshrl.u32 %v38, 7
  %v40 = vsub.s32 0, %v39
  %v41 = vrot.slane %v36, %v40
  %v45 = vunpack.c.l.b16 %v18
  %v46 = vunpack.c.l.b16 %v19
  %v47 = vpack.c.b16 %v46, %v45
  %v65 = vunpack.c.l.b16 %v20
  %v66 = vunpack.c.l.b16 %v21
  %v67 = vunpack.c.l.b16 %v22
  %v68 = vunpack.c.l.b16 %v23
  %v69 = vunpack.c.l.b16 %v24
  %v70 = vunpack.c.l.b16 %v25
  %v71 = vunpack.c.l.b16 %v26
  %v72 = vunpack.c.l.b16 %v27
  %v73 = vunpack.c.l.b16 %v28
  %v74 = vunpack.c.l.b16 %v29
  %v75 = vunpack.c.l.b16 %v30
  %v76 = vunpack.c.l.b16 %v31
  %v77 = vunpack.c.l.b16 %v32
  %v78 = vunpack.c.l.b16 %v33
  %v79 = vunpack.c.l.b16 %v34
  %v80 = vunpack.c.l.b16 %v35
  %v81 = vpack.c.b16 %v66, %v65
  %v82 = vpack.c.b16 %v68, %v67
  %v83 = vpack.c.b16 %v70, %v69
  %v84 = vpack.c.b16 %v72, %v71
  %v85 = vpack.c.b16 %v74, %v73
  %v86 = vpack.c.b16 %v76, %v75
  %v87 = vpack.c.b16 %v78, %v77
  %v88 = vpack.c.b16 %v80, %v79
  %97 = vmatprep.subr.bf16.mxu0 0
  %98 = vmatpush1.bf16.msra.mxu0 %v81
  %99 = vmatprep.subr.bf16.mxu0 0
  %100 = vmatpush1.bf16.msra.mxu0 %v82
  %101 = vmatprep.subr.bf16.mxu0 0
  %102 = vmatpush1.bf16.msra.mxu0 %v83
  %103 = vmatprep.subr.bf16.mxu0 0
  %104 = vmatpush1.bf16.msra.mxu0 %v84
  %105 = vmatprep.subr.bf16.mxu0 0
  %106 = vmatpush1.bf16.msra.mxu0 %v85
  %107 = vmatprep.subr.bf16.mxu0 0
  %108 = vmatpush1.bf16.msra.mxu0 %v86
  %109 = vmatprep.subr.bf16.mxu0 0
  %110 = vmatpush1.bf16.msra.mxu0 %v87
  %111 = vmatprep.subr.bf16.mxu0 0
  %112 = vmatpush1.bf16.msra.mxu0 %v88
  %113 = vmatprep.subr.bf16.mxu0 0
  %114 = vmatpush1.bf16.msra.mxu0 0
  %115 = vmatprep.subr.bf16.mxu0 0
  %116 = vmatpush1.bf16.msra.mxu0 0
  %117 = vmatprep.subr.bf16.mxu0 0
  %118 = vmatpush1.bf16.msra.mxu0 0
  %119 = vmatprep.subr.bf16.mxu0 0
  %120 = vmatpush1.bf16.msra.mxu0 0
  %121 = vmatprep.subr.bf16.mxu0 0
  %122 = vmatpush1.bf16.msra.mxu0 0
  %123 = vmatprep.subr.bf16.mxu0 0
  %124 = vmatpush1.bf16.msra.mxu0 0
  %125 = vmatprep.subr.bf16.mxu0 0
  %126 = vmatpush1.bf16.msra.mxu0 0
  %127 = vmatprep.subr.bf16.mxu0 0
  %128 = vmatpush1.bf16.msra.mxu0 0
  %129 = vmatprep.mubr.bf16.mxu0 0
  %130 = vmatmul.mubr.bf16.gmra.mrb[0].mxu0 %v47
  %v131 = vpop.f32.mrb[0].mxu0
  %v132 = vadd.f32 %v41, %v131
  %v133 = vpop.f32.mrb[0].mxu0
  %v134 = vpop.f32.mrb[0].mxu0
  %v135 = vadd.f32 %v41, %v134
  %v136 = vpop.f32.mrb[0].mxu0
  %137 = vdwg.mxu0
  %v138 = vld [vmem:[%s3] sm:$0xf]
  %v139 = vld [vmem:[%s3 + $0x4] sm:$0xf]
  %v140 = vunpack.c.l.bf16 %v138
  %v141 = vunpack.c.l.bf16 %v139
  %v142 = vadd.f32 %v132, %v140
  %v143 = vadd.f32 %v135, %v141
  %v144 = vpack.c.bf16 %v143, %v142
  %v146 = vunpack.c.l.b16 %v144
  %v147 = vunpack.c.h.b16 %v144
  %v148 = vpack.c.b16 %v146, %v146
  %v149 = vpack.c.b16 %v147, %v147
  %152 = vst [vmem:[%s4] sm:$0xf] %v148
  %153 = vst [vmem:[%s4 + $0x4] sm:$0xf] %v149
  // Predicated region
  $region18: #{get_intermediate_layers.21} parent=0 // pred_check
    _
  $region19: #{get_intermediate_layers.21} parent=0 // pred_check_branch
    %155 = sbr.rel (0) target = $region21
  $region20: #{get_intermediate_layers.21} parent=0 // pred_region
    _
  $region21: #{get_intermediate_layers.21} parent=0 // pred_fallthru
    _
  // Predicated region
  $region22: #{get_intermediate_layers.21} parent=0 // pred_check
    _
  $region23: #{get_intermediate_layers.21} parent=0 // pred_check_branch
    %157 = sbr.rel (0) target = $region25
  $region24: #{get_intermediate_layers.21} parent=0 // pred_region
    _
  $region25: #{get_intermediate_layers.21} parent=0 // pred_fallthru
    _

// kernel: get_intermediate_layers.20
$region0: #{get_intermediate_layers.20}
  #allocation0 [shape = 'u32[]', space=smem, size = 0x4, offset = 0x4, fixed_abs, tag = 'smem constant byte address 0x4 - core index']
  #allocation1 [shape = 'u32[144,128]{1,0:T(1,128)}', space=vmem, size = 0x12000, scoped, tag = 'internal scratch']
  #allocation2 [shape = 'f32[2,8,1]{2,1,0:T(8,128)}', space=vmem, size = 0x2000, scoped, tag = 'scratch operand']
  #allocation3 [shape = 'f32[2,8,1]{2,1,0:T(8,128)}', space=vmem, size = 0x2000, scoped, tag = 'scratch operand']
  #allocation4 [shape = 'f32[2,8,64]{2,1,0:T(8,128)}', space=vmem, size = 0x2000, scoped, tag = 'scratch operand']
  %s0 = inlined_call_operand.vmem [shape: bf16[2,8,384], index: 0, kind: input, shape index: {}, may-alias: {0,1,2}]
  %s1 = inlined_call_operand.vmem [shape: bf16[2,8,384], index: 1, kind: input, shape index: {}, may-alias: {0,1,2}]
  %s2 = inlined_call_operand.vmem [shape: bf16[2,8,384], index: 2, kind: input, shape index: {}, may-alias: {0,1,2}]
  %s3 = inlined_call_operand.vmem [shape: bf16[2,8,128], index: 3, kind: output, shape index: {}]
  %s4 = sld [smem:[#allocation0]]
  $region53: #{get_intermediate_layers.20} parent=0
    _
  %s6 = ssub.s32 1, %s4
  %s7 = scalar_select 0, %s6, %s4
  loop: start=0, step=1, limit=4
  $region2: #{get_intermediate_layers.20} parent=0 // loop_pre_header
    _
  $region3: #{get_intermediate_layers.20} parent=0 // loop_header
    %s9 = sphi 0, %s13
    %p10 = scmp.ge.s32.totalorder %s9, 4
    %s16 = sphi 0, %s35
    %s17 = sphi 0, %s31
    %s18 = sphi 0, %s27
    %s19 = sphi 0, %s16
    %s20 = sphi 0, %s17
    %s21 = sphi 0, %s18
    %s22 = sphi 0, %s19
    %s23 = sphi 0, %s20
    %s24 = sphi 0, %s21
    %s40 = sphi 0, %s42
    %s43 = sphi 0, %s40
    %s44 = sphi 0, %s43
    %s60 = sphi 0, %s44
    %s68 = sphi 0, %s70
    %s71 = sphi 0, %s68
    %s72 = sphi 0, %s71
    %s88 = sphi 0, %s72
    %s96 = sphi 0, %s98
    %s99 = sphi 0, %s96
    %s100 = sphi 0, %s99
    %s116 = sphi 0, %s100
    %s124 = sphi 0, %s126
    %s127 = sphi 0, %s124
    %s128 = sphi 0, %s127
    %s144 = sphi 0, %s128
  $region4: #{get_intermediate_layers.20} parent=0 // loop_header_branch
    %12 = sbr.rel (%p10) target = $region8
  $region5: #{get_intermediate_layers.20} parent=0 // loop_body
    %s14 = ssub.s32 %s9, 1
    %s15 = ssub.s32 %s9, 2
    %s25 = sadd.s32 1, %s18
    %p26 = scmp.ge.s32.totalorder %s25, 1
    %s27 = scalar_select %p26, 0, %s25
    %s28 = sadd.s32 1, %s17
    %s29 = scalar_select %p26, %s28, %s17
    %p30 = scmp.ge.s32.totalorder %s29, 1
    %s31 = scalar_select %p30, 0, %s29
    %s32 = sadd.s32 1, %s16
    %s33 = scalar_select %p30, %s32, %s16
    %p34 = scmp.ge.s32.totalorder %s33, 2
    %s35 = scalar_select %p34, 0, %s33
    %s36 = ssub.s32 %s16, %s35
    %s37 = ssub.s32 %s17, %s31
    %s38 = sor.u32 %s36, %s37
    %p39 = scmp.eq.s32.totalorder %s38, 0
    %s41 = sadd.s32 %s40, 1
    %s42 = scalar_select %p39, %s40, %s41
    %p45 = pneg %p39
    %p46 = scmp.eq.s32.totalorder %s9, 1
    %p47 = por %p45, %p46
    %p48 = scmp.ne.s32.totalorder %s40, %s43
    %p49 = scmp.eq.s32.totalorder %s9, 0
    %p50 = por %p48, %p49
    %p51 = scmp.ne.s32.totalorder %s40, %s43
    %p52 = scmp.eq.s32.totalorder %s14, 1
    %p53 = por %p51, %p52
    %p54 = scmp.ne.s32.totalorder %s43, %s44
    %p55 = scmp.eq.s32.totalorder %s14, 0
    %p56 = por %p54, %p55
    %p57 = scmp.ne.s32.totalorder %s43, %s44
    %p58 = scmp.eq.s32.totalorder %s15, 1
    %p59 = por %p57, %p58
    %p61 = scmp.ne.s32.totalorder %s44, %s60
    %p62 = scmp.eq.s32.totalorder %s15, 0
    %p63 = por %p61, %p62
    %s64 = ssub.s32 %s16, %s35
    %s65 = ssub.s32 %s18, %s27
    %s66 = sor.u32 %s64, %s65
    %p67 = scmp.eq.s32.totalorder %s66, 0
    %s69 = sadd.s32 %s68, 1
    %s70 = scalar_select %p67, %s68, %s69
    %p73 = pneg %p67
    %p74 = scmp.eq.s32.totalorder %s9, 1
    %p75 = por %p73, %p74
    %p76 = scmp.ne.s32.totalorder %s68, %s71
    %p77 = scmp.eq.s32.totalorder %s9, 0
    %p78 = por %p76, %p77
    %p79 = scmp.ne.s32.totalorder %s68, %s71
    %p80 = scmp.eq.s32.totalorder %s14, 1
    %p81 = por %p79, %p80
    %p82 = scmp.ne.s32.totalorder %s71, %s72
    %p83 = scmp.eq.s32.totalorder %s14, 0
    %p84 = por %p82, %p83
    %p85 = scmp.ne.s32.totalorder %s71, %s72
    %p86 = scmp.eq.s32.totalorder %s15, 1
    %p87 = por %p85, %p86
    %p89 = scmp.ne.s32.totalorder %s72, %s88
    %p90 = scmp.eq.s32.totalorder %s15, 0
    %p91 = por %p89, %p90
    %s92 = ssub.s32 %s16, %s35
    %s93 = ssub.s32 %s18, %s27
    %s94 = sor.u32 %s92, %s93
    %p95 = scmp.eq.s32.totalorder %s94, 0
    %s97 = sadd.s32 %s96, 1
    %s98 = scalar_select %p95, %s96, %s97
    %p101 = pneg %p95
    %p102 = scmp.eq.s32.totalorder %s9, 1
    %p103 = por %p101, %p102
    %p104 = scmp.ne.s32.totalorder %s96, %s99
    %p105 = scmp.eq.s32.totalorder %s9, 0
    %p106 = por %p104, %p105
    %p107 = scmp.ne.s32.totalorder %s96, %s99
    %p108 = scmp.eq.s32.totalorder %s14, 1
    %p109 = por %p107, %p108
    %p110 = scmp.ne.s32.totalorder %s99, %s100
    %p111 = scmp.eq.s32.totalorder %s14, 0
    %p112 = por %p110, %p111
    %p113 = scmp.ne.s32.totalorder %s99, %s100
    %p114 = scmp.eq.s32.totalorder %s15, 1
    %p115 = por %p113, %p114
    %p117 = scmp.ne.s32.totalorder %s100, %s116
    %p118 = scmp.eq.s32.totalorder %s15, 0
    %p119 = por %p117, %p118
    %s120 = ssub.s32 %s16, %s35
    %s121 = ssub.s32 %s17, %s31
    %s122 = sor.u32 %s120, %s121
    %p123 = scmp.eq.s32.totalorder %s122, 0
    %s125 = sadd.s32 %s124, 1
    %s126 = scalar_select %p123, %s124, %s125
    %p129 = pneg %p123
    %p130 = scmp.eq.s32.totalorder %s9, 1
    %p131 = por %p129, %p130
    %p132 = scmp.ne.s32.totalorder %s124, %s127
    %p133 = scmp.eq.s32.totalorder %s9, 0
    %p134 = por %p132, %p133
    %p135 = scmp.ne.s32.totalorder %s124, %s127
    %p136 = scmp.eq.s32.totalorder %s14, 1
    %p137 = por %p135, %p136
    %p138 = scmp.ne.s32.totalorder %s127, %s128
    %p139 = scmp.eq.s32.totalorder %s14, 0
    %p140 = por %p138, %p139
    %p141 = scmp.ne.s32.totalorder %s127, %s128
    %p142 = scmp.eq.s32.totalorder %s15, 1
    %p143 = por %p141, %p142
    %p145 = scmp.ne.s32.totalorder %s128, %s144
    %p146 = scmp.eq.s32.totalorder %s15, 0
    %p147 = por %p145, %p146
    %p148 = scmp.le.s32.totalorder 1, %s9
    %p149 = scmp.lt.s32.totalorder %s9, 3
    %p150 = pnand %p148, %p149
    %p151 = pneg %p150
    // Predicated region
    $region9: #{get_intermediate_layers.20} parent=5 // pred_check
      _
    $region10: #{get_intermediate_layers.20} parent=5 // pred_check_branch
      %153 = sbr.rel (%p150) target = $region12
    $region11: #{get_intermediate_layers.20} parent=5 // pred_region
      %s154 = ssub.s32 %s9, 1
    $region12: #{get_intermediate_layers.20} parent=5 // pred_fallthru
      _
    %p155 = scmp.lt.s32.totalorder %s9, 2
    // Predicated region
    $region13: #{get_intermediate_layers.20} parent=5 // pred_check
      %p156 = pneg %p155
    $region14: #{get_intermediate_layers.20} parent=5 // pred_check_branch
      %158 = sbr.rel (%p156) target = $region16
    $region15: #{get_intermediate_layers.20} parent=5 // pred_region
      // Predicated region
      $region17: #{get_intermediate_layers.20} parent=15 // pred_check
        %p159 = pneg %p50
      $region18: #{get_intermediate_layers.20} parent=15 // pred_check_branch
        %161 = sbr.rel (%p159) target = $region20
      $region19: #{get_intermediate_layers.20} parent=15 // pred_region
        %p162 = scmp.lt.s32.totalorder %s16, 1
        %s163 = scalar_select %p162, %s16, 1
        %p164 = scmp.lt.s32.totalorder %s17, 0
        %s165 = scalar_select %p164, %s17, 0
        %s166 = smul.addr %s165, 3
        %s167 = smul.addr %s163, 3
        %s168 = sadd.s32 %s166, %s167
        %s169 = smul.addr %s168, 4
        %s170 = scalar_lea.vmem %s0, %s169
      $region20: #{get_intermediate_layers.20} parent=15 // pred_fallthru
        _
      // Predicated region
      $region21: #{get_intermediate_layers.20} parent=15 // pred_check
        %p171 = pneg %p78
      $region22: #{get_intermediate_layers.20} parent=15 // pred_check_branch
        %173 = sbr.rel (%p171) target = $region24
      $region23: #{get_intermediate_layers.20} parent=15 // pred_region
        %p174 = scmp.lt.s32.totalorder %s16, 1
        %s175 = scalar_select %p174, %s16, 1
        %p176 = scmp.lt.s32.totalorder %s18, 0
        %s177 = scalar_select %p176, %s18, 0
        %s178 = smul.addr %s177, 3
        %s179 = sadd.s32 1, %s178
        %s180 = smul.addr %s175, 3
        %s181 = sadd.s32 %s179, %s180
        %s182 = smul.addr %s181, 4
        %s183 = scalar_lea.vmem %s1, %s182
      $region24: #{get_intermediate_layers.20} parent=15 // pred_fallthru
        _
      // Predicated region
      $region25: #{get_intermediate_layers.20} parent=15 // pred_check
        %p184 = pneg %p106
      $region26: #{get_intermediate_layers.20} parent=15 // pred_check_branch
        %186 = sbr.rel (%p184) target = $region28
      $region27: #{get_intermediate_layers.20} parent=15 // pred_region
        %p187 = scmp.lt.s32.totalorder %s16, 1
        %s188 = scalar_select %p187, %s16, 1
        %p189 = scmp.lt.s32.totalorder %s18, 0
        %s190 = scalar_select %p189, %s18, 0
        %s191 = smul.addr %s190, 3
        %s192 = sadd.s32 2, %s191
        %s193 = smul.addr %s188, 3
        %s194 = sadd.s32 %s192, %s193
        %s195 = smul.addr %s194, 4
        %s196 = scalar_lea.vmem %s2, %s195
      $region28: #{get_intermediate_layers.20} parent=15 // pred_fallthru
        _
    $region16: #{get_intermediate_layers.20} parent=5 // pred_fallthru
      _
    %p197 = scmp.le.s32.totalorder 1, %s9
    %p198 = scmp.lt.s32.totalorder %s9, 3
    %p199 = pnand %p197, %p198
    %p200 = pneg %p199
    // Predicated region
    $region29: #{get_intermediate_layers.20} parent=5 // pred_check
      _
    $region30: #{get_intermediate_layers.20} parent=5 // pred_check_branch
      %202 = sbr.rel (%p199) target = $region32
    $region31: #{get_intermediate_layers.20} parent=5 // pred_region
      %s203 = ssub.s32 %s9, 1
      %p204 = scmp.lt.s32.totalorder %s19, 1
      %s205 = scalar_select %p204, %s19, 1
      %p206 = scmp.lt.s32.totalorder %s20, 0
      %s207 = scalar_select %p206, %s20, 0
      %s208 = smul.addr %s207, 3
      %s209 = smul.addr %s205, 3
      %s210 = sadd.s32 %s208, %s209
      %s211 = smul.addr %s210, 4
      %s212 = scalar_lea.vmem %s0, %s211
      %p213 = pneg %p56
      %p214 = pneg %p53
      %p215 = scmp.lt.s32.totalorder %s19, 1
      %s216 = scalar_select %p215, %s19, 1
      %p217 = scmp.lt.s32.totalorder %s21, 0
      %s218 = scalar_select %p217, %s21, 0
      %s219 = smul.addr %s218, 3
      %s220 = sadd.s32 1, %s219
      %s221 = smul.addr %s216, 3
      %s222 = sadd.s32 %s220, %s221
      %s223 = smul.addr %s222, 4
      %s224 = scalar_lea.vmem %s1, %s223
      %p225 = pneg %p84
      %p226 = pneg %p81
      %p227 = scmp.lt.s32.totalorder %s19, 1
      %s228 = scalar_select %p227, %s19, 1
      %p229 = scmp.lt.s32.totalorder %s21, 0
      %s230 = scalar_select %p229, %s21, 0
      %s231 = smul.addr %s230, 3
      %s232 = sadd.s32 2, %s231
      %s233 = smul.addr %s228, 3
      %s234 = sadd.s32 %s232, %s233
      %s235 = smul.addr %s234, 4
      %s236 = scalar_lea.vmem %s2, %s235
      %p237 = pneg %p112
      %p238 = pneg %p109
      %p239 = pneg %p140
      %p240 = pneg %p137
      %p241 = scmp.lt.s32.totalorder %s19, 1
      %s242 = scalar_select %p241, %s19, 1
      %p243 = scmp.lt.s32.totalorder %s20, 0
      %s244 = scalar_select %p243, %s20, 0
      %s245 = sadd.s32 %s244, %s242
      %s246 = smul.addr %s245, 4
      %s247 = scalar_lea.vmem %s3, %s246
      %p248 = scmp.lt.s32.totalorder %s19, 1
      %s249 = scalar_select %p248, %s19, 1
      %p250 = scmp.lt.s32.totalorder %s20, 0
      %s251 = scalar_select %p250, %s20, 0
      %s252 = smul.addr %s251, 3
      %s253 = smul.addr %s249, 3
      %s254 = sadd.s32 %s252, %s253
      %s255 = smul.addr %s254, 4
      %s256 = scalar_lea.vmem %s0, %s255
      %p257 = scmp.lt.s32.totalorder %s19, 1
      %s258 = scalar_select %p257, %s19, 1
      %p259 = scmp.lt.s32.totalorder %s21, 0
      %s260 = scalar_select %p259, %s21, 0
      %s261 = smul.addr %s260, 3
      %s262 = sadd.s32 1, %s261
      %s263 = smul.addr %s258, 3
      %s264 = sadd.s32 %s262, %s263
      %s265 = smul.addr %s264, 4
      %s266 = scalar_lea.vmem %s1, %s265
      %p267 = scmp.lt.s32.totalorder %s19, 1
      %s268 = scalar_select %p267, %s19, 1
      %p269 = scmp.lt.s32.totalorder %s21, 0
      %s270 = scalar_select %p269, %s21, 0
      %s271 = smul.addr %s270, 3
      %s272 = sadd.s32 2, %s271
      %s273 = smul.addr %s268, 3
      %s274 = sadd.s32 %s272, %s273
      %s275 = smul.addr %s274, 4
      %s276 = scalar_lea.vmem %s2, %s275
      %p277 = scmp.lt.s32.totalorder %s19, 1
      %s278 = scalar_select %p277, %s19, 1
      %p279 = scmp.lt.s32.totalorder %s20, 0
      %s280 = scalar_select %p279, %s20, 0
      %s281 = sadd.s32 %s280, %s278
      %s282 = smul.addr %s281, 4
      %s283 = scalar_lea.vmem %s3, %s282
      %p285 = scmp.eq.s32.totalorder %s21, 0
      // Predicated region
      $region33: #{get_intermediate_layers.20} parent=31 // pred_check
        %p286 = pneg %p285
      $region34: #{get_intermediate_layers.20} parent=31 // pred_check_branch
        %288 = sbr.rel (%p286) target = $region36
      $region35: #{get_intermediate_layers.20} parent=31 // pred_region
        %vm289 = vcmask 7168
        %290 = vst.msk [vmem:[#allocation2] sm:$0xff] %vm289, -inf
        %291 = vst.msk [vmem:[#allocation2 + $0x8] sm:$0xff] %vm289, -inf
        %292 = vst.msk [vmem:[#allocation3] sm:$0xff] %vm289, 0.0
        %293 = vst.msk [vmem:[#allocation3 + $0x8] sm:$0xff] %vm289, 0.0
        %vm294 = vcmask 523264
        %295 = vst.msk [vmem:[#allocation4] sm:$0xff] %vm294, 0.0
        %296 = vst.msk [vmem:[#allocation4 + $0x8] sm:$0xff] %vm294, 0.0
      $region36: #{get_intermediate_layers.20} parent=31 // pred_fallthru
        _
      %s297 = smul.u32 %s21, 8
      %v298 = vlaneseq
      %v299 = vand.u32 %v298, 127
      %v300 = vstv %s297
      %v301 = vadd.s32 %v300, %v299
      %vm302 = vcmp.lt.s32.totalorder %v301, 5
      %v303 = vld [vmem:[%s256] sm:$0xf]
      %v304 = vld [vmem:[%s266] sm:$0xf]
      %v305 = vld [vmem:[%s276] sm:$0xf]
      %vm306 = vcmask 523264
      %v308 = vsel %vm306, %v303, 0
      %v311 = vsel %vm306, %v304, 0
      %313 = vmatprep.subr.bf16.mxu0 0
      %314 = vmatpush1.bf16.xpose.msra.mxu0 %v311
      %315 = vmatprep.subr.bf16.mxu0 0
      %316 = vmatpush1.bf16.xpose.msra.mxu0 0
      %317 = vmatprep.subr.bf16.mxu0 0
      %318 = vmatpush1.bf16.xpose.msra.mxu0 0
      %319 = vmatprep.subr.bf16.mxu0 0
      %320 = vmatpush1.bf16.xpose.msra.mxu0 0
      %321 = vmatprep.subr.bf16.mxu0 0
      %322 = vmatpush1.bf16.xpose.msra.mxu0 0
      %323 = vmatprep.subr.bf16.mxu0 0
      %324 = vmatpush1.bf16.xpose.msra.mxu0 0
      %325 = vmatprep.subr.bf16.mxu0 0
      %326 = vmatpush1.bf16.xpose.msra.mxu0 0
      %327 = vmatprep.subr.bf16.mxu0 0
      %328 = vmatpush1.bf16.xpose.msra.mxu0 0
      %329 = vmatprep.subr.bf16.mxu0 0
      %330 = vmatpush1.bf16.xpose.msra.mxu0 0
      %331 = vmatprep.subr.bf16.mxu0 0
      %332 = vmatpush1.bf16.xpose.msra.mxu0 0
      %333 = vmatprep.subr.bf16.mxu0 0
      %334 = vmatpush1.bf16.xpose.msra.mxu0 0
      %335 = vmatprep.subr.bf16.mxu0 0
      %336 = vmatpush1.bf16.xpose.msra.mxu0 0
      %337 = vmatprep.subr.bf16.mxu0 0
      %338 = vmatpush1.bf16.xpose.msra.mxu0 0
      %339 = vmatprep.subr.bf16.mxu0 0
      %340 = vmatpush1.bf16.xpose.msra.mxu0 0
      %341 = vmatprep.subr.bf16.mxu0 0
      %342 = vmatpush1.bf16.xpose.msra.mxu0 0
      %343 = vmatprep.subr.bf16.mxu0 0
      %344 = vmatpush1.bf16.xpose.msra.mxu0 0
      %345 = vmatprep.mubr.bf16.mxu0 0
      %346 = vmatmul.mubr.bf16.gmra.mrb[0].mxu0 %v308
      %v347 = vpop.f32.mrb[0].mxu0
      %v348 = vadd.f32 0.0, %v347
      %v349 = vpop.f32.mrb[0].mxu0
      %v350 = vpop.f32.mrb[0].mxu0
      %v351 = vpop.f32.mrb[0].mxu0
      %352 = vdwg.mxu0
      %v353 = vmul.f32 %v348, 0.125
      %v354 = vsel %vm302, 1, 0
      %vm355 = vcmp.eq.s32.totalorder %v354, 1
      %v356 = vsel %vm355, %v353, -1e+30
      %v357 = vld [vmem:[#allocation2] sm:$0xff]
      %vm358 = vcmask 64512
      %v359 = vsel %vm358, %v356, -inf
      %360 = vmax.xlane.f32.xlu0 %v359
      %v361 = vpop.xlane.xlu0 %360
      %v362 = vmax.f32 %v357, %v361
      %v363 = vsub.f32 %v357, %v362
      %v364 = vmul.f32 %v363, 1.442695
      %v365 = vpow.pop %v364
      %367 = vset.pattern.permute.xlu0 0
      %368 = vperm.xlu0 %367, %v362
      %v369 = vpop.permute.xlu0 %368
      %v371 = vsub.f32 %v356, %v369
      %v372 = vmul.f32 %v371, 1.442695
      %v373 = vpow.pop %v372
      %v374 = vld [vmem:[#allocation3] sm:$0xff]
      %v375 = vmul.f32 %v365, %v374
      %v376 = vsel %vm358, %v373, 0.0
      %377 = vadd.xlane.f32.xlu0 %v376
      %v378 = vpop.xlane.xlu0 %377
      %v379 = vadd.f32 %v375, %v378
      %vm380 = vcmask 7168
      %381 = vst.msk [vmem:[#allocation3] sm:$0xff] %vm380, %v379
      %v382 = vld [vmem:[#allocation4] sm:$0xff]
      %384 = vset.pattern.permute.xlu0 0
      %385 = vperm.xlu0 %384, %v365
      %v386 = vpop.permute.xlu0 %385
      %v388 = vmul.f32 %v386, %v382
      %v389 = vpack.c.bf16 %v373, %v373
      %v391 = vsel %vm358, %v389, 0
      %vm393 = vcmask 1043456
      %v395 = vsel %vm393, %v305, 0
      %397 = vmatprep.subr.bf16.mxu0 0
      %398 = vmatpush1.bf16.msra.mxu0 %v395
      %399 = vmatprep.subr.bf16.mxu0 0
      %400 = vmatpush1.bf16.msra.mxu0 0
      %401 = vmatprep.subr.bf16.mxu0 0
      %402 = vmatpush1.bf16.msra.mxu0 0
      %403 = vmatprep.subr.bf16.mxu0 0
      %404 = vmatpush1.bf16.msra.mxu0 0
      %405 = vmatprep.subr.bf16.mxu0 0
      %406 = vmatpush1.bf16.msra.mxu0 0
      %407 = vmatprep.subr.bf16.mxu0 0
      %408 = vmatpush1.bf16.msra.mxu0 0
      %409 = vmatprep.subr.bf16.mxu0 0
      %410 = vmatpush1.bf16.msra.mxu0 0
      %411 = vmatprep.subr.bf16.mxu0 0
      %412 = vmatpush1.bf16.msra.mxu0 0
      %413 = vmatprep.subr.bf16.mxu0 0
      %414 = vmatpush1.bf16.msra.mxu0 0
      %415 = vmatprep.subr.bf16.mxu0 0
      %416 = vmatpush1.bf16.msra.mxu0 0
      %417 = vmatprep.subr.bf16.mxu0 0
      %418 = vmatpush1.bf16.msra.mxu0 0
      %419 = vmatprep.subr.bf16.mxu0 0
      %420 = vmatpush1.bf16.msra.mxu0 0
      %421 = vmatprep.subr.bf16.mxu0 0
      %422 = vmatpush1.bf16.msra.mxu0 0
      %423 = vmatprep.subr.bf16.mxu0 0
      %424 = vmatpush1.bf16.msra.mxu0 0
      %425 = vmatprep.subr.bf16.mxu0 0
      %426 = vmatpush1.bf16.msra.mxu0 0
      %427 = vmatprep.subr.bf16.mxu0 0
      %428 = vmatpush1.bf16.msra.mxu0 0
      %429 = vmatprep.mubr.bf16.mxu0 0
      %430 = vmatmul.mubr.bf16.gmra.mrb[0].mxu0 %v391
      %v431 = vpop.f32.mrb[0].mxu0
      %v432 = vadd.f32 0.0, %v431
      %v433 = vpop.f32.mrb[0].mxu0
      %v434 = vpop.f32.mrb[0].mxu0
      %v435 = vpop.f32.mrb[0].mxu0
      %436 = vdwg.mxu0
      %v437 = vadd.f32 %v388, %v432
      %438 = vst.msk [vmem:[#allocation4] sm:$0xff] %vm306, %v437
      %439 = vst.msk [vmem:[#allocation2] sm:$0xff] %vm380, %v362
      %v440 = vld [vmem:[%s256] sm:$0xf]
      %v441 = vld [vmem:[%s266] sm:$0xf]
      %v442 = vld [vmem:[%s276] sm:$0xf]
      %v444 = vunpack.c.l.b16 %v440
      %v445 = vpack.c.b16 %v444, %v444
      %446 = vrot.lane.b32.xlu0 %v445, 64
      %v447 = vpop.permute.xlu0 %446
      %v449 = vunpack.c.l.b16 %v441
      %v450 = vpack.c.b16 %v449, %v449
      %451 = vrot.lane.b32.xlu0 %v450, 64
      %v452 = vpop.permute.xlu0 %451
      %v454 = vsel %vm306, %v447, 0
      %v457 = vsel %vm306, %v452, 0
      %459 = vmatprep.subr.bf16.mxu0 0
      %460 = vmatpush1.bf16.xpose.msra.mxu0 %v457
      %461 = vmatprep.subr.bf16.mxu0 0
      %462 = vmatpush1.bf16.xpose.msra.mxu0 0
      %463 = vmatprep.subr.bf16.mxu0 0
      %464 = vmatpush1.bf16.xpose.msra.mxu0 0
      %465 = vmatprep.subr.bf16.mxu0 0
      %466 = vmatpush1.bf16.xpose.msra.mxu0 0
      %467 = vmatprep.subr.bf16.mxu0 0
      %468 = vmatpush1.bf16.xpose.msra.mxu0 0
      %469 = vmatprep.subr.bf16.mxu0 0
      %470 = vmatpush1.bf16.xpose.msra.mxu0 0
      %471 = vmatprep.subr.bf16.mxu0 0
      %472 = vmatpush1.bf16.xpose.msra.mxu0 0
      %473 = vmatprep.subr.bf16.mxu0 0
      %474 = vmatpush1.bf16.xpose.msra.mxu0 0
      %475 = vmatprep.subr.bf16.mxu0 0
      %476 = vmatpush1.bf16.xpose.msra.mxu0 0
      %477 = vmatprep.subr.bf16.mxu0 0
      %478 = vmatpush1.bf16.xpose.msra.mxu0 0
      %479 = vmatprep.subr.bf16.mxu0 0
      %480 = vmatpush1.bf16.xpose.msra.mxu0 0
      %481 = vmatprep.subr.bf16.mxu0 0
      %482 = vmatpush1.bf16.xpose.msra.mxu0 0
      %483 = vmatprep.subr.bf16.mxu0 0
      %484 = vmatpush1.bf16.xpose.msra.mxu0 0
      %485 = vmatprep.subr.bf16.mxu0 0
      %486 = vmatpush1.bf16.xpose.msra.mxu0 0
      %487 = vmatprep.subr.bf16.mxu0 0
      %488 = vmatpush1.bf16.xpose.msra.mxu0 0
      %489 = vmatprep.subr.bf16.mxu0 0
      %490 = vmatpush1.bf16.xpose.msra.mxu0 0
      %491 = vmatprep.mubr.bf16.mxu0 0
      %492 = vmatmul.mubr.bf16.gmra.mrb[0].mxu0 %v454
      %v493 = vpop.f32.mrb[0].mxu0
      %v494 = vadd.f32 0.0, %v493
      %v495 = vpop.f32.mrb[0].mxu0
      %v496 = vpop.f32.mrb[0].mxu0
      %v497 = vpop.f32.mrb[0].mxu0
      %498 = vdwg.mxu0
      %v499 = vmul.f32 %v494, 0.125
      %v500 = vsel %vm355, %v499, -1e+30
      %s501 = scalar_lea.vmem [#allocation2], 8
      %v502 = vld [vmem:[%s501] sm:$0xff]
      %v503 = vsel %vm358, %v500, -inf
      %504 = vmax.xlane.f32.xlu0 %v503
      %v505 = vpop.xlane.xlu0 %504
      %v506 = vmax.f32 %v502, %v505
      %v507 = vsub.f32 %v502, %v506
      %v508 = vmul.f32 %v507, 1.442695
      %v509 = vpow.pop %v508
      %511 = vset.pattern.permute.xlu0 0
      %512 = vperm.xlu0 %511, %v506
      %v513 = vpop.permute.xlu0 %512
      %v515 = vsub.f32 %v500, %v513
      %v516 = vmul.f32 %v515, 1.442695
      %v517 = vpow.pop %v516
      %s518 = scalar_lea.vmem [#allocation3], 8
      %v519 = vld [vmem:[%s518] sm:$0xff]
      %v520 = vmul.f32 %v509, %v519
      %v521 = vsel %vm358, %v517, 0.0
      %522 = vadd.xlane.f32.xlu0 %v521
      %v523 = vpop.xlane.xlu0 %522
      %v524 = vadd.f32 %v520, %v523
      %525 = vst.msk [vmem:[%s518] sm:$0xff] %vm380, %v524
      %s526 = scalar_lea.vmem [#allocation4], 8
      %v527 = vld [vmem:[%s526] sm:$0xff]
      %529 = vset.pattern.permute.xlu0 0
      %530 = vperm.xlu0 %529, %v509
      %v531 = vpop.permute.xlu0 %530
      %v533 = vmul.f32 %v531, %v527
      %v534 = vpack.c.bf16 %v517, %v517
      %v536 = vunpack.c.l.b16 %v442
      %v537 = vpack.c.b16 %v536, %v536
      %538 = vrot.lane.b32.xlu0 %v537, 64
      %v539 = vpop.permute.xlu0 %538
      %v541 = vsel %vm358, %v534, 0
      %v544 = vsel %vm393, %v539, 0
      %546 = vmatprep.subr.bf16.mxu0 0
      %547 = vmatpush1.bf16.msra.mxu0 %v544
      %548 = vmatprep.subr.bf16.mxu0 0
      %549 = vmatpush1.bf16.msra.mxu0 0
      %550 = vmatprep.subr.bf16.mxu0 0
      %551 = vmatpush1.bf16.msra.mxu0 0
      %552 = vmatprep.subr.bf16.mxu0 0
      %553 = vmatpush1.bf16.msra.mxu0 0
      %554 = vmatprep.subr.bf16.mxu0 0
      %555 = vmatpush1.bf16.msra.mxu0 0
      %556 = vmatprep.subr.bf16.mxu0 0
      %557 = vmatpush1.bf16.msra.mxu0 0
      %558 = vmatprep.subr.bf16.mxu0 0
      %559 = vmatpush1.bf16.msra.mxu0 0
      %560 = vmatprep.subr.bf16.mxu0 0
      %561 = vmatpush1.bf16.msra.mxu0 0
      %562 = vmatprep.subr.bf16.mxu0 0
      %563 = vmatpush1.bf16.msra.mxu0 0
      %564 = vmatprep.subr.bf16.mxu0 0
      %565 = vmatpush1.bf16.msra.mxu0 0
      %566 = vmatprep.subr.bf16.mxu0 0
      %567 = vmatpush1.bf16.msra.mxu0 0
      %568 = vmatprep.subr.bf16.mxu0 0
      %569 = vmatpush1.bf16.msra.mxu0 0
      %570 = vmatprep.subr.bf16.mxu0 0
      %571 = vmatpush1.bf16.msra.mxu0 0
      %572 = vmatprep.subr.bf16.mxu0 0
      %573 = vmatpush1.bf16.msra.mxu0 0
      %574 = vmatprep.subr.bf16.mxu0 0
      %575 = vmatpush1.bf16.msra.mxu0 0
      %576 = vmatprep.subr.bf16.mxu0 0
      %577 = vmatpush1.bf16.msra.mxu0 0
      %578 = vmatprep.mubr.bf16.mxu0 0
      %579 = vmatmul.mubr.bf16.gmra.mrb[0].mxu0 %v541
      %v580 = vpop.f32.mrb[0].mxu0
      %v581 = vadd.f32 0.0, %v580
      %v582 = vpop.f32.mrb[0].mxu0
      %v583 = vpop.f32.mrb[0].mxu0
      %v584 = vpop.f32.mrb[0].mxu0
      %585 = vdwg.mxu0
      %v586 = vadd.f32 %v533, %v581
      %587 = vst.msk [vmem:[%s526] sm:$0xff] %vm306, %v586
      %588 = vst.msk [vmem:[%s501] sm:$0xff] %vm380, %v506
      // Predicated region
      $region37: #{get_intermediate_layers.20} parent=31 // pred_check
        %p589 = pneg %p285
      $region38: #{get_intermediate_layers.20} parent=31 // pred_check_branch
        %591 = sbr.rel (%p589) target = $region40
      $region39: #{get_intermediate_layers.20} parent=31 // pred_region
        %v592 = vld [vmem:[#allocation3] sm:$0xff]
        %v593 = vrcp.pop %v592
        %v594 = vld [vmem:[#allocation4] sm:$0xff]
        %596 = vset.pattern.permute.xlu0 0
        %597 = vperm.xlu0 %596, %v593
        %v598 = vpop.permute.xlu0 %597
        %v600 = vmul.f32 %v594, %v598
        %v601 = vpack.c.bf16 %v600, %v600
        %vm602 = vcmask 519168
        %603 = vst.msk [vmem:[%s283] sm:$0xf] %vm602, %v601
        %v604 = vld [vmem:[%s518] sm:$0xff]
        %v605 = vrcp.pop %v604
        %v606 = vld [vmem:[%s526] sm:$0xff]
        %608 = vset.pattern.permute.xlu0 0
        %609 = vperm.xlu0 %608, %v605
        %v610 = vpop.permute.xlu0 %609
        %v612 = vmul.f32 %v606, %v610
        %v613 = vpack.c.bf16 %v612, %v612
        %v615 = vunpack.c.l.b16 %v613
        %v616 = vpack.c.b16 %v615, %v615
        %617 = vrot.lane.b32.xlu0 %v616, 64
        %v618 = vpop.permute.xlu0 %617
        %vm620 = vcmask 1043968
        %621 = vst.msk [vmem:[%s283] sm:$0xf] %vm620, %v618
      $region40: #{get_intermediate_layers.20} parent=31 // pred_fallthru
        _
      %p622 = scmp.lt.s32.totalorder %s19, 1
      %s623 = scalar_select %p622, %s19, 1
      %p624 = scmp.lt.s32.totalorder %s20, 0
      %s625 = scalar_select %p624, %s20, 0
      %s626 = sadd.s32 %s625, %s623
      %s627 = smul.addr %s626, 4
      %s628 = scalar_lea.vmem %s3, %s627
      // Predicated region
      $region41: #{get_intermediate_layers.20} parent=31 // pred_check
        %p629 = pneg %p137
      $region42: #{get_intermediate_layers.20} parent=31 // pred_check_branch
        %631 = sbr.rel (%p629) target = $region44
      $region43: #{get_intermediate_layers.20} parent=31 // pred_region
        _
      $region44: #{get_intermediate_layers.20} parent=31 // pred_fallthru
        _
    $region32: #{get_intermediate_layers.20} parent=5 // pred_fallthru
      _
    %p632 = scmp.le.s32.totalorder 2, %s9
    // Predicated region
    $region45: #{get_intermediate_layers.20} parent=5 // pred_check
      %p633 = pneg %p632
    $region46: #{get_intermediate_layers.20} parent=5 // pred_check_branch
      %635 = sbr.rel (%p633) target = $region48
    $region47: #{get_intermediate_layers.20} parent=5 // pred_region
      %s636 = ssub.s32 %s9, 2
      // Predicated region
      $region49: #{get_intermediate_layers.20} parent=47 // pred_check
        %p637 = pneg %p143
      $region50: #{get_intermediate_layers.20} parent=47 // pred_check_branch
        %639 = sbr.rel (%p637) target = $region52
      $region51: #{get_intermediate_layers.20} parent=47 // pred_region
        %p640 = scmp.lt.s32.totalorder %s22, 1
        %s641 = scalar_select %p640, %s22, 1
        %p642 = scmp.lt.s32.totalorder %s23, 0
        %s643 = scalar_select %p642, %s23, 0
        %s644 = sadd.s32 %s643, %s641
        %s645 = smul.addr %s644, 4
        %s646 = scalar_lea.vmem %s3, %s645
      $region52: #{get_intermediate_layers.20} parent=47 // pred_fallthru
        _
    $region48: #{get_intermediate_layers.20} parent=5 // pred_fallthru
      _
  $region6: #{get_intermediate_layers.20} parent=0 // loop_footer
    %s13 = sadd.s32 1, %s9
  $region7: #{get_intermediate_layers.20} parent=0 // loop_footer_branch
    %8 = sbr.rel target = $region3
  $region8: #{get_intermediate_layers.20} parent=0 // loop_exit
    _

// kernel: get_intermediate_layers.19
$region0: #{get_intermediate_layers.19}
  #allocation0 [shape = 'u32[]', space=smem, size = 0x4, offset = 0x4, fixed_abs, tag = 'smem constant byte address 0x4 - core index']
  #allocation1 [shape = 'u32[144,128]{1,0:T(1,128)}', space=vmem, size = 0x12000, scoped, tag = 'internal scratch']
  #allocation2 [shape = 'bf16[16,128]{1,0:T(16,128)(2,1)}', space=vmem, size = 0x1000, scoped, tag = 'scratch operand']
  %s0 = inlined_call_operand.vmem [shape: bf16[16,128], index: 0, kind: input, shape index: {}]
  %s1 = inlined_call_operand.vmem [shape: bf16[128,384], index: 1, kind: input, shape index: {}]
  %s2 = inlined_call_operand.vmem [shape: f32[1,384], index: 2, kind: input, shape index: {}]
  %s3 = inlined_call_operand.vmem [shape: f32[1,128], index: 3, kind: input, shape index: {}]
  %s4 = inlined_call_operand.vmem [shape: f32[1,128], index: 4, kind: input, shape index: {}]
  %s5 = inlined_call_operand.vmem [shape: bf16[16,384], index: 5, kind: output, shape index: {}]
  %s6 = sld [smem:[#allocation0]]
  $region34: #{get_intermediate_layers.19} parent=0
    _
  %s8 = ssub.s32 1, %s6
  %s9 = scalar_select 0, %s8, %s6
  // Predicated region
  $region2: #{get_intermediate_layers.19} parent=0 // pred_check
    _
  $region3: #{get_intermediate_layers.19} parent=0 // pred_check_branch
    %11 = sbr.rel (0) target = $region5
  $region4: #{get_intermediate_layers.19} parent=0 // pred_region
    _
  $region5: #{get_intermediate_layers.19} parent=0 // pred_fallthru
    _
  // Predicated region
  $region6: #{get_intermediate_layers.19} parent=0 // pred_check
    _
  $region7: #{get_intermediate_layers.19} parent=0 // pred_check_branch
    %13 = sbr.rel (0) target = $region9
  $region8: #{get_intermediate_layers.19} parent=0 // pred_region
    _
  $region9: #{get_intermediate_layers.19} parent=0 // pred_fallthru
    _
  // Predicated region
  $region10: #{get_intermediate_layers.19} parent=0 // pred_check
    _
  $region11: #{get_intermediate_layers.19} parent=0 // pred_check_branch
    %15 = sbr.rel (0) target = $region13
  $region12: #{get_intermediate_layers.19} parent=0 // pred_region
    _
  $region13: #{get_intermediate_layers.19} parent=0 // pred_fallthru
    _
  // Predicated region
  $region14: #{get_intermediate_layers.19} parent=0 // pred_check
    _
  $region15: #{get_intermediate_layers.19} parent=0 // pred_check_branch
    %17 = sbr.rel (0) target = $region17
  $region16: #{get_intermediate_layers.19} parent=0 // pred_region
    _
  $region17: #{get_intermediate_layers.19} parent=0 // pred_fallthru
    _
  // Predicated region
  $region18: #{get_intermediate_layers.19} parent=0 // pred_check
    _
  $region19: #{get_intermediate_layers.19} parent=0 // pred_check_branch
    %19 = sbr.rel (0) target = $region21
  $region20: #{get_intermediate_layers.19} parent=0 // pred_region
    _
  $region21: #{get_intermediate_layers.19} parent=0 // pred_fallthru
    _
  %p21 = scmp.eq.s32.totalorder 0, 0
  // Predicated region
  $region22: #{get_intermediate_layers.19} parent=0 // pred_check
    %p22 = pneg %p21
  $region23: #{get_intermediate_layers.19} parent=0 // pred_check_branch
    %24 = sbr.rel (%p22) target = $region25
  $region24: #{get_intermediate_layers.19} parent=0 // pred_region
    %v25 = vld [vmem:[%s0] sm:$0xf]
    %v26 = vld [vmem:[%s0 + $0x4] sm:$0xf]
    %v27 = vunpack.c.l.bf16 %v25
    %v28 = vunpack.c.l.bf16 %v26
    %29 = vadd.xlane.f32.xlu0 %v27
    %v30 = vpop.xlane.xlu0 %29
    %31 = vadd.xlane.f32.xlu0 %v28
    %v32 = vpop.xlane.xlu0 %31
    %v33 = vrcp.pop 128.0
    %v34 = vmul.f32 %v30, %v33
    %v35 = vmul.f32 %v32, %v33
    %v36 = vsub.f32 %v27, %v34
    %v37 = vsub.f32 %v28, %v35
    %v38 = vmul.f32 %v36, %v36
    %v39 = vmul.f32 %v37, %v37
    %40 = vadd.xlane.f32.xlu0 %v38
    %v41 = vpop.xlane.xlu0 %40
    %42 = vadd.xlane.f32.xlu0 %v39
    %v43 = vpop.xlane.xlu0 %42
    %v44 = vmul.f32 %v41, %v33
    %v45 = vmul.f32 %v43, %v33
    %v46 = vadd.f32 %v44, 1e-06
    %v47 = vadd.f32 %v45, 1e-06
    %v48 = vrsqrt.pop %v46
    %v49 = vrsqrt.pop %v47
    %v50 = vmul.f32 %v36, %v48
    %v51 = vmul.f32 %v37, %v49
    %v52 = vld [vmem:[%s3] sm:$0x1]
    %v54 = vlaneseq
    %v55 = vshrl.u32 %v54, 7
    %v56 = vsub.s32 0, %v55
    %v57 = vrot.slane %v52, %v56
    %v59 = vmul.f32 %v50, %v57
    %v60 = vmul.f32 %v51, %v57
    %v61 = vld [vmem:[%s4] sm:$0x1]
    %v63 = vlaneseq
    %v64 = vshrl.u32 %v63, 7
    %v65 = vsub.s32 0, %v64
    %v66 = vrot.slane %v61, %v65
    %v68 = vadd.f32 %v59, %v66
    %v69 = vadd.f32 %v60, %v66
    %v70 = vpack.c.bf16 %v69, %v68
    %71 = vst [vmem:[#allocation2] sm:$0xff] %v70
  $region25: #{get_intermediate_layers.19} parent=0 // pred_fallthru
    _
  %v72 = vld [vmem:[#allocation2] sm:$0xff]
  %v73 = vld [vmem:[%s1] sm:$0xff]
  %v74 = vld [vmem:[%s1 + $0x8] sm:$0xf]
  %v75 = vld [vmem:[%s1 + $0xc] sm:$0xff]
  %v76 = vld [vmem:[%s1 + $0x14] sm:$0xf]
  %v77 = vld [vmem:[%s1 + $0x18] sm:$0xff]
  %v78 = vld [vmem:[%s1 + $0x20] sm:$0xf]
  %v79 = vld [vmem:[%s1 + $0x24] sm:$0xff]
  %v80 = vld [vmem:[%s1 + $0x2c] sm:$0xf]
  %v81 = vld [vmem:[%s1 + $0x30] sm:$0xff]
  %v82 = vld [vmem:[%s1 + $0x38] sm:$0xf]
  %v83 = vld [vmem:[%s1 + $0x3c] sm:$0xff]
  %v84 = vld [vmem:[%s1 + $0x44] sm:$0xf]
  %v85 = vld [vmem:[%s1 + $0x48] sm:$0xff]
  %v86 = vld [vmem:[%s1 + $0x50] sm:$0xf]
  %v87 = vld [vmem:[%s1 + $0x54] sm:$0xff]
  %v88 = vld [vmem:[%s1 + $0x5c] sm:$0xf]
  %v89 = vld [vmem:[%s1 + $0x60] sm:$0xff]
  %v90 = vld [vmem:[%s1 + $0x68] sm:$0xf]
  %v91 = vld [vmem:[%s1 + $0x6c] sm:$0xff]
  %v92 = vld [vmem:[%s1 + $0x74] sm:$0xf]
  %v93 = vld [vmem:[%s1 + $0x78] sm:$0xff]
  %v94 = vld [vmem:[%s1 + $0x80] sm:$0xf]
  %v95 = vld [vmem:[%s1 + $0x84] sm:$0xff]
  %v96 = vld [vmem:[%s1 + $0x8c] sm:$0xf]
  %v97 = vld [vmem:[%s1 + $0x90] sm:$0xff]
  %v98 = vld [vmem:[%s1 + $0x98] sm:$0xf]
  %v99 = vld [vmem:[%s1 + $0x9c] sm:$0xff]
  %v100 = vld [vmem:[%s1 + $0xa4] sm:$0xf]
  %v101 = vld [vmem:[%s1 + $0xa8] sm:$0xff]
  %v102 = vld [vmem:[%s1 + $0xb0] sm:$0xf]
  %v103 = vld [vmem:[%s1 + $0xb4] sm:$0xff]
  %v104 = vld [vmem:[%s1 + $0xbc] sm:$0xf]
  %v105 = vld [vmem:[%s2] sm:$0x7]
  %v107 = vlaneseq
  %v108 = vshrl.u32 %v107, 7
  %v109 = vsub.s32 0, %v108
  %v110 = vrot.slane %v105, %v109
  %v111 = vlaneseq
  %v112 = vshrl.u32 %v111, 7
  %v113 = vsub.s32 1, %v112
  %v114 = vrot.slane %v105, %v113
  %v115 = vlaneseq
  %v116 = vshrl.u32 %v115, 7
  %v117 = vsub.s32 2, %v116
  %v118 = vrot.slane %v105, %v117
  %v154 = vunpack.c.l.b16 %v73
  %v155 = vunpack.c.h.b16 %v73
  %v156 = vunpack.c.l.b16 %v74
  %v157 = vunpack.c.l.b16 %v75
  %v158 = vunpack.c.h.b16 %v75
  %v159 = vunpack.c.l.b16 %v76
  %v160 = vunpack.c.l.b16 %v77
  %v161 = vunpack.c.h.b16 %v77
  %v162 = vunpack.c.l.b16 %v78
  %v163 = vunpack.c.l.b16 %v79
  %v164 = vunpack.c.h.b16 %v79
  %v165 = vunpack.c.l.b16 %v80
  %v166 = vunpack.c.l.b16 %v81
  %v167 = vunpack.c.h.b16 %v81
  %v168 = vunpack.c.l.b16 %v82
  %v169 = vunpack.c.l.b16 %v83
  %v170 = vunpack.c.h.b16 %v83
  %v171 = vunpack.c.l.b16 %v84
  %v172 = vunpack.c.l.b16 %v85
  %v173 = vunpack.c.h.b16 %v85
  %v174 = vunpack.c.l.b16 %v86
  %v175 = vunpack.c.l.b16 %v87
  %v176 = vunpack.c.h.b16 %v87
  %v177 = vunpack.c.l.b16 %v88
  %v178 = vunpack.c.l.b16 %v89
  %v179 = vunpack.c.h.b16 %v89
  %v180 = vunpack.c.l.b16 %v90
  %v181 = vunpack.c.l.b16 %v91
  %v182 = vunpack.c.h.b16 %v91
  %v183 = vunpack.c.l.b16 %v92
  %v184 = vunpack.c.l.b16 %v93
  %v185 = vunpack.c.h.b16 %v93
  %v186 = vunpack.c.l.b16 %v94
  %v187 = vunpack.c.l.b16 %v95
  %v188 = vunpack.c.h.b16 %v95
  %v189 = vunpack.c.l.b16 %v96
  %v190 = vunpack.c.l.b16 %v97
  %v191 = vunpack.c.h.b16 %v97
  %v192 = vunpack.c.l.b16 %v98
  %v193 = vunpack.c.l.b16 %v99
  %v194 = vunpack.c.h.b16 %v99
  %v195 = vunpack.c.l.b16 %v100
  %v196 = vunpack.c.l.b16 %v101
  %v197 = vunpack.c.h.b16 %v101
  %v198 = vunpack.c.l.b16 %v102
  %v199 = vunpack.c.l.b16 %v103
  %v200 = vunpack.c.h.b16 %v103
  %v201 = vunpack.c.l.b16 %v104
  %v202 = vpack.c.b16 %v157, %v154
  %v203 = vpack.c.b16 %v158, %v155
  %v204 = vpack.c.b16 %v159, %v156
  %v205 = vpack.c.b16 %v163, %v160
  %v206 = vpack.c.b16 %v164, %v161
  %v207 = vpack.c.b16 %v165, %v162
  %v208 = vpack.c.b16 %v169, %v166
  %v209 = vpack.c.b16 %v170, %v167
  %v210 = vpack.c.b16 %v171, %v168
  %v211 = vpack.c.b16 %v175, %v172
  %v212 = vpack.c.b16 %v176, %v173
  %v213 = vpack.c.b16 %v177, %v174
  %v214 = vpack.c.b16 %v181, %v178
  %v215 = vpack.c.b16 %v182, %v179
  %v216 = vpack.c.b16 %v183, %v180
  %v217 = vpack.c.b16 %v187, %v184
  %v218 = vpack.c.b16 %v188, %v185
  %v219 = vpack.c.b16 %v189, %v186
  %v220 = vpack.c.b16 %v193, %v190
  %v221 = vpack.c.b16 %v194, %v191
  %v222 = vpack.c.b16 %v195, %v192
  %v223 = vpack.c.b16 %v199, %v196
  %v224 = vpack.c.b16 %v200, %v197
  %v225 = vpack.c.b16 %v201, %v198
  %250 = vmatprep.subr.bf16.mxu0 %v203
  %251 = vmatpush1.bf16.msra.mxu0 %v202
  %252 = vmatprep.subr.bf16.mxu0 %v206
  %253 = vmatpush1.bf16.msra.mxu0 %v205
  %254 = vmatprep.subr.bf16.mxu0 %v209
  %255 = vmatpush1.bf16.msra.mxu0 %v208
  %256 = vmatprep.subr.bf16.mxu0 %v212
  %257 = vmatpush1.bf16.msra.mxu0 %v211
  %258 = vmatprep.subr.bf16.mxu0 %v215
  %259 = vmatpush1.bf16.msra.mxu0 %v214
  %260 = vmatprep.subr.bf16.mxu0 %v218
  %261 = vmatpush1.bf16.msra.mxu0 %v217
  %262 = vmatprep.subr.bf16.mxu0 %v221
  %263 = vmatpush1.bf16.msra.mxu0 %v220
  %264 = vmatprep.subr.bf16.mxu0 %v224
  %265 = vmatpush1.bf16.msra.mxu0 %v223
  %266 = vmatprep.subr.bf16.mxu0 0
  %267 = vmatpush1.bf16.msra.mxu0 0
  %268 = vmatprep.subr.bf16.mxu0 0
  %269 = vmatpush1.bf16.msra.mxu0 0
  %270 = vmatprep.subr.bf16.mxu0 0
  %271 = vmatpush1.bf16.msra.mxu0 0
  %272 = vmatprep.subr.bf16.mxu0 0
  %273 = vmatpush1.bf16.msra.mxu0 0
  %274 = vmatprep.subr.bf16.mxu0 0
  %275 = vmatpush1.bf16.msra.mxu0 0
  %276 = vmatprep.subr.bf16.mxu0 0
  %277 = vmatpush1.bf16.msra.mxu0 0
  %278 = vmatprep.subr.bf16.mxu0 0
  %279 = vmatpush1.bf16.msra.mxu0 0
  %280 = vmatprep.subr.bf16.mxu0 0
  %281 = vmatpush1.bf16.msra.mxu0 0
  %282 = vmatprep.mubr.bf16.mxu0 0
  %283 = vmatmul.mubr.bf16.gmra.mrb[0].mxu0 %v72
  %v284 = vpop.f32.mrb[0].mxu0
  %v285 = vadd.f32 %v110, %v284
  %v286 = vpop.f32.mrb[0].mxu0
  %v287 = vadd.f32 %v114, %v286
  %v288 = vpop.f32.mrb[0].mxu0
  %v289 = vadd.f32 %v110, %v288
  %v290 = vpop.f32.mrb[0].mxu0
  %v291 = vadd.f32 %v114, %v290
  %292 = vdwg.mxu0
  %293 = vmatprep.subr.bf16.mxu0 0
  %294 = vmatpush1.bf16.msra.mxu0 %v204
  %295 = vmatprep.subr.bf16.mxu0 0
  %296 = vmatpush1.bf16.msra.mxu0 %v207
  %297 = vmatprep.subr.bf16.mxu0 0
  %298 = vmatpush1.bf16.msra.mxu0 %v210
  %299 = vmatprep.subr.bf16.mxu0 0
  %300 = vmatpush1.bf16.msra.mxu0 %v213
  %301 = vmatprep.subr.bf16.mxu0 0
  %302 = vmatpush1.bf16.msra.mxu0 %v216
  %303 = vmatprep.subr.bf16.mxu0 0
  %304 = vmatpush1.bf16.msra.mxu0 %v219
  %305 = vmatprep.subr.bf16.mxu0 0
  %306 = vmatpush1.bf16.msra.mxu0 %v222
  %307 = vmatprep.subr.bf16.mxu0 0
  %308 = vmatpush1.bf16.msra.mxu0 %v225
  %309 = vmatprep.subr.bf16.mxu0 0
  %310 = vmatpush1.bf16.msra.mxu0 0
  %311 = vmatprep.subr.bf16.mxu0 0
  %312 = vmatpush1.bf16.msra.mxu0 0
  %313 = vmatprep.subr.bf16.mxu0 0
  %314 = vmatpush1.bf16.msra.mxu0 0
  %315 = vmatprep.subr.bf16.mxu0 0
  %316 = vmatpush1.bf16.msra.mxu0 0
  %317 = vmatprep.subr.bf16.mxu0 0
  %318 = vmatpush1.bf16.msra.mxu0 0
  %319 = vmatprep.subr.bf16.mxu0 0
  %320 = vmatpush1.bf16.msra.mxu0 0
  %321 = vmatprep.subr.bf16.mxu0 0
  %322 = vmatpush1.bf16.msra.mxu0 0
  %323 = vmatprep.subr.bf16.mxu0 0
  %324 = vmatpush1.bf16.msra.mxu0 0
  %325 = vmatprep.mubr.bf16.mxu0 0
  %326 = vmatmul.mubr.bf16.gmra.mrb[0].mxu0 %v72
  %v327 = vpop.f32.mrb[0].mxu0
  %v328 = vadd.f32 %v118, %v327
  %v329 = vpop.f32.mrb[0].mxu0
  %v330 = vpop.f32.mrb[0].mxu0
  %v331 = vadd.f32 %v118, %v330
  %v332 = vpop.f32.mrb[0].mxu0
  %333 = vdwg.mxu0
  %v334 = vpack.c.bf16 %v289, %v285
  %v335 = vpack.c.bf16 %v291, %v287
  %v336 = vpack.c.bf16 %v331, %v328
  %v340 = vunpack.c.l.b16 %v334
  %v341 = vunpack.c.l.b16 %v335
  %v342 = vunpack.c.l.b16 %v336
  %v343 = vunpack.c.h.b16 %v334
  %v344 = vunpack.c.h.b16 %v335
  %v345 = vunpack.c.h.b16 %v336
  %v346 = vpack.c.b16 %v341, %v340
  %v347 = vpack.c.b16 %v342, %v342
  %v348 = vpack.c.b16 %v344, %v343
  %v349 = vpack.c.b16 %v345, %v345
  %354 = vst [vmem:[%s5] sm:$0xff] %v346
  %355 = vst [vmem:[%s5 + $0x8] sm:$0xf] %v347
  %356 = vst [vmem:[%s5 + $0xc] sm:$0xff] %v348
  %357 = vst [vmem:[%s5 + $0x14] sm:$0xf] %v349
  // Predicated region
  $region26: #{get_intermediate_layers.19} parent=0 // pred_check
    _
  $region27: #{get_intermediate_layers.19} parent=0 // pred_check_branch
    %359 = sbr.rel (0) target = $region29
  $region28: #{get_intermediate_layers.19} parent=0 // pred_region
    _
  $region29: #{get_intermediate_layers.19} parent=0 // pred_fallthru
    _
  // Predicated region
  $region30: #{get_intermediate_layers.19} parent=0 // pred_check
    _
  $region31: #{get_intermediate_layers.19} parent=0 // pred_check_branch
    %361 = sbr.rel (0) target = $region33
  $region32: #{get_intermediate_layers.19} parent=0 // pred_region
    _
  $region33: #{get_intermediate_layers.19} parent=0 // pred_fallthru
    _

// kernel: get_intermediate_layers.18
$region0: #{get_intermediate_layers.18}
  #allocation0 [shape = 'u32[]', space=smem, size = 0x4, offset = 0x4, fixed_abs, tag = 'smem constant byte address 0x4 - core index']
  #allocation1 [shape = 'u32[144,128]{1,0:T(1,128)}', space=vmem, size = 0x12000, scoped, tag = 'internal scratch']
  %s0 = inlined_call_operand.vmem [shape: bf16[8,588], index: 0, kind: input, shape index: {}]
  %s1 = inlined_call_operand.vmem [shape: bf16[588,128], index: 1, kind: input, shape index: {}]
  %s2 = inlined_call_operand.vmem [shape: f32[1,128], index: 2, kind: input, shape index: {}]
  %s3 = inlined_call_operand.vmem [shape: bf16[8,128], index: 3, kind: output, shape index: {}]
  %s4 = sld [smem:[#allocation0]]
  $region22: #{get_intermediate_layers.18} parent=0
    _
  %s6 = ssub.s32 1, %s4
  %s7 = scalar_select 0, %s6, %s4
  // Predicated region
  $region2: #{get_intermediate_layers.18} parent=0 // pred_check
    _
  $region3: #{get_intermediate_layers.18} parent=0 // pred_check_branch
    %9 = sbr.rel (0) target = $region5
  $region4: #{get_intermediate_layers.18} parent=0 // pred_region
    _
  $region5: #{get_intermediate_layers.18} parent=0 // pred_fallthru
    _
  // Predicated region
  $region6: #{get_intermediate_layers.18} parent=0 // pred_check
    _
  $region7: #{get_intermediate_layers.18} parent=0 // pred_check_branch
    %11 = sbr.rel (0) target = $region9
  $region8: #{get_intermediate_layers.18} parent=0 // pred_region
    _
  $region9: #{get_intermediate_layers.18} parent=0 // pred_fallthru
    _
  // Predicated region
  $region10: #{get_intermediate_layers.18} parent=0 // pred_check
    _
  $region11: #{get_intermediate_layers.18} parent=0 // pred_check_branch
    %13 = sbr.rel (0) target = $region13
  $region12: #{get_intermediate_layers.18} parent=0 // pred_region
    _
  $region13: #{get_intermediate_layers.18} parent=0 // pred_fallthru
    _
  %v15 = vld [vmem:[%s0] sm:$0xff]
  %v16 = vld [vmem:[%s0 + $0x8] sm:$0xff]
  %v17 = vld [vmem:[%s0 + $0x10] sm:$0xf]
  %v18 = vld [vmem:[%s1] sm:$0xf]
  %v19 = vld [vmem:[%s1 + $0x4] sm:$0xf]
  %v20 = vld [vmem:[%s1 + $0x8] sm:$0xf]
  %v21 = vld [vmem:[%s1 + $0xc] sm:$0xf]
  %v22 = vld [vmem:[%s1 + $0x10] sm:$0xf]
  %v23 = vld [vmem:[%s1 + $0x14] sm:$0xf]
  %v24 = vld [vmem:[%s1 + $0x18] sm:$0xf]
  %v25 = vld [vmem:[%s1 + $0x1c] sm:$0xf]
  %v26 = vld [vmem:[%s1 + $0x20] sm:$0xf]
  %v27 = vld [vmem:[%s1 + $0x24] sm:$0xf]
  %v28 = vld [vmem:[%s1 + $0x28] sm:$0xf]
  %v29 = vld [vmem:[%s1 + $0x2c] sm:$0xf]
  %v30 = vld [vmem:[%s1 + $0x30] sm:$0xf]
  %v31 = vld [vmem:[%s1 + $0x34] sm:$0xf]
  %v32 = vld [vmem:[%s1 + $0x38] sm:$0xf]
  %v33 = vld [vmem:[%s1 + $0x3c] sm:$0xf]
  %v34 = vld [vmem:[%s1 + $0x40] sm:$0xf]
  %v35 = vld [vmem:[%s1 + $0x44] sm:$0xf]
  %v36 = vld [vmem:[%s1 + $0x48] sm:$0xf]
  %v37 = vld [vmem:[%s1 + $0x4c] sm:$0xf]
  %v38 = vld [vmem:[%s1 + $0x50] sm:$0xf]
  %v39 = vld [vmem:[%s1 + $0x54] sm:$0xf]
  %v40 = vld [vmem:[%s1 + $0x58] sm:$0xf]
  %v41 = vld [vmem:[%s1 + $0x5c] sm:$0xf]
  %v42 = vld [vmem:[%s1 + $0x60] sm:$0xf]
  %v43 = vld [vmem:[%s1 + $0x64] sm:$0xf]
  %v44 = vld [vmem:[%s1 + $0x68] sm:$0xf]
  %v45 = vld [vmem:[%s1 + $0x6c] sm:$0xf]
  %v46 = vld [vmem:[%s1 + $0x70] sm:$0xf]
  %v47 = vld [vmem:[%s1 + $0x74] sm:$0xf]
  %v48 = vld [vmem:[%s1 + $0x78] sm:$0xf]
  %v49 = vld [vmem:[%s1 + $0x7c] sm:$0xf]
  %v50 = vld [vmem:[%s1 + $0x80] sm:$0xf]
  %v51 = vld [vmem:[%s1 + $0x84] sm:$0xf]
  %v52 = vld [vmem:[%s1 + $0x88] sm:$0xf]
  %v53 = vld [vmem:[%s1 + $0x8c] sm:$0xf]
  %v54 = vld [vmem:[%s1 + $0x90] sm:$0xf]
  %v55 = vld [vmem:[%s1 + $0x94] sm:$0xf]
  %v56 = vld [vmem:[%s1 + $0x98] sm:$0xf]
  %v57 = vld [vmem:[%s1 + $0x9c] sm:$0xf]
  %v58 = vld [vmem:[%s1 + $0xa0] sm:$0xf]
  %v59 = vld [vmem:[%s1 + $0xa4] sm:$0xf]
  %v60 = vld [vmem:[%s1 + $0xa8] sm:$0xf]
  %v61 = vld [vmem:[%s1 + $0xac] sm:$0xf]
  %v62 = vld [vmem:[%s1 + $0xb0] sm:$0xf]
  %v63 = vld [vmem:[%s1 + $0xb4] sm:$0xf]
  %v64 = vld [vmem:[%s1 + $0xb8] sm:$0xf]
  %v65 = vld [vmem:[%s1 + $0xbc] sm:$0xf]
  %v66 = vld [vmem:[%s1 + $0xc0] sm:$0xf]
  %v67 = vld [vmem:[%s1 + $0xc4] sm:$0xf]
  %v68 = vld [vmem:[%s1 + $0xc8] sm:$0xf]
  %v69 = vld [vmem:[%s1 + $0xcc] sm:$0xf]
  %v70 = vld [vmem:[%s1 + $0xd0] sm:$0xf]
  %v71 = vld [vmem:[%s1 + $0xd4] sm:$0xf]
  %v72 = vld [vmem:[%s1 + $0xd8] sm:$0xf]
  %v73 = vld [vmem:[%s1 + $0xdc] sm:$0xf]
  %v74 = vld [vmem:[%s1 + $0xe0] sm:$0xf]
  %v75 = vld [vmem:[%s1 + $0xe4] sm:$0xf]
  %v76 = vld [vmem:[%s1 + $0xe8] sm:$0xf]
  %v77 = vld [vmem:[%s1 + $0xec] sm:$0xf]
  %v78 = vld [vmem:[%s1 + $0xf0] sm:$0xf]
  %v79 = vld [vmem:[%s1 + $0xf4] sm:$0xf]
  %v80 = vld [vmem:[%s1 + $0xf8] sm:$0xf]
  %v81 = vld [vmem:[%s1 + $0xfc] sm:$0xf]
  %v82 = vld [vmem:[%s1 + $0x100] sm:$0xf]
  %v83 = vld [vmem:[%s1 + $0x104] sm:$0xf]
  %v84 = vld [vmem:[%s1 + $0x108] sm:$0xf]
  %v85 = vld [vmem:[%s1 + $0x10c] sm:$0xf]
  %v86 = vld [vmem:[%s1 + $0x110] sm:$0xf]
  %v87 = vld [vmem:[%s1 + $0x114] sm:$0xf]
  %v88 = vld [vmem:[%s1 + $0x118] sm:$0xf]
  %v89 = vld [vmem:[%s1 + $0x11c] sm:$0xf]
  %v90 = vld [vmem:[%s1 + $0x120] sm:$0xf]
  %v91 = vld [vmem:[%s1 + $0x124] sm:$0x3]
  %v92 = vld [vmem:[%s2] sm:$0x1]
  %v94 = vlaneseq
  %v95 = vshrl.u32 %v94, 7
  %v96 = vsub.s32 0, %v95
  %v97 = vrot.slane %v92, %v96
  %v102 = vunpack.c.l.b16 %v15
  %v103 = vunpack.c.h.b16 %v15
  %v104 = vunpack.c.l.b16 %v16
  %v105 = vunpack.c.h.b16 %v16
  %v106 = vunpack.c.l.b16 %v17
  %v107 = vpack.c.b16 %v102, %v102
  %v108 = vpack.c.b16 %v103, %v103
  %v109 = vpack.c.b16 %v104, %v104
  %v110 = vpack.c.b16 %v105, %v105
  %v111 = vpack.c.b16 %v106, %v106
  %v190 = vunpack.c.l.b16 %v18
  %v191 = vunpack.c.l.b16 %v19
  %v192 = vunpack.c.l.b16 %v20
  %v193 = vunpack.c.l.b16 %v21
  %v194 = vunpack.c.l.b16 %v22
  %v195 = vunpack.c.l.b16 %v23
  %v196 = vunpack.c.l.b16 %v24
  %v197 = vunpack.c.l.b16 %v25
  %v198 = vunpack.c.l.b16 %v26
  %v199 = vunpack.c.l.b16 %v27
  %v200 = vunpack.c.l.b16 %v28
  %v201 = vunpack.c.l.b16 %v29
  %v202 = vunpack.c.l.b16 %v30
  %v203 = vunpack.c.l.b16 %v31
  %v204 = vunpack.c.l.b16 %v32
  %v205 = vunpack.c.l.b16 %v33
  %v206 = vunpack.c.l.b16 %v34
  %v207 = vunpack.c.l.b16 %v35
  %v208 = vunpack.c.l.b16 %v36
  %v209 = vunpack.c.l.b16 %v37
  %v210 = vunpack.c.l.b16 %v38
  %v211 = vunpack.c.l.b16 %v39
  %v212 = vunpack.c.l.b16 %v40
  %v213 = vunpack.c.l.b16 %v41
  %v214 = vunpack.c.l.b16 %v42
  %v215 = vunpack.c.l.b16 %v43
  %v216 = vunpack.c.l.b16 %v44
  %v217 = vunpack.c.l.b16 %v45
  %v218 = vunpack.c.l.b16 %v46
  %v219 = vunpack.c.l.b16 %v47
  %v220 = vunpack.c.l.b16 %v48
  %v221 = vunpack.c.l.b16 %v49
  %v222 = vunpack.c.l.b16 %v50
  %v223 = vunpack.c.l.b16 %v51
  %v224 = vunpack.c.l.b16 %v52
  %v225 = vunpack.c.l.b16 %v53
  %v226 = vunpack.c.l.b16 %v54
  %v227 = vunpack.c.l.b16 %v55
  %v228 = vunpack.c.l.b16 %v56
  %v229 = vunpack.c.l.b16 %v57
  %v230 = vunpack.c.l.b16 %v58
  %v231 = vunpack.c.l.b16 %v59
  %v232 = vunpack.c.l.b16 %v60
  %v233 = vunpack.c.l.b16 %v61
  %v234 = vunpack.c.l.b16 %v62
  %v235 = vunpack.c.l.b16 %v63
  %v236 = vunpack.c.l.b16 %v64
  %v237 = vunpack.c.l.b16 %v65
  %v238 = vunpack.c.l.b16 %v66
  %v239 = vunpack.c.l.b16 %v67
  %v240 = vunpack.c.l.b16 %v68
  %v241 = vunpack.c.l.b16 %v69
  %v242 = vunpack.c.l.b16 %v70
  %v243 = vunpack.c.l.b16 %v71
  %v244 = vunpack.c.l.b16 %v72
  %v245 = vunpack.c.l.b16 %v73
  %v246 = vunpack.c.l.b16 %v74
  %v247 = vunpack.c.l.b16 %v75
  %v248 = vunpack.c.l.b16 %v76
  %v249 = vunpack.c.l.b16 %v77
  %v250 = vunpack.c.l.b16 %v78
  %v251 = vunpack.c.l.b16 %v79
  %v252 = vunpack.c.l.b16 %v80
  %v253 = vunpack.c.l.b16 %v81
  %v254 = vunpack.c.l.b16 %v82
  %v255 = vunpack.c.l.b16 %v83
  %v256 = vunpack.c.l.b16 %v84
  %v257 = vunpack.c.l.b16 %v85
  %v258 = vunpack.c.l.b16 %v86
  %v259 = vunpack.c.l.b16 %v87
  %v260 = vunpack.c.l.b16 %v88
  %v261 = vunpack.c.l.b16 %v89
  %v262 = vunpack.c.l.b16 %v90
  %v263 = vunpack.c.l.b16 %v91
  %v264 = vpack.c.b16 %v191, %v190
  %v265 = vpack.c.b16 %v193, %v192
  %v266 = vpack.c.b16 %v195, %v194
  %v267 = vpack.c.b16 %v197, %v196
  %v268 = vpack.c.b16 %v199, %v198
  %v269 = vpack.c.b16 %v201, %v200
  %v270 = vpack.c.b16 %v203, %v202
  %v271 = vpack.c.b16 %v205, %v204
  %v272 = vpack.c.b16 %v207, %v206
  %v273 = vpack.c.b16 %v209, %v208
  %v274 = vpack.c.b16 %v211, %v210
  %v275 = vpack.c.b16 %v213, %v212
  %v276 = vpack.c.b16 %v215, %v214
  %v277 = vpack.c.b16 %v217, %v216
  %v278 = vpack.c.b16 %v219, %v218
  %v279 = vpack.c.b16 %v221, %v220
  %v280 = vpack.c.b16 %v223, %v222
  %v281 = vpack.c.b16 %v225, %v224
  %v282 = vpack.c.b16 %v227, %v226
  %v283 = vpack.c.b16 %v229, %v228
  %v284 = vpack.c.b16 %v231, %v230
  %v285 = vpack.c.b16 %v233, %v232
  %v286 = vpack.c.b16 %v235, %v234
  %v287 = vpack.c.b16 %v237, %v236
  %v288 = vpack.c.b16 %v239, %v238
  %v289 = vpack.c.b16 %v241, %v240
  %v290 = vpack.c.b16 %v243, %v242
  %v291 = vpack.c.b16 %v245, %v244
  %v292 = vpack.c.b16 %v247, %v246
  %v293 = vpack.c.b16 %v249, %v248
  %v294 = vpack.c.b16 %v251, %v250
  %v295 = vpack.c.b16 %v253, %v252
  %v296 = vpack.c.b16 %v255, %v254
  %v297 = vpack.c.b16 %v257, %v256
  %v298 = vpack.c.b16 %v259, %v258
  %v299 = vpack.c.b16 %v261, %v260
  %v300 = vpack.c.b16 %v263, %v262
  %vm337 = vcmask 621568
  %v339 = vsel %vm337, %v111, 0
  %vm341 = vcmask 1045504
  %v343 = vsel %vm341, %v300, 0
  %345 = vmatprep.subr.bf16.mxu0 0
  %346 = vmatpush1.bf16.msra.mxu0 %v264
  %347 = vmatprep.subr.bf16.mxu0 0
  %348 = vmatpush1.bf16.msra.mxu0 %v265
  %349 = vmatprep.subr.bf16.mxu0 0
  %350 = vmatpush1.bf16.msra.mxu0 %v266
  %351 = vmatprep.subr.bf16.mxu0 0
  %352 = vmatpush1.bf16.msra.mxu0 %v267
  %353 = vmatprep.subr.bf16.mxu0 0
  %354 = vmatpush1.bf16.msra.mxu0 %v268
  %355 = vmatprep.subr.bf16.mxu0 0
  %356 = vmatpush1.bf16.msra.mxu0 %v269
  %357 = vmatprep.subr.bf16.mxu0 0
  %358 = vmatpush1.bf16.msra.mxu0 %v270
  %359 = vmatprep.subr.bf16.mxu0 0
  %360 = vmatpush1.bf16.msra.mxu0 %v271
  %361 = vmatprep.subr.bf16.mxu0 0
  %362 = vmatpush1.bf16.msra.mxu0 %v272
  %363 = vmatprep.subr.bf16.mxu0 0
  %364 = vmatpush1.bf16.msra.mxu0 %v273
  %365 = vmatprep.subr.bf16.mxu0 0
  %366 = vmatpush1.bf16.msra.mxu0 %v274
  %367 = vmatprep.subr.bf16.mxu0 0
  %368 = vmatpush1.bf16.msra.mxu0 %v275
  %369 = vmatprep.subr.bf16.mxu0 0
  %370 = vmatpush1.bf16.msra.mxu0 %v276
  %371 = vmatprep.subr.bf16.mxu0 0
  %372 = vmatpush1.bf16.msra.mxu0 %v277
  %373 = vmatprep.subr.bf16.mxu0 0
  %374 = vmatpush1.bf16.msra.mxu0 %v278
  %375 = vmatprep.subr.bf16.mxu0 0
  %376 = vmatpush1.bf16.msra.mxu0 %v279
  %377 = vmatprep.mubr.bf16.mxu0 %v108
  %378 = vmatmul.mubr.bf16.gmra.mrb[0].mxu0 %v107
  %v379 = vpop.f32.mrb[0].mxu0
  %v380 = vadd.f32 %v97, %v379
  %v381 = vpop.f32.mrb[0].mxu0
  %v382 = vpop.f32.mrb[0].mxu0
  %v383 = vpop.f32.mrb[0].mxu0
  %384 = vdwg.mxu0
  %385 = vmatprep.subr.bf16.mxu0 0
  %386 = vmatpush1.bf16.msra.mxu0 %v280
  %387 = vmatprep.subr.bf16.mxu0 0
  %388 = vmatpush1.bf16.msra.mxu0 %v281
  %389 = vmatprep.subr.bf16.mxu0 0
  %390 = vmatpush1.bf16.msra.mxu0 %v282
  %391 = vmatprep.subr.bf16.mxu0 0
  %392 = vmatpush1.bf16.msra.mxu0 %v283
  %393 = vmatprep.subr.bf16.mxu0 0
  %394 = vmatpush1.bf16.msra.mxu0 %v284
  %395 = vmatprep.subr.bf16.mxu0 0
  %396 = vmatpush1.bf16.msra.mxu0 %v285
  %397 = vmatprep.subr.bf16.mxu0 0
  %398 = vmatpush1.bf16.msra.mxu0 %v286
  %399 = vmatprep.subr.bf16.mxu0 0
  %400 = vmatpush1.bf16.msra.mxu0 %v287
  %401 = vmatprep.subr.bf16.mxu0 0
  %402 = vmatpush1.bf16.msra.mxu0 %v288
  %403 = vmatprep.subr.bf16.mxu0 0
  %404 = vmatpush1.bf16.msra.mxu0 %v289
  %405 = vmatprep.subr.bf16.mxu0 0
  %406 = vmatpush1.bf16.msra.mxu0 %v290
  %407 = vmatprep.subr.bf16.mxu0 0
  %408 = vmatpush1.bf16.msra.mxu0 %v291
  %409 = vmatprep.subr.bf16.mxu0 0
  %410 = vmatpush1.bf16.msra.mxu0 %v292
  %411 = vmatprep.subr.bf16.mxu0 0
  %412 = vmatpush1.bf16.msra.mxu0 %v293
  %413 = vmatprep.subr.bf16.mxu0 0
  %414 = vmatpush1.bf16.msra.mxu0 %v294
  %415 = vmatprep.subr.bf16.mxu0 0
  %416 = vmatpush1.bf16.msra.mxu0 %v295
  %417 = vmatprep.mubr.bf16.mxu0 %v110
  %418 = vmatmul.mubr.bf16.gmra.mrb[0].mxu0 %v109
  %v419 = vpop.f32.mrb[0].mxu0
  %v420 = vadd.f32 %v380, %v419
  %v421 = vpop.f32.mrb[0].mxu0
  %v422 = vpop.f32.mrb[0].mxu0
  %v423 = vpop.f32.mrb[0].mxu0
  %424 = vdwg.mxu0
  %425 = vmatprep.subr.bf16.mxu0 0
  %426 = vmatpush1.bf16.msra.mxu0 %v296
  %427 = vmatprep.subr.bf16.mxu0 0
  %428 = vmatpush1.bf16.msra.mxu0 %v297
  %429 = vmatprep.subr.bf16.mxu0 0
  %430 = vmatpush1.bf16.msra.mxu0 %v298
  %431 = vmatprep.subr.bf16.mxu0 0
  %432 = vmatpush1.bf16.msra.mxu0 %v299
  %433 = vmatprep.subr.bf16.mxu0 0
  %434 = vmatpush1.bf16.msra.mxu0 %v343
  %435 = vmatprep.subr.bf16.mxu0 0
  %436 = vmatpush1.bf16.msra.mxu0 0
  %437 = vmatprep.subr.bf16.mxu0 0
  %438 = vmatpush1.bf16.msra.mxu0 0
  %439 = vmatprep.subr.bf16.mxu0 0
  %440 = vmatpush1.bf16.msra.mxu0 0
  %441 = vmatprep.subr.bf16.mxu0 0
  %442 = vmatpush1.bf16.msra.mxu0 0
  %443 = vmatprep.subr.bf16.mxu0 0
  %444 = vmatpush1.bf16.msra.mxu0 0
  %445 = vmatprep.subr.bf16.mxu0 0
  %446 = vmatpush1.bf16.msra.mxu0 0
  %447 = vmatprep.subr.bf16.mxu0 0
  %448 = vmatpush1.bf16.msra.mxu0 0
  %449 = vmatprep.subr.bf16.mxu0 0
  %450 = vmatpush1.bf16.msra.mxu0 0
  %451 = vmatprep.subr.bf16.mxu0 0
  %452 = vmatpush1.bf16.msra.mxu0 0
  %453 = vmatprep.subr.bf16.mxu0 0
  %454 = vmatpush1.bf16.msra.mxu0 0
  %455 = vmatprep.subr.bf16.mxu0 0
  %456 = vmatpush1.bf16.msra.mxu0 0
  %457 = vmatprep.mubr.bf16.mxu0 0
  %458 = vmatmul.mubr.bf16.gmra.mrb[0].mxu0 %v339
  %v459 = vpop.f32.mrb[0].mxu0
  %v460 = vadd.f32 %v420, %v459
  %v461 = vpop.f32.mrb[0].mxu0
  %v462 = vpop.f32.mrb[0].mxu0
  %v463 = vpop.f32.mrb[0].mxu0
  %464 = vdwg.mxu0
  %v465 = vpack.c.bf16 %v460, %v460
  %466 = vst [vmem:[%s3] sm:$0xf] %v465
  // Predicated region
  $region14: #{get_intermediate_layers.18} parent=0 // pred_check
    _
  $region15: #{get_intermediate_layers.18} parent=0 // pred_check_branch
    %468 = sbr.rel (0) target = $region17
  $region16: #{get_intermediate_layers.18} parent=0 // pred_region
    _
  $region17: #{get_intermediate_layers.18} parent=0 // pred_fallthru
    _
  // Predicated region
  $region18: #{get_intermediate_layers.18} parent=0 // pred_check
    _
  $region19: #{get_intermediate_layers.18} parent=0 // pred_check_branch
    %470 = sbr.rel (0) target = $region21
  $region20: #{get_intermediate_layers.18} parent=0 // pred_region
    _
  $region21: #{get_intermediate_layers.18} parent=0 // pred_fallthru
    _

// kernel: get_intermediate_layers.35
$region0: #{get_intermediate_layers.35}
  #allocation0 [shape = 'u32[]', space=smem, size = 0x4, offset = 0x4, fixed_abs, tag = 'smem constant byte address 0x4 - core index']
  #allocation1 [shape = 'u32[144,128]{1,0:T(1,128)}', space=vmem, size = 0x12000, scoped, tag = 'internal scratch']
  %s0 = inlined_call_operand.vmem [shape: bf16[16,128], index: 0, kind: input, shape index: {}]
  %s1 = inlined_call_operand.vmem [shape: f32[1,128], index: 1, kind: input, shape index: {}]
  %s2 = inlined_call_operand.vmem [shape: f32[1,128], index: 2, kind: input, shape index: {}]
  %s3 = inlined_call_operand.vmem [shape: f32[16,128], index: 3, kind: output, shape index: {}]
  %s4 = sld [smem:[#allocation0]]
  $region22: #{get_intermediate_layers.35} parent=0
    _
  %s6 = ssub.s32 1, %s4
  %s7 = scalar_select 0, %s6, %s4
  // Predicated region
  $region2: #{get_intermediate_layers.35} parent=0 // pred_check
    _
  $region3: #{get_intermediate_layers.35} parent=0 // pred_check_branch
    %9 = sbr.rel (0) target = $region5
  $region4: #{get_intermediate_layers.35} parent=0 // pred_region
    _
  $region5: #{get_intermediate_layers.35} parent=0 // pred_fallthru
    _
  // Predicated region
  $region6: #{get_intermediate_layers.35} parent=0 // pred_check
    _
  $region7: #{get_intermediate_layers.35} parent=0 // pred_check_branch
    %11 = sbr.rel (0) target = $region9
  $region8: #{get_intermediate_layers.35} parent=0 // pred_region
    _
  $region9: #{get_intermediate_layers.35} parent=0 // pred_fallthru
    _
  // Predicated region
  $region10: #{get_intermediate_layers.35} parent=0 // pred_check
    _
  $region11: #{get_intermediate_layers.35} parent=0 // pred_check_branch
    %13 = sbr.rel (0) target = $region13
  $region12: #{get_intermediate_layers.35} parent=0 // pred_region
    _
  $region13: #{get_intermediate_layers.35} parent=0 // pred_fallthru
    _
  %v14 = vld [vmem:[%s0] sm:$0xf]
  %v15 = vld [vmem:[%s0 + $0x4] sm:$0xf]
  %v16 = vunpack.c.l.bf16 %v14
  %v17 = vunpack.c.l.bf16 %v15
  %18 = vadd.xlane.f32.xlu0 %v16
  %v19 = vpop.xlane.xlu0 %18
  %20 = vadd.xlane.f32.xlu0 %v17
  %v21 = vpop.xlane.xlu0 %20
  %v22 = vrcp.pop 128.0
  %v23 = vmul.f32 %v19, %v22
  %v24 = vmul.f32 %v21, %v22
  %v25 = vsub.f32 %v16, %v23
  %v26 = vsub.f32 %v17, %v24
  %v27 = vmul.f32 %v25, %v25
  %v28 = vmul.f32 %v26, %v26
  %29 = vadd.xlane.f32.xlu0 %v27
  %v30 = vpop.xlane.xlu0 %29
  %31 = vadd.xlane.f32.xlu0 %v28
  %v32 = vpop.xlane.xlu0 %31
  %v33 = vmul.f32 %v30, %v22
  %v34 = vmul.f32 %v32, %v22
  %v35 = vadd.f32 %v33, 1e-06
  %v36 = vadd.f32 %v34, 1e-06
  %v37 = vrsqrt.pop %v35
  %v38 = vrsqrt.pop %v36
  %v39 = vmul.f32 %v25, %v37
  %v40 = vmul.f32 %v26, %v38
  %v41 = vld [vmem:[%s1] sm:$0x1]
  %v43 = vlaneseq
  %v44 = vshrl.u32 %v43, 7
  %v45 = vsub.s32 0, %v44
  %v46 = vrot.slane %v41, %v45
  %v48 = vmul.f32 %v39, %v46
  %v49 = vmul.f32 %v40, %v46
  %v50 = vld [vmem:[%s2] sm:$0x1]
  %v52 = vlaneseq
  %v53 = vshrl.u32 %v52, 7
  %v54 = vsub.s32 0, %v53
  %v55 = vrot.slane %v50, %v54
  %v57 = vadd.f32 %v48, %v55
  %v58 = vadd.f32 %v49, %v55
  %59 = vst [vmem:[%s3] sm:$0xff] %v57
  %60 = vst [vmem:[%s3 + $0x8] sm:$0xff] %v58
  // Predicated region
  $region14: #{get_intermediate_layers.35} parent=0 // pred_check
    _
  $region15: #{get_intermediate_layers.35} parent=0 // pred_check_branch
    %62 = sbr.rel (0) target = $region17
  $region16: #{get_intermediate_layers.35} parent=0 // pred_region
    _
  $region17: #{get_intermediate_layers.35} parent=0 // pred_fallthru
    _
  // Predicated region
  $region18: #{get_intermediate_layers.35} parent=0 // pred_check
    _
  $region19: #{get_intermediate_layers.35} parent=0 // pred_check_branch
    %64 = sbr.rel (0) target = $region21
  $region20: #{get_intermediate_layers.35} parent=0 // pred_region
    _
  $region21: #{get_intermediate_layers.35} parent=0 // pred_fallthru
    _

// kernel: get_intermediate_layers.23
$region0: #{get_intermediate_layers.23}
  #allocation0 [shape = 'u32[]', space=smem, size = 0x4, offset = 0x4, fixed_abs, tag = 'smem constant byte address 0x4 - core index']
  #allocation1 [shape = 'u32[144,128]{1,0:T(1,128)}', space=vmem, size = 0x12000, scoped, tag = 'internal scratch']
  %s0 = inlined_call_operand.vmem [shape: bf16[16,512], index: 0, kind: input, shape index: {}]
  %s1 = inlined_call_operand.vmem [shape: bf16[512,128], index: 1, kind: input, shape index: {}]
  %s2 = inlined_call_operand.vmem [shape: f32[1,128], index: 2, kind: input, shape index: {}]
  %s3 = inlined_call_operand.vmem [shape: bf16[16,128], index: 3, kind: input, shape index: {}]
  %s4 = inlined_call_operand.vmem [shape: bf16[16,128], index: 4, kind: output, shape index: {}]
  %s5 = sld [smem:[#allocation0]]
  $region26: #{get_intermediate_layers.23} parent=0
    _
  %s7 = ssub.s32 1, %s5
  %s8 = scalar_select 0, %s7, %s5
  // Predicated region
  $region2: #{get_intermediate_layers.23} parent=0 // pred_check
    _
  $region3: #{get_intermediate_layers.23} parent=0 // pred_check_branch
    %10 = sbr.rel (0) target = $region5
  $region4: #{get_intermediate_layers.23} parent=0 // pred_region
    _
  $region5: #{get_intermediate_layers.23} parent=0 // pred_fallthru
    _
  // Predicated region
  $region6: #{get_intermediate_layers.23} parent=0 // pred_check
    _
  $region7: #{get_intermediate_layers.23} parent=0 // pred_check_branch
    %12 = sbr.rel (0) target = $region9
  $region8: #{get_intermediate_layers.23} parent=0 // pred_region
    _
  $region9: #{get_intermediate_layers.23} parent=0 // pred_fallthru
    _
  // Predicated region
  $region10: #{get_intermediate_layers.23} parent=0 // pred_check
    _
  $region11: #{get_intermediate_layers.23} parent=0 // pred_check_branch
    %14 = sbr.rel (0) target = $region13
  $region12: #{get_intermediate_layers.23} parent=0 // pred_region
    _
  $region13: #{get_intermediate_layers.23} parent=0 // pred_fallthru
    _
  // Predicated region
  $region14: #{get_intermediate_layers.23} parent=0 // pred_check
    _
  $region15: #{get_intermediate_layers.23} parent=0 // pred_check_branch
    %16 = sbr.rel (0) target = $region17
  $region16: #{get_intermediate_layers.23} parent=0 // pred_region
    _
  $region17: #{get_intermediate_layers.23} parent=0 // pred_fallthru
    _
  %v18 = vld [vmem:[%s0] sm:$0xff]
  %v19 = vld [vmem:[%s0 + $0x8] sm:$0xff]
  %v20 = vld [vmem:[%s0 + $0x10] sm:$0xff]
  %v21 = vld [vmem:[%s0 + $0x18] sm:$0xff]
  %v22 = vld [vmem:[%s1] sm:$0xf]
  %v23 = vld [vmem:[%s1 + $0x4] sm:$0xf]
  %v24 = vld [vmem:[%s1 + $0x8] sm:$0xf]
  %v25 = vld [vmem:[%s1 + $0xc] sm:$0xf]
  %v26 = vld [vmem:[%s1 + $0x10] sm:$0xf]
  %v27 = vld [vmem:[%s1 + $0x14] sm:$0xf]
  %v28 = vld [vmem:[%s1 + $0x18] sm:$0xf]
  %v29 = vld [vmem:[%s1 + $0x1c] sm:$0xf]
  %v30 = vld [vmem:[%s1 + $0x20] sm:$0xf]
  %v31 = vld [vmem:[%s1 + $0x24] sm:$0xf]
  %v32 = vld [vmem:[%s1 + $0x28] sm:$0xf]
  %v33 = vld [vmem:[%s1 + $0x2c] sm:$0xf]
  %v34 = vld [vmem:[%s1 + $0x30] sm:$0xf]
  %v35 = vld [vmem:[%s1 + $0x34] sm:$0xf]
  %v36 = vld [vmem:[%s1 + $0x38] sm:$0xf]
  %v37 = vld [vmem:[%s1 + $0x3c] sm:$0xf]
  %v38 = vld [vmem:[%s1 + $0x40] sm:$0xf]
  %v39 = vld [vmem:[%s1 + $0x44] sm:$0xf]
  %v40 = vld [vmem:[%s1 + $0x48] sm:$0xf]
  %v41 = vld [vmem:[%s1 + $0x4c] sm:$0xf]
  %v42 = vld [vmem:[%s1 + $0x50] sm:$0xf]
  %v43 = vld [vmem:[%s1 + $0x54] sm:$0xf]
  %v44 = vld [vmem:[%s1 + $0x58] sm:$0xf]
  %v45 = vld [vmem:[%s1 + $0x5c] sm:$0xf]
  %v46 = vld [vmem:[%s1 + $0x60] sm:$0xf]
  %v47 = vld [vmem:[%s1 + $0x64] sm:$0xf]
  %v48 = vld [vmem:[%s1 + $0x68] sm:$0xf]
  %v49 = vld [vmem:[%s1 + $0x6c] sm:$0xf]
  %v50 = vld [vmem:[%s1 + $0x70] sm:$0xf]
  %v51 = vld [vmem:[%s1 + $0x74] sm:$0xf]
  %v52 = vld [vmem:[%s1 + $0x78] sm:$0xf]
  %v53 = vld [vmem:[%s1 + $0x7c] sm:$0xf]
  %v54 = vld [vmem:[%s1 + $0x80] sm:$0xf]
  %v55 = vld [vmem:[%s1 + $0x84] sm:$0xf]
  %v56 = vld [vmem:[%s1 + $0x88] sm:$0xf]
  %v57 = vld [vmem:[%s1 + $0x8c] sm:$0xf]
  %v58 = vld [vmem:[%s1 + $0x90] sm:$0xf]
  %v59 = vld [vmem:[%s1 + $0x94] sm:$0xf]
  %v60 = vld [vmem:[%s1 + $0x98] sm:$0xf]
  %v61 = vld [vmem:[%s1 + $0x9c] sm:$0xf]
  %v62 = vld [vmem:[%s1 + $0xa0] sm:$0xf]
  %v63 = vld [vmem:[%s1 + $0xa4] sm:$0xf]
  %v64 = vld [vmem:[%s1 + $0xa8] sm:$0xf]
  %v65 = vld [vmem:[%s1 + $0xac] sm:$0xf]
  %v66 = vld [vmem:[%s1 + $0xb0] sm:$0xf]
  %v67 = vld [vmem:[%s1 + $0xb4] sm:$0xf]
  %v68 = vld [vmem:[%s1 + $0xb8] sm:$0xf]
  %v69 = vld [vmem:[%s1 + $0xbc] sm:$0xf]
  %v70 = vld [vmem:[%s1 + $0xc0] sm:$0xf]
  %v71 = vld [vmem:[%s1 + $0xc4] sm:$0xf]
  %v72 = vld [vmem:[%s1 + $0xc8] sm:$0xf]
  %v73 = vld [vmem:[%s1 + $0xcc] sm:$0xf]
  %v74 = vld [vmem:[%s1 + $0xd0] sm:$0xf]
  %v75 = vld [vmem:[%s1 + $0xd4] sm:$0xf]
  %v76 = vld [vmem:[%s1 + $0xd8] sm:$0xf]
  %v77 = vld [vmem:[%s1 + $0xdc] sm:$0xf]
  %v78 = vld [vmem:[%s1 + $0xe0] sm:$0xf]
  %v79 = vld [vmem:[%s1 + $0xe4] sm:$0xf]
  %v80 = vld [vmem:[%s1 + $0xe8] sm:$0xf]
  %v81 = vld [vmem:[%s1 + $0xec] sm:$0xf]
  %v82 = vld [vmem:[%s1 + $0xf0] sm:$0xf]
  %v83 = vld [vmem:[%s1 + $0xf4] sm:$0xf]
  %v84 = vld [vmem:[%s1 + $0xf8] sm:$0xf]
  %v85 = vld [vmem:[%s1 + $0xfc] sm:$0xf]
  %v86 = vld [vmem:[%s2] sm:$0x1]
  %v88 = vlaneseq
  %v89 = vshrl.u32 %v88, 7
  %v90 = vsub.s32 0, %v89
  %v91 = vrot.slane %v86, %v90
  %v97 = vunpack.c.l.b16 %v18
  %v98 = vunpack.c.h.b16 %v18
  %v99 = vunpack.c.l.b16 %v19
  %v100 = vunpack.c.h.b16 %v19
  %v101 = vunpack.c.l.b16 %v20
  %v102 = vunpack.c.h.b16 %v20
  %v103 = vunpack.c.l.b16 %v21
  %v104 = vunpack.c.h.b16 %v21
  %v105 = vpack.c.b16 %v101, %v97
  %v106 = vpack.c.b16 %v102, %v98
  %v107 = vpack.c.b16 %v103, %v99
  %v108 = vpack.c.b16 %v104, %v100
  %v177 = vunpack.c.l.b16 %v22
  %v178 = vunpack.c.l.b16 %v23
  %v179 = vunpack.c.l.b16 %v24
  %v180 = vunpack.c.l.b16 %v25
  %v181 = vunpack.c.l.b16 %v26
  %v182 = vunpack.c.l.b16 %v27
  %v183 = vunpack.c.l.b16 %v28
  %v184 = vunpack.c.l.b16 %v29
  %v185 = vunpack.c.l.b16 %v30
  %v186 = vunpack.c.l.b16 %v31
  %v187 = vunpack.c.l.b16 %v32
  %v188 = vunpack.c.l.b16 %v33
  %v189 = vunpack.c.l.b16 %v34
  %v190 = vunpack.c.l.b16 %v35
  %v191 = vunpack.c.l.b16 %v36
  %v192 = vunpack.c.l.b16 %v37
  %v193 = vunpack.c.l.b16 %v38
  %v194 = vunpack.c.l.b16 %v39
  %v195 = vunpack.c.l.b16 %v40
  %v196 = vunpack.c.l.b16 %v41
  %v197 = vunpack.c.l.b16 %v42
  %v198 = vunpack.c.l.b16 %v43
  %v199 = vunpack.c.l.b16 %v44
  %v200 = vunpack.c.l.b16 %v45
  %v201 = vunpack.c.l.b16 %v46
  %v202 = vunpack.c.l.b16 %v47
  %v203 = vunpack.c.l.b16 %v48
  %v204 = vunpack.c.l.b16 %v49
  %v205 = vunpack.c.l.b16 %v50
  %v206 = vunpack.c.l.b16 %v51
  %v207 = vunpack.c.l.b16 %v52
  %v208 = vunpack.c.l.b16 %v53
  %v209 = vunpack.c.l.b16 %v54
  %v210 = vunpack.c.l.b16 %v55
  %v211 = vunpack.c.l.b16 %v56
  %v212 = vunpack.c.l.b16 %v57
  %v213 = vunpack.c.l.b16 %v58
  %v214 = vunpack.c.l.b16 %v59
  %v215 = vunpack.c.l.b16 %v60
  %v216 = vunpack.c.l.b16 %v61
  %v217 = vunpack.c.l.b16 %v62
  %v218 = vunpack.c.l.b16 %v63
  %v219 = vunpack.c.l.b16 %v64
  %v220 = vunpack.c.l.b16 %v65
  %v221 = vunpack.c.l.b16 %v66
  %v222 = vunpack.c.l.b16 %v67
  %v223 = vunpack.c.l.b16 %v68
  %v224 = vunpack.c.l.b16 %v69
  %v225 = vunpack.c.l.b16 %v70
  %v226 = vunpack.c.l.b16 %v71
  %v227 = vunpack.c.l.b16 %v72
  %v228 = vunpack.c.l.b16 %v73
  %v229 = vunpack.c.l.b16 %v74
  %v230 = vunpack.c.l.b16 %v75
  %v231 = vunpack.c.l.b16 %v76
  %v232 = vunpack.c.l.b16 %v77
  %v233 = vunpack.c.l.b16 %v78
  %v234 = vunpack.c.l.b16 %v79
  %v235 = vunpack.c.l.b16 %v80
  %v236 = vunpack.c.l.b16 %v81
  %v237 = vunpack.c.l.b16 %v82
  %v238 = vunpack.c.l.b16 %v83
  %v239 = vunpack.c.l.b16 %v84
  %v240 = vunpack.c.l.b16 %v85
  %v241 = vpack.c.b16 %v178, %v177
  %v242 = vpack.c.b16 %v180, %v179
  %v243 = vpack.c.b16 %v182, %v181
  %v244 = vpack.c.b16 %v184, %v183
  %v245 = vpack.c.b16 %v186, %v185
  %v246 = vpack.c.b16 %v188, %v187
  %v247 = vpack.c.b16 %v190, %v189
  %v248 = vpack.c.b16 %v192, %v191
  %v249 = vpack.c.b16 %v194, %v193
  %v250 = vpack.c.b16 %v196, %v195
  %v251 = vpack.c.b16 %v198, %v197
  %v252 = vpack.c.b16 %v200, %v199
  %v253 = vpack.c.b16 %v202, %v201
  %v254 = vpack.c.b16 %v204, %v203
  %v255 = vpack.c.b16 %v206, %v205
  %v256 = vpack.c.b16 %v208, %v207
  %v257 = vpack.c.b16 %v210, %v209
  %v258 = vpack.c.b16 %v212, %v211
  %v259 = vpack.c.b16 %v214, %v213
  %v260 = vpack.c.b16 %v216, %v215
  %v261 = vpack.c.b16 %v218, %v217
  %v262 = vpack.c.b16 %v220, %v219
  %v263 = vpack.c.b16 %v222, %v221
  %v264 = vpack.c.b16 %v224, %v223
  %v265 = vpack.c.b16 %v226, %v225
  %v266 = vpack.c.b16 %v228, %v227
  %v267 = vpack.c.b16 %v230, %v229
  %v268 = vpack.c.b16 %v232, %v231
  %v269 = vpack.c.b16 %v234, %v233
  %v270 = vpack.c.b16 %v236, %v235
  %v271 = vpack.c.b16 %v238, %v237
  %v272 = vpack.c.b16 %v240, %v239
  %305 = vmatprep.subr.bf16.mxu0 0
  %306 = vmatpush1.bf16.msra.mxu0 %v241
  %307 = vmatprep.subr.bf16.mxu0 0
  %308 = vmatpush1.bf16.msra.mxu0 %v242
  %309 = vmatprep.subr.bf16.mxu0 0
  %310 = vmatpush1.bf16.msra.mxu0 %v243
  %311 = vmatprep.subr.bf16.mxu0 0
  %312 = vmatpush1.bf16.msra.mxu0 %v244
  %313 = vmatprep.subr.bf16.mxu0 0
  %314 = vmatpush1.bf16.msra.mxu0 %v245
  %315 = vmatprep.subr.bf16.mxu0 0
  %316 = vmatpush1.bf16.msra.mxu0 %v246
  %317 = vmatprep.subr.bf16.mxu0 0
  %318 = vmatpush1.bf16.msra.mxu0 %v247
  %319 = vmatprep.subr.bf16.mxu0 0
  %320 = vmatpush1.bf16.msra.mxu0 %v248
  %321 = vmatprep.subr.bf16.mxu0 0
  %322 = vmatpush1.bf16.msra.mxu0 %v249
  %323 = vmatprep.subr.bf16.mxu0 0
  %324 = vmatpush1.bf16.msra.mxu0 %v250
  %325 = vmatprep.subr.bf16.mxu0 0
  %326 = vmatpush1.bf16.msra.mxu0 %v251
  %327 = vmatprep.subr.bf16.mxu0 0
  %328 = vmatpush1.bf16.msra.mxu0 %v252
  %329 = vmatprep.subr.bf16.mxu0 0
  %330 = vmatpush1.bf16.msra.mxu0 %v253
  %331 = vmatprep.subr.bf16.mxu0 0
  %332 = vmatpush1.bf16.msra.mxu0 %v254
  %333 = vmatprep.subr.bf16.mxu0 0
  %334 = vmatpush1.bf16.msra.mxu0 %v255
  %335 = vmatprep.subr.bf16.mxu0 0
  %336 = vmatpush1.bf16.msra.mxu0 %v256
  %337 = vmatprep.mubr.bf16.mxu0 %v106
  %338 = vmatmul.mubr.bf16.gmra.mrb[0].mxu0 %v105
  %v339 = vpop.f32.mrb[0].mxu0
  %v340 = vadd.f32 %v91, %v339
  %v341 = vpop.f32.mrb[0].mxu0
  %v342 = vpop.f32.mrb[0].mxu0
  %v343 = vadd.f32 %v91, %v342
  %v344 = vpop.f32.mrb[0].mxu0
  %345 = vdwg.mxu0
  %346 = vmatprep.subr.bf16.mxu0 0
  %347 = vmatpush1.bf16.msra.mxu0 %v257
  %348 = vmatprep.subr.bf16.mxu0 0
  %349 = vmatpush1.bf16.msra.mxu0 %v258
  %350 = vmatprep.subr.bf16.mxu0 0
  %351 = vmatpush1.bf16.msra.mxu0 %v259
  %352 = vmatprep.subr.bf16.mxu0 0
  %353 = vmatpush1.bf16.msra.mxu0 %v260
  %354 = vmatprep.subr.bf16.mxu0 0
  %355 = vmatpush1.bf16.msra.mxu0 %v261
  %356 = vmatprep.subr.bf16.mxu0 0
  %357 = vmatpush1.bf16.msra.mxu0 %v262
  %358 = vmatprep.subr.bf16.mxu0 0
  %359 = vmatpush1.bf16.msra.mxu0 %v263
  %360 = vmatprep.subr.bf16.mxu0 0
  %361 = vmatpush1.bf16.msra.mxu0 %v264
  %362 = vmatprep.subr.bf16.mxu0 0
  %363 = vmatpush1.bf16.msra.mxu0 %v265
  %364 = vmatprep.subr.bf16.mxu0 0
  %365 = vmatpush1.bf16.msra.mxu0 %v266
  %366 = vmatprep.subr.bf16.mxu0 0
  %367 = vmatpush1.bf16.msra.mxu0 %v267
  %368 = vmatprep.subr.bf16.mxu0 0
  %369 = vmatpush1.bf16.msra.mxu0 %v268
  %370 = vmatprep.subr.bf16.mxu0 0
  %371 = vmatpush1.bf16.msra.mxu0 %v269
  %372 = vmatprep.subr.bf16.mxu0 0
  %373 = vmatpush1.bf16.msra.mxu0 %v270
  %374 = vmatprep.subr.bf16.mxu0 0
  %375 = vmatpush1.bf16.msra.mxu0 %v271
  %376 = vmatprep.subr.bf16.mxu0 0
  %377 = vmatpush1.bf16.msra.mxu0 %v272
  %378 = vmatprep.mubr.bf16.mxu0 %v108
  %379 = vmatmul.mubr.bf16.gmra.mrb[0].mxu0 %v107
  %v380 = vpop.f32.mrb[0].mxu0
  %v381 = vadd.f32 %v340, %v380
  %v382 = vpop.f32.mrb[0].mxu0
  %v383 = vpop.f32.mrb[0].mxu0
  %v384 = vadd.f32 %v343, %v383
  %v385 = vpop.f32.mrb[0].mxu0
  %386 = vdwg.mxu0
  %v387 = vld [vmem:[%s3] sm:$0xf]
  %v388 = vld [vmem:[%s3 + $0x4] sm:$0xf]
  %v389 = vunpack.c.l.bf16 %v387
  %v390 = vunpack.c.l.bf16 %v388
  %v391 = vadd.f32 %v381, %v389
  %v392 = vadd.f32 %v384, %v390
  %v393 = vpack.c.bf16 %v392, %v391
  %v395 = vunpack.c.l.b16 %v393
  %v396 = vunpack.c.h.b16 %v393
  %v397 = vpack.c.b16 %v395, %v395
  %v398 = vpack.c.b16 %v396, %v396
  %401 = vst [vmem:[%s4] sm:$0xf] %v397
  %402 = vst [vmem:[%s4 + $0x4] sm:$0xf] %v398
  // Predicated region
  $region18: #{get_intermediate_layers.23} parent=0 // pred_check
    _
  $region19: #{get_intermediate_layers.23} parent=0 // pred_check_branch
    %404 = sbr.rel (0) target = $region21
  $region20: #{get_intermediate_layers.23} parent=0 // pred_region
    _
  $region21: #{get_intermediate_layers.23} parent=0 // pred_fallthru
    _
  // Predicated region
  $region22: #{get_intermediate_layers.23} parent=0 // pred_check
    _
  $region23: #{get_intermediate_layers.23} parent=0 // pred_check_branch
    %406 = sbr.rel (0) target = $region25
  $region24: #{get_intermediate_layers.23} parent=0 // pred_region
    _
  $region25: #{get_intermediate_layers.23} parent=0 // pred_fallthru
    _

// kernel: get_intermediate_layers.22
$region0: #{get_intermediate_layers.22}
  #allocation0 [shape = 'u32[]', space=smem, size = 0x4, offset = 0x4, fixed_abs, tag = 'smem constant byte address 0x4 - core index']
  #allocation1 [shape = 'u32[144,128]{1,0:T(1,128)}', space=vmem, size = 0x12000, scoped, tag = 'internal scratch']
  #allocation2 [shape = 'bf16[16,128]{1,0:T(16,128)(2,1)}', space=vmem, size = 0x1000, scoped, tag = 'scratch operand']
  %s0 = inlined_call_operand.vmem [shape: bf16[16,128], index: 0, kind: input, shape index: {}]
  %s1 = inlined_call_operand.vmem [shape: bf16[128,512], index: 1, kind: input, shape index: {}]
  %s2 = inlined_call_operand.vmem [shape: f32[1,512], index: 2, kind: input, shape index: {}]
  %s3 = inlined_call_operand.vmem [shape: f32[1,128], index: 3, kind: input, shape index: {}]
  %s4 = inlined_call_operand.vmem [shape: f32[1,128], index: 4, kind: input, shape index: {}]
  %s5 = inlined_call_operand.vmem [shape: bf16[16,512], index: 5, kind: output, shape index: {}]
  %s6 = sld [smem:[#allocation0]]
  $region34: #{get_intermediate_layers.22} parent=0
    _
  %s8 = ssub.s32 1, %s6
  %s9 = scalar_select 0, %s8, %s6
  // Predicated region
  $region2: #{get_intermediate_layers.22} parent=0 // pred_check
    _
  $region3: #{get_intermediate_layers.22} parent=0 // pred_check_branch
    %11 = sbr.rel (0) target = $region5
  $region4: #{get_intermediate_layers.22} parent=0 // pred_region
    _
  $region5: #{get_intermediate_layers.22} parent=0 // pred_fallthru
    _
  // Predicated region
  $region6: #{get_intermediate_layers.22} parent=0 // pred_check
    _
  $region7: #{get_intermediate_layers.22} parent=0 // pred_check_branch
    %13 = sbr.rel (0) target = $region9
  $region8: #{get_intermediate_layers.22} parent=0 // pred_region
    _
  $region9: #{get_intermediate_layers.22} parent=0 // pred_fallthru
    _
  // Predicated region
  $region10: #{get_intermediate_layers.22} parent=0 // pred_check
    _
  $region11: #{get_intermediate_layers.22} parent=0 // pred_check_branch
    %15 = sbr.rel (0) target = $region13
  $region12: #{get_intermediate_layers.22} parent=0 // pred_region
    _
  $region13: #{get_intermediate_layers.22} parent=0 // pred_fallthru
    _
  // Predicated region
  $region14: #{get_intermediate_layers.22} parent=0 // pred_check
    _
  $region15: #{get_intermediate_layers.22} parent=0 // pred_check_branch
    %17 = sbr.rel (0) target = $region17
  $region16: #{get_intermediate_layers.22} parent=0 // pred_region
    _
  $region17: #{get_intermediate_layers.22} parent=0 // pred_fallthru
    _
  // Predicated region
  $region18: #{get_intermediate_layers.22} parent=0 // pred_check
    _
  $region19: #{get_intermediate_layers.22} parent=0 // pred_check_branch
    %19 = sbr.rel (0) target = $region21
  $region20: #{get_intermediate_layers.22} parent=0 // pred_region
    _
  $region21: #{get_intermediate_layers.22} parent=0 // pred_fallthru
    _
  %p21 = scmp.eq.s32.totalorder 0, 0
  // Predicated region
  $region22: #{get_intermediate_layers.22} parent=0 // pred_check
    %p22 = pneg %p21
  $region23: #{get_intermediate_layers.22} parent=0 // pred_check_branch
    %24 = sbr.rel (%p22) target = $region25
  $region24: #{get_intermediate_layers.22} parent=0 // pred_region
    %v25 = vld [vmem:[%s0] sm:$0xf]
    %v26 = vld [vmem:[%s0 + $0x4] sm:$0xf]
    %v27 = vunpack.c.l.bf16 %v25
    %v28 = vunpack.c.l.bf16 %v26
    %29 = vadd.xlane.f32.xlu0 %v27
    %v30 = vpop.xlane.xlu0 %29
    %31 = vadd.xlane.f32.xlu0 %v28
    %v32 = vpop.xlane.xlu0 %31
    %v33 = vrcp.pop 128.0
    %v34 = vmul.f32 %v30, %v33
    %v35 = vmul.f32 %v32, %v33
    %v36 = vsub.f32 %v27, %v34
    %v37 = vsub.f32 %v28, %v35
    %v38 = vmul.f32 %v36, %v36
    %v39 = vmul.f32 %v37, %v37
    %40 = vadd.xlane.f32.xlu0 %v38
    %v41 = vpop.xlane.xlu0 %40
    %42 = vadd.xlane.f32.xlu0 %v39
    %v43 = vpop.xlane.xlu0 %42
    %v44 = vmul.f32 %v41, %v33
    %v45 = vmul.f32 %v43, %v33
    %v46 = vadd.f32 %v44, 1e-06
    %v47 = vadd.f32 %v45, 1e-06
    %v48 = vrsqrt.pop %v46
    %v49 = vrsqrt.pop %v47
    %v50 = vmul.f32 %v36, %v48
    %v51 = vmul.f32 %v37, %v49
    %v52 = vld [vmem:[%s3] sm:$0x1]
    %v54 = vlaneseq
    %v55 = vshrl.u32 %v54, 7
    %v56 = vsub.s32 0, %v55
    %v57 = vrot.slane %v52, %v56
    %v59 = vmul.f32 %v50, %v57
    %v60 = vmul.f32 %v51, %v57
    %v61 = vld [vmem:[%s4] sm:$0x1]
    %v63 = vlaneseq
    %v64 = vshrl.u32 %v63, 7
    %v65 = vsub.s32 0, %v64
    %v66 = vrot.slane %v61, %v65
    %v68 = vadd.f32 %v59, %v66
    %v69 = vadd.f32 %v60, %v66
    %v70 = vpack.c.bf16 %v69, %v68
    %71 = vst [vmem:[#allocation2] sm:$0xff] %v70
  $region25: #{get_intermediate_layers.22} parent=0 // pred_fallthru
    _
  %v72 = vld [vmem:[#allocation2] sm:$0xff]
  %v73 = vld [vmem:[%s1] sm:$0xff]
  %v74 = vld [vmem:[%s1 + $0x8] sm:$0xff]
  %v75 = vld [vmem:[%s1 + $0x10] sm:$0xff]
  %v76 = vld [vmem:[%s1 + $0x18] sm:$0xff]
  %v77 = vld [vmem:[%s1 + $0x20] sm:$0xff]
  %v78 = vld [vmem:[%s1 + $0x28] sm:$0xff]
  %v79 = vld [vmem:[%s1 + $0x30] sm:$0xff]
  %v80 = vld [vmem:[%s1 + $0x38] sm:$0xff]
  %v81 = vld [vmem:[%s1 + $0x40] sm:$0xff]
  %v82 = vld [vmem:[%s1 + $0x48] sm:$0xff]
  %v83 = vld [vmem:[%s1 + $0x50] sm:$0xff]
  %v84 = vld [vmem:[%s1 + $0x58] sm:$0xff]
  %v85 = vld [vmem:[%s1 + $0x60] sm:$0xff]
  %v86 = vld [vmem:[%s1 + $0x68] sm:$0xff]
  %v87 = vld [vmem:[%s1 + $0x70] sm:$0xff]
  %v88 = vld [vmem:[%s1 + $0x78] sm:$0xff]
  %v89 = vld [vmem:[%s1 + $0x80] sm:$0xff]
  %v90 = vld [vmem:[%s1 + $0x88] sm:$0xff]
  %v91 = vld [vmem:[%s1 + $0x90] sm:$0xff]
  %v92 = vld [vmem:[%s1 + $0x98] sm:$0xff]
  %v93 = vld [vmem:[%s1 + $0xa0] sm:$0xff]
  %v94 = vld [vmem:[%s1 + $0xa8] sm:$0xff]
  %v95 = vld [vmem:[%s1 + $0xb0] sm:$0xff]
  %v96 = vld [vmem:[%s1 + $0xb8] sm:$0xff]
  %v97 = vld [vmem:[%s1 + $0xc0] sm:$0xff]
  %v98 = vld [vmem:[%s1 + $0xc8] sm:$0xff]
  %v99 = vld [vmem:[%s1 + $0xd0] sm:$0xff]
  %v100 = vld [vmem:[%s1 + $0xd8] sm:$0xff]
  %v101 = vld [vmem:[%s1 + $0xe0] sm:$0xff]
  %v102 = vld [vmem:[%s1 + $0xe8] sm:$0xff]
  %v103 = vld [vmem:[%s1 + $0xf0] sm:$0xff]
  %v104 = vld [vmem:[%s1 + $0xf8] sm:$0xff]
  %v105 = vld [vmem:[%s2] sm:$0xf]
  %v107 = vlaneseq
  %v108 = vshrl.u32 %v107, 7
  %v109 = vsub.s32 0, %v108
  %v110 = vrot.slane %v105, %v109
  %v111 = vlaneseq
  %v112 = vshrl.u32 %v111, 7
  %v113 = vsub.s32 1, %v112
  %v114 = vrot.slane %v105, %v113
  %v115 = vlaneseq
  %v116 = vshrl.u32 %v115, 7
  %v117 = vsub.s32 2, %v116
  %v118 = vrot.slane %v105, %v117
  %v119 = vlaneseq
  %v120 = vshrl.u32 %v119, 7
  %v121 = vsub.s32 3, %v120
  %v122 = vrot.slane %v105, %v121
  %v159 = vunpack.c.l.b16 %v73
  %v160 = vunpack.c.h.b16 %v73
  %v161 = vunpack.c.l.b16 %v74
  %v162 = vunpack.c.h.b16 %v74
  %v163 = vunpack.c.l.b16 %v75
  %v164 = vunpack.c.h.b16 %v75
  %v165 = vunpack.c.l.b16 %v76
  %v166 = vunpack.c.h.b16 %v76
  %v167 = vunpack.c.l.b16 %v77
  %v168 = vunpack.c.h.b16 %v77
  %v169 = vunpack.c.l.b16 %v78
  %v170 = vunpack.c.h.b16 %v78
  %v171 = vunpack.c.l.b16 %v79
  %v172 = vunpack.c.h.b16 %v79
  %v173 = vunpack.c.l.b16 %v80
  %v174 = vunpack.c.h.b16 %v80
  %v175 = vunpack.c.l.b16 %v81
  %v176 = vunpack.c.h.b16 %v81
  %v177 = vunpack.c.l.b16 %v82
  %v178 = vunpack.c.h.b16 %v82
  %v179 = vunpack.c.l.b16 %v83
  %v180 = vunpack.c.h.b16 %v83
  %v181 = vunpack.c.l.b16 %v84
  %v182 = vunpack.c.h.b16 %v84
  %v183 = vunpack.c.l.b16 %v85
  %v184 = vunpack.c.h.b16 %v85
  %v185 = vunpack.c.l.b16 %v86
  %v186 = vunpack.c.h.b16 %v86
  %v187 = vunpack.c.l.b16 %v87
  %v188 = vunpack.c.h.b16 %v87
  %v189 = vunpack.c.l.b16 %v88
  %v190 = vunpack.c.h.b16 %v88
  %v191 = vunpack.c.l.b16 %v89
  %v192 = vunpack.c.h.b16 %v89
  %v193 = vunpack.c.l.b16 %v90
  %v194 = vunpack.c.h.b16 %v90
  %v195 = vunpack.c.l.b16 %v91
  %v196 = vunpack.c.h.b16 %v91
  %v197 = vunpack.c.l.b16 %v92
  %v198 = vunpack.c.h.b16 %v92
  %v199 = vunpack.c.l.b16 %v93
  %v200 = vunpack.c.h.b16 %v93
  %v201 = vunpack.c.l.b16 %v94
  %v202 = vunpack.c.h.b16 %v94
  %v203 = vunpack.c.l.b16 %v95
  %v204 = vunpack.c.h.b16 %v95
  %v205 = vunpack.c.l.b16 %v96
  %v206 = vunpack.c.h.b16 %v96
  %v207 = vunpack.c.l.b16 %v97
  %v208 = vunpack.c.h.b16 %v97
  %v209 = vunpack.c.l.b16 %v98
  %v210 = vunpack.c.h.b16 %v98
  %v211 = vunpack.c.l.b16 %v99
  %v212 = vunpack.c.h.b16 %v99
  %v213 = vunpack.c.l.b16 %v100
  %v214 = vunpack.c.h.b16 %v100
  %v215 = vunpack.c.l.b16 %v101
  %v216 = vunpack.c.h.b16 %v101
  %v217 = vunpack.c.l.b16 %v102
  %v218 = vunpack.c.h.b16 %v102
  %v219 = vunpack.c.l.b16 %v103
  %v220 = vunpack.c.h.b16 %v103
  %v221 = vunpack.c.l.b16 %v104
  %v222 = vunpack.c.h.b16 %v104
  %v223 = vpack.c.b16 %v163, %v159
  %v224 = vpack.c.b16 %v164, %v160
  %v225 = vpack.c.b16 %v165, %v161
  %v226 = vpack.c.b16 %v166, %v162
  %v227 = vpack.c.b16 %v171, %v167
  %v228 = vpack.c.b16 %v172, %v168
  %v229 = vpack.c.b16 %v173, %v169
  %v230 = vpack.c.b16 %v174, %v170
  %v231 = vpack.c.b16 %v179, %v175
  %v232 = vpack.c.b16 %v180, %v176
  %v233 = vpack.c.b16 %v181, %v177
  %v234 = vpack.c.b16 %v182, %v178
  %v235 = vpack.c.b16 %v187, %v183
  %v236 = vpack.c.b16 %v188, %v184
  %v237 = vpack.c.b16 %v189, %v185
  %v238 = vpack.c.b16 %v190, %v186
  %v239 = vpack.c.b16 %v195, %v191
  %v240 = vpack.c.b16 %v196, %v192
  %v241 = vpack.c.b16 %v197, %v193
  %v242 = vpack.c.b16 %v198, %v194
  %v243 = vpack.c.b16 %v203, %v199
  %v244 = vpack.c.b16 %v204, %v200
  %v245 = vpack.c.b16 %v205, %v201
  %v246 = vpack.c.b16 %v206, %v202
  %v247 = vpack.c.b16 %v211, %v207
  %v248 = vpack.c.b16 %v212, %v208
  %v249 = vpack.c.b16 %v213, %v209
  %v250 = vpack.c.b16 %v214, %v210
  %v251 = vpack.c.b16 %v219, %v215
  %v252 = vpack.c.b16 %v220, %v216
  %v253 = vpack.c.b16 %v221, %v217
  %v254 = vpack.c.b16 %v222, %v218
  %287 = vmatprep.subr.bf16.mxu0 %v224
  %288 = vmatpush1.bf16.msra.mxu0 %v223
  %289 = vmatprep.subr.bf16.mxu0 %v228
  %290 = vmatpush1.bf16.msra.mxu0 %v227
  %291 = vmatprep.subr.bf16.mxu0 %v232
  %292 = vmatpush1.bf16.msra.mxu0 %v231
  %293 = vmatprep.subr.bf16.mxu0 %v236
  %294 = vmatpush1.bf16.msra.mxu0 %v235
  %295 = vmatprep.subr.bf16.mxu0 %v240
  %296 = vmatpush1.bf16.msra.mxu0 %v239
  %297 = vmatprep.subr.bf16.mxu0 %v244
  %298 = vmatpush1.bf16.msra.mxu0 %v243
  %299 = vmatprep.subr.bf16.mxu0 %v248
  %300 = vmatpush1.bf16.msra.mxu0 %v247
  %301 = vmatprep.subr.bf16.mxu0 %v252
  %302 = vmatpush1.bf16.msra.mxu0 %v251
  %303 = vmatprep.subr.bf16.mxu0 0
  %304 = vmatpush1.bf16.msra.mxu0 0
  %305 = vmatprep.subr.bf16.mxu0 0
  %306 = vmatpush1.bf16.msra.mxu0 0
  %307 = vmatprep.subr.bf16.mxu0 0
  %308 = vmatpush1.bf16.msra.mxu0 0
  %309 = vmatprep.subr.bf16.mxu0 0
  %310 = vmatpush1.bf16.msra.mxu0 0
  %311 = vmatprep.subr.bf16.mxu0 0
  %312 = vmatpush1.bf16.msra.mxu0 0
  %313 = vmatprep.subr.bf16.mxu0 0
  %314 = vmatpush1.bf16.msra.mxu0 0
  %315 = vmatprep.subr.bf16.mxu0 0
  %316 = vmatpush1.bf16.msra.mxu0 0
  %317 = vmatprep.subr.bf16.mxu0 0
  %318 = vmatpush1.bf16.msra.mxu0 0
  %319 = vmatprep.mubr.bf16.mxu0 0
  %320 = vmatmul.mubr.bf16.gmra.mrb[0].mxu0 %v72
  %v321 = vpop.f32.mrb[0].mxu0
  %v322 = vadd.f32 %v110, %v321
  %v323 = vpop.f32.mrb[0].mxu0
  %v324 = vadd.f32 %v114, %v323
  %v325 = vpop.f32.mrb[0].mxu0
  %v326 = vadd.f32 %v110, %v325
  %v327 = vpop.f32.mrb[0].mxu0
  %v328 = vadd.f32 %v114, %v327
  %329 = vdwg.mxu0
  %330 = vmatprep.subr.bf16.mxu0 %v226
  %331 = vmatpush1.bf16.msra.mxu0 %v225
  %332 = vmatprep.subr.bf16.mxu0 %v230
  %333 = vmatpush1.bf16.msra.mxu0 %v229
  %334 = vmatprep.subr.bf16.mxu0 %v234
  %335 = vmatpush1.bf16.msra.mxu0 %v233
  %336 = vmatprep.subr.bf16.mxu0 %v238
  %337 = vmatpush1.bf16.msra.mxu0 %v237
  %338 = vmatprep.subr.bf16.mxu0 %v242
  %339 = vmatpush1.bf16.msra.mxu0 %v241
  %340 = vmatprep.subr.bf16.mxu0 %v246
  %341 = vmatpush1.bf16.msra.mxu0 %v245
  %342 = vmatprep.subr.bf16.mxu0 %v250
  %343 = vmatpush1.bf16.msra.mxu0 %v249
  %344 = vmatprep.subr.bf16.mxu0 %v254
  %345 = vmatpush1.bf16.msra.mxu0 %v253
  %346 = vmatprep.subr.bf16.mxu0 0
  %347 = vmatpush1.bf16.msra.mxu0 0
  %348 = vmatprep.subr.bf16.mxu0 0
  %349 = vmatpush1.bf16.msra.mxu0 0
  %350 = vmatprep.subr.bf16.mxu0 0
  %351 = vmatpush1.bf16.msra.mxu0 0
  %352 = vmatprep.subr.bf16.mxu0 0
  %353 = vmatpush1.bf16.msra.mxu0 0
  %354 = vmatprep.subr.bf16.mxu0 0
  %355 = vmatpush1.bf16.msra.mxu0 0
  %356 = vmatprep.subr.bf16.mxu0 0
  %357 = vmatpush1.bf16.msra.mxu0 0
  %358 = vmatprep.subr.bf16.mxu0 0
  %359 = vmatpush1.bf16.msra.mxu0 0
  %360 = vmatprep.subr.bf16.mxu0 0
  %361 = vmatpush1.bf16.msra.mxu0 0
  %362 = vmatprep.mubr.bf16.mxu0 0
  %363 = vmatmul.mubr.bf16.gmra.mrb[0].mxu0 %v72
  %v364 = vpop.f32.mrb[0].mxu0
  %v365 = vadd.f32 %v118, %v364
  %v366 = vpop.f32.mrb[0].mxu0
  %v367 = vadd.f32 %v122, %v366
  %v368 = vpop.f32.mrb[0].mxu0
  %v369 = vadd.f32 %v118, %v368
  %v370 = vpop.f32.mrb[0].mxu0
  %v371 = vadd.f32 %v122, %v370
  %372 = vdwg.mxu0
  %v373 = vmul.f32 %v322, 0.5
  %v374 = vmul.f32 %v324, 0.5
  %v375 = vmul.f32 %v365, 0.5
  %v376 = vmul.f32 %v367, 0.5
  %v377 = vmul.f32 %v326, 0.5
  %v378 = vmul.f32 %v328, 0.5
  %v379 = vmul.f32 %v369, 0.5
  %v380 = vmul.f32 %v371, 0.5
  %v381 = vmul.f32 %v322, 0.044715
  %v382 = vmul.f32 %v324, 0.044715
  %v383 = vmul.f32 %v365, 0.044715
  %v384 = vmul.f32 %v367, 0.044715
  %v385 = vmul.f32 %v326, 0.044715
  %v386 = vmul.f32 %v328, 0.044715
  %v387 = vmul.f32 %v369, 0.044715
  %v388 = vmul.f32 %v371, 0.044715
  %v389 = vmul.f32 %v381, %v322
  %v390 = vmul.f32 %v382, %v324
  %v391 = vmul.f32 %v383, %v365
  %v392 = vmul.f32 %v384, %v367
  %v393 = vmul.f32 %v385, %v326
  %v394 = vmul.f32 %v386, %v328
  %v395 = vmul.f32 %v387, %v369
  %v396 = vmul.f32 %v388, %v371
  %v397 = vmul.f32 %v389, %v322
  %v398 = vmul.f32 %v390, %v324
  %v399 = vmul.f32 %v391, %v365
  %v400 = vmul.f32 %v392, %v367
  %v401 = vmul.f32 %v393, %v326
  %v402 = vmul.f32 %v394, %v328
  %v403 = vmul.f32 %v395, %v369
  %v404 = vmul.f32 %v396, %v371
  %v405 = vadd.f32 %v322, %v397
  %v406 = vadd.f32 %v324, %v398
  %v407 = vadd.f32 %v365, %v399
  %v408 = vadd.f32 %v367, %v400
  %v409 = vadd.f32 %v326, %v401
  %v410 = vadd.f32 %v328, %v402
  %v411 = vadd.f32 %v369, %v403
  %v412 = vadd.f32 %v371, %v404
  %v413 = vmul.f32 %v405, 0.7978846
  %v414 = vmul.f32 %v406, 0.7978846
  %v415 = vmul.f32 %v407, 0.7978846
  %v416 = vmul.f32 %v408, 0.7978846
  %v417 = vmul.f32 %v409, 0.7978846
  %v418 = vmul.f32 %v410, 0.7978846
  %v419 = vmul.f32 %v411, 0.7978846
  %v420 = vmul.f32 %v412, 0.7978846
  %v421 = vtanh.pop %v413
  %v422 = vtanh.pop %v414
  %v423 = vtanh.pop %v415
  %v424 = vtanh.pop %v416
  %v425 = vtanh.pop %v417
  %v426 = vtanh.pop %v418
  %v427 = vtanh.pop %v419
  %v428 = vtanh.pop %v420
  %v429 = vadd.f32 %v421, 1.0
  %v430 = vadd.f32 %v422, 1.0
  %v431 = vadd.f32 %v423, 1.0
  %v432 = vadd.f32 %v424, 1.0
  %v433 = vadd.f32 %v425, 1.0
  %v434 = vadd.f32 %v426, 1.0
  %v435 = vadd.f32 %v427, 1.0
  %v436 = vadd.f32 %v428, 1.0
  %v437 = vmul.f32 %v373, %v429
  %v438 = vmul.f32 %v374, %v430
  %v439 = vmul.f32 %v375, %v431
  %v440 = vmul.f32 %v376, %v432
  %v441 = vmul.f32 %v377, %v433
  %v442 = vmul.f32 %v378, %v434
  %v443 = vmul.f32 %v379, %v435
  %v444 = vmul.f32 %v380, %v436
  %v445 = vpack.c.bf16 %v441, %v437
  %v446 = vpack.c.bf16 %v442, %v438
  %v447 = vpack.c.bf16 %v443, %v439
  %v448 = vpack.c.bf16 %v444, %v440
  %v453 = vunpack.c.l.b16 %v445
  %v454 = vunpack.c.l.b16 %v446
  %v455 = vunpack.c.l.b16 %v447
  %v456 = vunpack.c.l.b16 %v448
  %v457 = vunpack.c.h.b16 %v445
  %v458 = vunpack.c.h.b16 %v446
  %v459 = vunpack.c.h.b16 %v447
  %v460 = vunpack.c.h.b16 %v448
  %v461 = vpack.c.b16 %v454, %v453
  %v462 = vpack.c.b16 %v456, %v455
  %v463 = vpack.c.b16 %v458, %v457
  %v464 = vpack.c.b16 %v460, %v459
  %469 = vst [vmem:[%s5] sm:$0xff] %v461
  %470 = vst [vmem:[%s5 + $0x8] sm:$0xff] %v462
  %471 = vst [vmem:[%s5 + $0x10] sm:$0xff] %v463
  %472 = vst [vmem:[%s5 + $0x18] sm:$0xff] %v464
  // Predicated region
  $region26: #{get_intermediate_layers.22} parent=0 // pred_check
    _
  $region27: #{get_intermediate_layers.22} parent=0 // pred_check_branch
    %474 = sbr.rel (0) target = $region29
  $region28: #{get_intermediate_layers.22} parent=0 // pred_region
    _
  $region29: #{get_intermediate_layers.22} parent=0 // pred_fallthru
    _
  // Predicated region
  $region30: #{get_intermediate_layers.22} parent=0 // pred_check
    _
  $region31: #{get_intermediate_layers.22} parent=0 // pred_check_branch
    %476 = sbr.rel (0) target = $region33
  $region32: #{get_intermediate_layers.22} parent=0 // pred_region
    _
  $region33: #{get_intermediate_layers.22} parent=0 // pred_fallthru
    _

</llo_original>
